<compile_context>
chip_gen: v6e
topology: v6e:2x2x1
jax: 0.10.0
libtpu: 0.0.40
codegen_flags: <defaults>
</compile_context>

<pallas_src>
import functools

import jax
import jax.numpy as jnp
from jax import lax
from jax.experimental import pallas as pl
from jax.experimental.pallas import tpu as pltpu

KERNEL_SIZE = 10
DIM_OUT_1 = 150
DIM_OUT_2 = 3


# ----------------------------------------------------------------------------
# Fused kernel: conv+relu+pool -> (Linear1-folded) LSTM stack -> head+softmax.
# refs = [xe, xo, conv_w, conv_b, w0a, w0b, whh0, b0,
#         (wih_l, whh_l, b_l) for l in 1..L-1,
#         w2, b2, h0, c0, out, seq_scratch]
# ----------------------------------------------------------------------------
def _fused_kernel(*refs, B, T, H, P, num_layers):
    (xe_ref, xo_ref, wc_ref, bc_ref,
     w0a_ref, w0b_ref, whh0_ref, b0_ref) = refs[:8]
    pos = 8
    layer_refs = []
    for _ in range(num_layers - 1):
        layer_refs.append(refs[pos:pos + 3])            # (w_ih, w_hh, bias)
        pos += 3
    w2_ref, b2_ref, h0_ref, c0_ref, out_ref, seq_ref = refs[pos:pos + 6]

    # ---- conv1d(1->2, k=10) + ReLU + maxpool1d(2), even/odd decomposition ---
    xe = xe_ref[...]                      # (N, IN//2) = x[:, 0::2]
    xo = xo_ref[...]                      # (N, IN//2) = x[:, 1::2]
    n = xe.shape[0]
    pooled = []
    for ch in range(2):
        ce = jnp.zeros((n, P), jnp.float32)     # conv at even positions 2p
        co = jnp.zeros((n, P), jnp.float32)     # conv at odd  positions 2p+1
        for k in range(KERNEL_SIZE):
            w = wc_ref[ch, k]                   # scalar from SMEM
            if k % 2 == 0:
                m = k // 2
                ce = ce + w * xe[:, m:m + P]
                co = co + w * xo[:, m:m + P]
            else:
                m = (k - 1) // 2
                ce = ce + w * xo[:, m:m + P]
                co = co + w * xe[:, m + 1:m + 1 + P]
        b = bc_ref[ch]
        ce = jnp.maximum(ce + b, 0.0)           # ReLU
        co = jnp.maximum(co + b, 0.0)
        pooled.append(jnp.maximum(ce, co))      # max_pool1d(2): (N, P)

    def run_layer(gx, whh, h, c):
        # Fully unrolled time loop (T static): lets the scheduler overlap the
        # recurrent matmul / EUP gates / seq stores across steps.
        for t in range(T):
            g = gx[t * B:(t + 1) * B] + jnp.dot(
                h, whh, preferred_element_type=jnp.float32)      # (B, 4H)
            i = jax.nn.sigmoid(g[:, 0:H])
            f = jax.nn.sigmoid(g[:, H:2 * H])
            gg = jnp.tanh(g[:, 2 * H:3 * H])
            o = jax.nn.sigmoid(g[:, 3 * H:4 * H])
            c = f * c + i * gg
            h = o * jnp.tanh(c)
            seq_ref[pl.ds(t * B, B), :] = h

    # ---- LSTM layer 0: Linear1 folded into W_ih, projection hoisted over T --
    # Two dots (one per conv channel) instead of an unaligned lane-dim concat
    # of the P-wide pooled channels; this matmul is negligible either way.
    gx0 = (jnp.dot(pooled[0], w0a_ref[...], preferred_element_type=jnp.float32)
           + jnp.dot(pooled[1], w0b_ref[...], preferred_element_type=jnp.float32)
           + b0_ref[...])                                        # (T*B, 4H)
    run_layer(gx0, whh0_ref[...], h0_ref[0], c0_ref[0])

    # ---- LSTM layers 1..L-1: hoisted input matmul on the whole sequence -----
    for l, (wih_ref, whh_ref, b_ref) in enumerate(layer_refs, start=1):
        gx = jnp.dot(seq_ref[...], wih_ref[...],
                     preferred_element_type=jnp.float32) + b_ref[...]
        run_layer(gx, whh_ref[...], h0_ref[l], c0_ref[l])

    # ---- head: Linear2 + softmax over the BATCH dim (as in the torch code) --
    z = jnp.dot(seq_ref[...], w2_ref[...],
                preferred_element_type=jnp.float32) + b2_ref[...]   # (T*B, 3)
    for t in range(T):
        zt = z[t * B:(t + 1) * B]                    # (B, 3) logits at time t
        m = jnp.max(zt, axis=0, keepdims=True)
        e = jnp.exp(zt - m)
        s = jnp.sum(e, axis=0, keepdims=True)
        out_ref[t] = e / s                           # (B, 3) probs at time t


# ----------------------------------------------------------------------------
# Wrapper
# ----------------------------------------------------------------------------
def bda_crnn_forward(data, params, h0, c0):
    B, T, IN = data.shape                       # IN assumed even (demo: 32)
    L = IN - KERNEL_SIZE + 1
    P = L // 2
    H = params['hidden_size']
    num_layers = len(params['lstm'])
    hi = lax.Precision.HIGHEST

    # Time-major flatten (row = t*B + b) + even/odd feature de-interleave.
    x_tm = data.transpose(1, 0, 2).reshape(T * B, IN).astype(jnp.float32)
    xe = x_tm[:, 0::2]
    xo = x_tm[:, 1::2]

    # Fold Linear1 into LSTM layer-0's input weights (no nonlinearity between):
    #   gates_x = pooled @ (W_ih0 @ W1).T + (W_ih0 @ b1 + b_ih0 + b_hh0)
    l0 = params['lstm'][0]
    W1 = params['lin1_w']                                   # (150, 2P)
    w0_comb = jnp.dot(l0['w_ih'], W1, precision=hi).T       # (2P, 4H)
    w0a = w0_comb[:P]                                       # channel-0 rows
    w0b = w0_comb[P:]                                       # channel-1 rows
    b0 = (jnp.dot(l0['w_ih'], params['lin1_b'], precision=hi)
          + l0['b_ih'] + l0['b_hh']).reshape(1, 4 * H)
    whh0 = l0['w_hh'].T                                     # (H, 4H)

    extra = []
    for lw in params['lstm'][1:]:
        extra += [lw['w_ih'].T, lw['w_hh'].T,
                  (lw['b_ih'] + lw['b_hh']).reshape(1, 4 * H)]

    w2 = params['lin2_w'].T                                 # (H, 3)
    b2 = params['lin2_b'].reshape(1, DIM_OUT_2)

    vmem = pl.BlockSpec(memory_space=pltpu.MemorySpace.VMEM)
    smem = pl.BlockSpec(memory_space=pltpu.MemorySpace.SMEM)
    in_specs = ([vmem, vmem, smem, smem, vmem, vmem, vmem, vmem]
                + [vmem] * (3 * (num_layers - 1))
                + [vmem, vmem, vmem, vmem])

    out_tm = pl.pallas_call(
        functools.partial(_fused_kernel, B=B, T=T, H=H, P=P,
                          num_layers=num_layers),
        out_shape=jax.ShapeDtypeStruct((T, B, DIM_OUT_2), jnp.float32),
        in_specs=in_specs,
        out_specs=vmem,
        scratch_shapes=[pltpu.VMEM((T * B, H), jnp.float32)],
    )(xe, xo, params['conv_w'], params['conv_b'],
      w0a, w0b, whh0, b0, *extra, w2, b2, h0, c0)

    # torch: x.transpose(1, 2) -> (B, 3, T); softmax(dim=0) already applied.
    return out_tm.transpose(1, 2, 0)


# ----------------------------------------------------------------------------
# Pure-JAX reference (mirrors the PyTorch forward) for a correctness check.
# ----------------------------------------------------------------------------
def _reference(data, params, h0, c0):
    B, T, IN = data.shape
    x = data.reshape(-1, IN)
    L = IN - KERNEL_SIZE + 1
    cols = jnp.stack([x[:, l:l + KERNEL_SIZE] for l in range(L)], axis=1)  # (N,L,K)
    conv = jnp.einsum('nlk,ck->ncl', cols, params['conv_w']) \
        + params['conv_b'][None, :, None]
    conv = jax.nn.relu(conv)
    P = L // 2
    pooled = jnp.max(conv[:, :, :2 * P].reshape(-1, 2, P, 2), axis=-1)
    flat = pooled.reshape(-1, 2 * P)
    h1 = flat @ params['lin1_w'].T + params['lin1_b']
    seq = h1.reshape(B, T, DIM_OUT_1)
    H = params['hidden_size']
    for l, lw in enumerate(params['lstm']):
        h, c = h0[l], c0[l]
        outs = []
        for t in range(T):
            g = seq[:, t, :] @ lw['w_ih'].T + lw['b_ih'] + h @ lw['w_hh'].T + lw['b_hh']
            i = jax.nn.sigmoid(g[:, :H]); f = jax.nn.sigmoid(g[:, H:2 * H])
            gg = jnp.tanh(g[:, 2 * H:3 * H]); o = jax.nn.sigmoid(g[:, 3 * H:])
            c = f * c + i * gg
            h = o * jnp.tanh(c)
            outs.append(h)
        seq = jnp.stack(outs, axis=1)
    z = seq @ params['lin2_w'].T + params['lin2_b']
    z = z.transpose(0, 2, 1)                     # (B, 3, T)
    return jax.nn.softmax(z, axis=0)             # softmax over dim 0, as in torch


# ----------------------------------------------------------------------------
# Deterministic parameter init (synthetic — shapes follow the torch __init__).
# ----------------------------------------------------------------------------
def init_params(key, input_size, layers_size, hidden_size):
    P = (input_size - KERNEL_SIZE + 1) // 2
    flat = 2 * P
    keys = jax.random.split(key, 8 + 4 * layers_size)

    def u(k, shape, scale):
        return jax.random.uniform(k, shape, jnp.float32, -scale, scale)

    params = {
        'hidden_size': hidden_size,
        'conv_w': u(keys[0], (2, KERNEL_SIZE), 0.3),
        'conv_b': u(keys[1], (2,), 0.3),
        'lin1_w': u(keys[2], (DIM_OUT_1, flat), 0.2),
        'lin1_b': u(keys[3], (DIM_OUT_1,), 0.2),
        'lin2_w': u(keys[4], (DIM_OUT_2, hidden_size), 0.2),
        'lin2_b': u(keys[5], (DIM_OUT_2,), 0.2),
        'lstm': [],
    }
    d = DIM_OUT_1
    for l in range(layers_size):
        k0, k1, k2, k3 = keys[8 + 4 * l: 12 + 4 * l]
        params['lstm'].append({
            'w_ih': u(k0, (4 * hidden_size, d), 0.1),
            'w_hh': u(k1, (4 * hidden_size, hidden_size), 0.1),
            'b_ih': u(k2, (4 * hidden_size,), 0.1),
            'b_hh': u(k3, (4 * hidden_size,), 0.1),
        })
        d = hidden_size
    return params


if __name__ == "__main__":
    B, T = 2, 8
    input_size, layers_size, cells_size, hidden_size = 32, 2, 0, 32  # cells_size unused in forward

    key = jax.random.PRNGKey(0)
    kd, kp = jax.random.split(key)
    data = jax.random.normal(kd, (B, T, input_size), jnp.float32)
    params = init_params(kp, input_size, layers_size, hidden_size)

    # TODO(synk): the torch module never initializes self.hidden/self.cell in
    # __init__; we use zero initial states of shape (num_layers, B, H).
    h0 = jnp.zeros((layers_size, B, hidden_size), jnp.float32)
    c0 = jnp.zeros((layers_size, B, hidden_size), jnp.float32)

    out = bda_crnn_forward(data, params, h0, c0)
    out = jax.block_until_ready(out)
    assert out.shape == (B, DIM_OUT_2, T), out.shape

    ref = jax.block_until_ready(_reference(data, params, h0, c0))
    err = jnp.max(jnp.abs(out - ref))
    # Tolerance is looser than the un-fused version because Linear1 is folded
    # into layer-0's input weights (a different rounding path than the
    # layer-by-layer reference); a real bug would be orders of magnitude bigger.
    assert jnp.allclose(out, ref, rtol=5e-3, atol=5e-3), f"max abs err = {err}"

    print("KERNEL_OK")
</pallas_src>

<mosaic_0001>
module attributes {stable_mosaic.version = 11 : i64} {
  func.func @_fused_kernel(%arg0: memref<16x16xf32, #tpu.memory_space<vmem>>, %arg1: memref<16x16xf32, #tpu.memory_space<vmem>>, %arg2: memref<2x10xf32, #tpu.memory_space<smem>>, %arg3: memref<2xf32, #tpu.memory_space<smem>>, %arg4: memref<11x128xf32, #tpu.memory_space<vmem>>, %arg5: memref<11x128xf32, #tpu.memory_space<vmem>>, %arg6: memref<32x128xf32, #tpu.memory_space<vmem>>, %arg7: memref<1x128xf32, #tpu.memory_space<vmem>>, %arg8: memref<32x128xf32, #tpu.memory_space<vmem>>, %arg9: memref<32x128xf32, #tpu.memory_space<vmem>>, %arg10: memref<1x128xf32, #tpu.memory_space<vmem>>, %arg11: memref<32x3xf32, #tpu.memory_space<vmem>>, %arg12: memref<1x3xf32, #tpu.memory_space<vmem>>, %arg13: memref<2x2x32xf32, #tpu.memory_space<vmem>>, %arg14: memref<2x2x32xf32, #tpu.memory_space<vmem>>, %arg15: memref<8x2x3xf32, #tpu.memory_space<vmem>>, %arg16: memref<16x32xf32, #tpu.memory_space<vmem>>) attributes {dimension_semantics = [], scalar_prefetch = 0 : i64, scratch_operands = 1 : i64, tpu.core_type = #tpu.core_type<tc>} {
    %c0 = arith.constant 0 : index
    %c0_0 = arith.constant 0 : index
    %0 = vector.load %arg0[%c0, %c0_0] : memref<16x16xf32, #tpu.memory_space<vmem>>, vector<16x16xf32>
    %c0_1 = arith.constant 0 : index
    %c0_2 = arith.constant 0 : index
    %1 = vector.load %arg1[%c0_1, %c0_2] : memref<16x16xf32, #tpu.memory_space<vmem>>, vector<16x16xf32>
    %cst = arith.constant 0.000000e+00 : f32
    %2 = vector.broadcast %cst : f32 to vector<16x11xf32>
    %cst_3 = arith.constant 0.000000e+00 : f32
    %3 = vector.broadcast %cst_3 : f32 to vector<16x11xf32>
    %c0_4 = arith.constant 0 : index
    %c0_5 = arith.constant 0 : index
    %4 = memref.load %arg2[%c0_4, %c0_5] : memref<2x10xf32, #tpu.memory_space<smem>>
    %5 = vector.extract_strided_slice %0 {offsets = [0, 0], sizes = [16, 11], strides = [1, 1]} : vector<16x16xf32> to vector<16x11xf32>
    %6 = vector.broadcast %4 : f32 to vector<16x11xf32>
    %7 = arith.mulf %6, %5 : vector<16x11xf32>
    %8 = arith.addf %2, %7 : vector<16x11xf32>
    %9 = vector.extract_strided_slice %1 {offsets = [0, 0], sizes = [16, 11], strides = [1, 1]} : vector<16x16xf32> to vector<16x11xf32>
    %10 = vector.broadcast %4 : f32 to vector<16x11xf32>
    %11 = arith.mulf %10, %9 : vector<16x11xf32>
    %12 = arith.addf %3, %11 : vector<16x11xf32>
    %c0_6 = arith.constant 0 : index
    %c1 = arith.constant 1 : index
    %13 = memref.load %arg2[%c0_6, %c1] : memref<2x10xf32, #tpu.memory_space<smem>>
    %14 = vector.extract_strided_slice %1 {offsets = [0, 0], sizes = [16, 11], strides = [1, 1]} : vector<16x16xf32> to vector<16x11xf32>
    %15 = vector.broadcast %13 : f32 to vector<16x11xf32>
    %16 = arith.mulf %15, %14 : vector<16x11xf32>
    %17 = arith.addf %8, %16 : vector<16x11xf32>
    %18 = vector.extract_strided_slice %0 {offsets = [0, 1], sizes = [16, 11], strides = [1, 1]} : vector<16x16xf32> to vector<16x11xf32>
    %19 = vector.broadcast %13 : f32 to vector<16x11xf32>
    %20 = arith.mulf %19, %18 : vector<16x11xf32>
    %21 = arith.addf %12, %20 : vector<16x11xf32>
    %c0_7 = arith.constant 0 : index
    %c2 = arith.constant 2 : index
    %22 = memref.load %arg2[%c0_7, %c2] : memref<2x10xf32, #tpu.memory_space<smem>>
    %23 = vector.extract_strided_slice %0 {offsets = [0, 1], sizes = [16, 11], strides = [1, 1]} : vector<16x16xf32> to vector<16x11xf32>
    %24 = vector.broadcast %22 : f32 to vector<16x11xf32>
    %25 = arith.mulf %24, %23 : vector<16x11xf32>
    %26 = arith.addf %17, %25 : vector<16x11xf32>
    %27 = vector.extract_strided_slice %1 {offsets = [0, 1], sizes = [16, 11], strides = [1, 1]} : vector<16x16xf32> to vector<16x11xf32>
    %28 = vector.broadcast %22 : f32 to vector<16x11xf32>
    %29 = arith.mulf %28, %27 : vector<16x11xf32>
    %30 = arith.addf %21, %29 : vector<16x11xf32>
    %c0_8 = arith.constant 0 : index
    %c3 = arith.constant 3 : index
    %31 = memref.load %arg2[%c0_8, %c3] : memref<2x10xf32, #tpu.memory_space<smem>>
    %32 = vector.extract_strided_slice %1 {offsets = [0, 1], sizes = [16, 11], strides = [1, 1]} : vector<16x16xf32> to vector<16x11xf32>
    %33 = vector.broadcast %31 : f32 to vector<16x11xf32>
    %34 = arith.mulf %33, %32 : vector<16x11xf32>
    %35 = arith.addf %26, %34 : vector<16x11xf32>
    %36 = vector.extract_strided_slice %0 {offsets = [0, 2], sizes = [16, 11], strides = [1, 1]} : vector<16x16xf32> to vector<16x11xf32>
    %37 = vector.broadcast %31 : f32 to vector<16x11xf32>
    %38 = arith.mulf %37, %36 : vector<16x11xf32>
    %39 = arith.addf %30, %38 : vector<16x11xf32>
    %c0_9 = arith.constant 0 : index
    %c4 = arith.constant 4 : index
    %40 = memref.load %arg2[%c0_9, %c4] : memref<2x10xf32, #tpu.memory_space<smem>>
    %41 = vector.extract_strided_slice %0 {offsets = [0, 2], sizes = [16, 11], strides = [1, 1]} : vector<16x16xf32> to vector<16x11xf32>
    %42 = vector.broadcast %40 : f32 to vector<16x11xf32>
    %43 = arith.mulf %42, %41 : vector<16x11xf32>
    %44 = arith.addf %35, %43 : vector<16x11xf32>
    %45 = vector.extract_strided_slice %1 {offsets = [0, 2], sizes = [16, 11], strides = [1, 1]} : vector<16x16xf32> to vector<16x11xf32>
    %46 = vector.broadcast %40 : f32 to vector<16x11xf32>
    %47 = arith.mulf %46, %45 : vector<16x11xf32>
    %48 = arith.addf %39, %47 : vector<16x11xf32>
    %c0_10 = arith.constant 0 : index
    %c5 = arith.constant 5 : index
    %49 = memref.load %arg2[%c0_10, %c5] : memref<2x10xf32, #tpu.memory_space<smem>>
    %50 = vector.extract_strided_slice %1 {offsets = [0, 2], sizes = [16, 11], strides = [1, 1]} : vector<16x16xf32> to vector<16x11xf32>
    %51 = vector.broadcast %49 : f32 to vector<16x11xf32>
    %52 = arith.mulf %51, %50 : vector<16x11xf32>
    %53 = arith.addf %44, %52 : vector<16x11xf32>
    %54 = vector.extract_strided_slice %0 {offsets = [0, 3], sizes = [16, 11], strides = [1, 1]} : vector<16x16xf32> to vector<16x11xf32>
    %55 = vector.broadcast %49 : f32 to vector<16x11xf32>
    %56 = arith.mulf %55, %54 : vector<16x11xf32>
    %57 = arith.addf %48, %56 : vector<16x11xf32>
    %c0_11 = arith.constant 0 : index
    %c6 = arith.constant 6 : index
    %58 = memref.load %arg2[%c0_11, %c6] : memref<2x10xf32, #tpu.memory_space<smem>>
    %59 = vector.extract_strided_slice %0 {offsets = [0, 3], sizes = [16, 11], strides = [1, 1]} : vector<16x16xf32> to vector<16x11xf32>
    %60 = vector.broadcast %58 : f32 to vector<16x11xf32>
    %61 = arith.mulf %60, %59 : vector<16x11xf32>
    %62 = arith.addf %53, %61 : vector<16x11xf32>
    %63 = vector.extract_strided_slice %1 {offsets = [0, 3], sizes = [16, 11], strides = [1, 1]} : vector<16x16xf32> to vector<16x11xf32>
    %64 = vector.broadcast %58 : f32 to vector<16x11xf32>
    %65 = arith.mulf %64, %63 : vector<16x11xf32>
    %66 = arith.addf %57, %65 : vector<16x11xf32>
    %c0_12 = arith.constant 0 : index
    %c7 = arith.constant 7 : index
    %67 = memref.load %arg2[%c0_12, %c7] : memref<2x10xf32, #tpu.memory_space<smem>>
    %68 = vector.extract_strided_slice %1 {offsets = [0, 3], sizes = [16, 11], strides = [1, 1]} : vector<16x16xf32> to vector<16x11xf32>
    %69 = vector.broadcast %67 : f32 to vector<16x11xf32>
    %70 = arith.mulf %69, %68 : vector<16x11xf32>
    %71 = arith.addf %62, %70 : vector<16x11xf32>
    %72 = vector.extract_strided_slice %0 {offsets = [0, 4], sizes = [16, 11], strides = [1, 1]} : vector<16x16xf32> to vector<16x11xf32>
    %73 = vector.broadcast %67 : f32 to vector<16x11xf32>
    %74 = arith.mulf %73, %72 : vector<16x11xf32>
    %75 = arith.addf %66, %74 : vector<16x11xf32>
    %c0_13 = arith.constant 0 : index
    %c8 = arith.constant 8 : index
    %76 = memref.load %arg2[%c0_13, %c8] : memref<2x10xf32, #tpu.memory_space<smem>>
    %77 = vector.extract_strided_slice %0 {offsets = [0, 4], sizes = [16, 11], strides = [1, 1]} : vector<16x16xf32> to vector<16x11xf32>
    %78 = vector.broadcast %76 : f32 to vector<16x11xf32>
    %79 = arith.mulf %78, %77 : vector<16x11xf32>
    %80 = arith.addf %71, %79 : vector<16x11xf32>
    %81 = vector.extract_strided_slice %1 {offsets = [0, 4], sizes = [16, 11], strides = [1, 1]} : vector<16x16xf32> to vector<16x11xf32>
    %82 = vector.broadcast %76 : f32 to vector<16x11xf32>
    %83 = arith.mulf %82, %81 : vector<16x11xf32>
    %84 = arith.addf %75, %83 : vector<16x11xf32>
    %c0_14 = arith.constant 0 : index
    %c9 = arith.constant 9 : index
    %85 = memref.load %arg2[%c0_14, %c9] : memref<2x10xf32, #tpu.memory_space<smem>>
    %86 = vector.extract_strided_slice %1 {offsets = [0, 4], sizes = [16, 11], strides = [1, 1]} : vector<16x16xf32> to vector<16x11xf32>
    %87 = vector.broadcast %85 : f32 to vector<16x11xf32>
    %88 = arith.mulf %87, %86 : vector<16x11xf32>
    %89 = arith.addf %80, %88 : vector<16x11xf32>
    %90 = vector.extract_strided_slice %0 {offsets = [0, 5], sizes = [16, 11], strides = [1, 1]} : vector<16x16xf32> to vector<16x11xf32>
    %91 = vector.broadcast %85 : f32 to vector<16x11xf32>
    %92 = arith.mulf %91, %90 : vector<16x11xf32>
    %93 = arith.addf %84, %92 : vector<16x11xf32>
    %c0_15 = arith.constant 0 : index
    %94 = memref.load %arg3[%c0_15] : memref<2xf32, #tpu.memory_space<smem>>
    %95 = vector.broadcast %94 : f32 to vector<16x11xf32>
    %96 = arith.addf %89, %95 : vector<16x11xf32>
    %cst_16 = arith.constant 0.000000e+00 : f32
    %97 = vector.broadcast %cst_16 : f32 to vector<16x11xf32>
    %98 = arith.maximumf %96, %97 : vector<16x11xf32>
    %99 = vector.broadcast %94 : f32 to vector<16x11xf32>
    %100 = arith.addf %93, %99 : vector<16x11xf32>
    %cst_17 = arith.constant 0.000000e+00 : f32
    %101 = vector.broadcast %cst_17 : f32 to vector<16x11xf32>
    %102 = arith.maximumf %100, %101 : vector<16x11xf32>
    %103 = arith.maximumf %98, %102 : vector<16x11xf32>
    %cst_18 = arith.constant 0.000000e+00 : f32
    %104 = vector.broadcast %cst_18 : f32 to vector<16x11xf32>
    %cst_19 = arith.constant 0.000000e+00 : f32
    %105 = vector.broadcast %cst_19 : f32 to vector<16x11xf32>
    %c1_20 = arith.constant 1 : index
    %c0_21 = arith.constant 0 : index
    %106 = memref.load %arg2[%c1_20, %c0_21] : memref<2x10xf32, #tpu.memory_space<smem>>
    %107 = vector.extract_strided_slice %0 {offsets = [0, 0], sizes = [16, 11], strides = [1, 1]} : vector<16x16xf32> to vector<16x11xf32>
    %108 = vector.broadcast %106 : f32 to vector<16x11xf32>
    %109 = arith.mulf %108, %107 : vector<16x11xf32>
    %110 = arith.addf %104, %109 : vector<16x11xf32>
    %111 = vector.extract_strided_slice %1 {offsets = [0, 0], sizes = [16, 11], strides = [1, 1]} : vector<16x16xf32> to vector<16x11xf32>
    %112 = vector.broadcast %106 : f32 to vector<16x11xf32>
    %113 = arith.mulf %112, %111 : vector<16x11xf32>
    %114 = arith.addf %105, %113 : vector<16x11xf32>
    %c1_22 = arith.constant 1 : index
    %c1_23 = arith.constant 1 : index
    %115 = memref.load %arg2[%c1_22, %c1_23] : memref<2x10xf32, #tpu.memory_space<smem>>
    %116 = vector.extract_strided_slice %1 {offsets = [0, 0], sizes = [16, 11], strides = [1, 1]} : vector<16x16xf32> to vector<16x11xf32>
    %117 = vector.broadcast %115 : f32 to vector<16x11xf32>
    %118 = arith.mulf %117, %116 : vector<16x11xf32>
    %119 = arith.addf %110, %118 : vector<16x11xf32>
    %120 = vector.extract_strided_slice %0 {offsets = [0, 1], sizes = [16, 11], strides = [1, 1]} : vector<16x16xf32> to vector<16x11xf32>
    %121 = vector.broadcast %115 : f32 to vector<16x11xf32>
    %122 = arith.mulf %121, %120 : vector<16x11xf32>
    %123 = arith.addf %114, %122 : vector<16x11xf32>
    %c1_24 = arith.constant 1 : index
    %c2_25 = arith.constant 2 : index
    %124 = memref.load %arg2[%c1_24, %c2_25] : memref<2x10xf32, #tpu.memory_space<smem>>
    %125 = vector.extract_strided_slice %0 {offsets = [0, 1], sizes = [16, 11], strides = [1, 1]} : vector<16x16xf32> to vector<16x11xf32>
    %126 = vector.broadcast %124 : f32 to vector<16x11xf32>
    %127 = arith.mulf %126, %125 : vector<16x11xf32>
    %128 = arith.addf %119, %127 : vector<16x11xf32>
    %129 = vector.extract_strided_slice %1 {offsets = [0, 1], sizes = [16, 11], strides = [1, 1]} : vector<16x16xf32> to vector<16x11xf32>
    %130 = vector.broadcast %124 : f32 to vector<16x11xf32>
    %131 = arith.mulf %130, %129 : vector<16x11xf32>
    %132 = arith.addf %123, %131 : vector<16x11xf32>
    %c1_26 = arith.constant 1 : index
    %c3_27 = arith.constant 3 : index
    %133 = memref.load %arg2[%c1_26, %c3_27] : memref<2x10xf32, #tpu.memory_space<smem>>
    %134 = vector.extract_strided_slice %1 {offsets = [0, 1], sizes = [16, 11], strides = [1, 1]} : vector<16x16xf32> to vector<16x11xf32>
    %135 = vector.broadcast %133 : f32 to vector<16x11xf32>
    %136 = arith.mulf %135, %134 : vector<16x11xf32>
    %137 = arith.addf %128, %136 : vector<16x11xf32>
    %138 = vector.extract_strided_slice %0 {offsets = [0, 2], sizes = [16, 11], strides = [1, 1]} : vector<16x16xf32> to vector<16x11xf32>
    %139 = vector.broadcast %133 : f32 to vector<16x11xf32>
    %140 = arith.mulf %139, %138 : vector<16x11xf32>
    %141 = arith.addf %132, %140 : vector<16x11xf32>
    %c1_28 = arith.constant 1 : index
    %c4_29 = arith.constant 4 : index
    %142 = memref.load %arg2[%c1_28, %c4_29] : memref<2x10xf32, #tpu.memory_space<smem>>
    %143 = vector.extract_strided_slice %0 {offsets = [0, 2], sizes = [16, 11], strides = [1, 1]} : vector<16x16xf32> to vector<16x11xf32>
    %144 = vector.broadcast %142 : f32 to vector<16x11xf32>
    %145 = arith.mulf %144, %143 : vector<16x11xf32>
    %146 = arith.addf %137, %145 : vector<16x11xf32>
    %147 = vector.extract_strided_slice %1 {offsets = [0, 2], sizes = [16, 11], strides = [1, 1]} : vector<16x16xf32> to vector<16x11xf32>
    %148 = vector.broadcast %142 : f32 to vector<16x11xf32>
    %149 = arith.mulf %148, %147 : vector<16x11xf32>
    %150 = arith.addf %141, %149 : vector<16x11xf32>
    %c1_30 = arith.constant 1 : index
    %c5_31 = arith.constant 5 : index
    %151 = memref.load %arg2[%c1_30, %c5_31] : memref<2x10xf32, #tpu.memory_space<smem>>
    %152 = vector.extract_strided_slice %1 {offsets = [0, 2], sizes = [16, 11], strides = [1, 1]} : vector<16x16xf32> to vector<16x11xf32>
    %153 = vector.broadcast %151 : f32 to vector<16x11xf32>
    %154 = arith.mulf %153, %152 : vector<16x11xf32>
    %155 = arith.addf %146, %154 : vector<16x11xf32>
    %156 = vector.extract_strided_slice %0 {offsets = [0, 3], sizes = [16, 11], strides = [1, 1]} : vector<16x16xf32> to vector<16x11xf32>
    %157 = vector.broadcast %151 : f32 to vector<16x11xf32>
    %158 = arith.mulf %157, %156 : vector<16x11xf32>
    %159 = arith.addf %150, %158 : vector<16x11xf32>
    %c1_32 = arith.constant 1 : index
    %c6_33 = arith.constant 6 : index
    %160 = memref.load %arg2[%c1_32, %c6_33] : memref<2x10xf32, #tpu.memory_space<smem>>
    %161 = vector.extract_strided_slice %0 {offsets = [0, 3], sizes = [16, 11], strides = [1, 1]} : vector<16x16xf32> to vector<16x11xf32>
    %162 = vector.broadcast %160 : f32 to vector<16x11xf32>
    %163 = arith.mulf %162, %161 : vector<16x11xf32>
    %164 = arith.addf %155, %163 : vector<16x11xf32>
    %165 = vector.extract_strided_slice %1 {offsets = [0, 3], sizes = [16, 11], strides = [1, 1]} : vector<16x16xf32> to vector<16x11xf32>
    %166 = vector.broadcast %160 : f32 to vector<16x11xf32>
    %167 = arith.mulf %166, %165 : vector<16x11xf32>
    %168 = arith.addf %159, %167 : vector<16x11xf32>
    %c1_34 = arith.constant 1 : index
    %c7_35 = arith.constant 7 : index
    %169 = memref.load %arg2[%c1_34, %c7_35] : memref<2x10xf32, #tpu.memory_space<smem>>
    %170 = vector.extract_strided_slice %1 {offsets = [0, 3], sizes = [16, 11], strides = [1, 1]} : vector<16x16xf32> to vector<16x11xf32>
    %171 = vector.broadcast %169 : f32 to vector<16x11xf32>
    %172 = arith.mulf %171, %170 : vector<16x11xf32>
    %173 = arith.addf %164, %172 : vector<16x11xf32>
    %174 = vector.extract_strided_slice %0 {offsets = [0, 4], sizes = [16, 11], strides = [1, 1]} : vector<16x16xf32> to vector<16x11xf32>
    %175 = vector.broadcast %169 : f32 to vector<16x11xf32>
    %176 = arith.mulf %175, %174 : vector<16x11xf32>
    %177 = arith.addf %168, %176 : vector<16x11xf32>
    %c1_36 = arith.constant 1 : index
    %c8_37 = arith.constant 8 : index
    %178 = memref.load %arg2[%c1_36, %c8_37] : memref<2x10xf32, #tpu.memory_space<smem>>
    %179 = vector.extract_strided_slice %0 {offsets = [0, 4], sizes = [16, 11], strides = [1, 1]} : vector<16x16xf32> to vector<16x11xf32>
    %180 = vector.broadcast %178 : f32 to vector<16x11xf32>
    %181 = arith.mulf %180, %179 : vector<16x11xf32>
    %182 = arith.addf %173, %181 : vector<16x11xf32>
    %183 = vector.extract_strided_slice %1 {offsets = [0, 4], sizes = [16, 11], strides = [1, 1]} : vector<16x16xf32> to vector<16x11xf32>
    %184 = vector.broadcast %178 : f32 to vector<16x11xf32>
    %185 = arith.mulf %184, %183 : vector<16x11xf32>
    %186 = arith.addf %177, %185 : vector<16x11xf32>
    %c1_38 = arith.constant 1 : index
    %c9_39 = arith.constant 9 : index
    %187 = memref.load %arg2[%c1_38, %c9_39] : memref<2x10xf32, #tpu.memory_space<smem>>
    %188 = vector.extract_strided_slice %1 {offsets = [0, 4], sizes = [16, 11], strides = [1, 1]} : vector<16x16xf32> to vector<16x11xf32>
    %189 = vector.broadcast %187 : f32 to vector<16x11xf32>
    %190 = arith.mulf %189, %188 : vector<16x11xf32>
    %191 = arith.addf %182, %190 : vector<16x11xf32>
    %192 = vector.extract_strided_slice %0 {offsets = [0, 5], sizes = [16, 11], strides = [1, 1]} : vector<16x16xf32> to vector<16x11xf32>
    %193 = vector.broadcast %187 : f32 to vector<16x11xf32>
    %194 = arith.mulf %193, %192 : vector<16x11xf32>
    %195 = arith.addf %186, %194 : vector<16x11xf32>
    %c1_40 = arith.constant 1 : index
    %196 = memref.load %arg3[%c1_40] : memref<2xf32, #tpu.memory_space<smem>>
    %197 = vector.broadcast %196 : f32 to vector<16x11xf32>
    %198 = arith.addf %191, %197 : vector<16x11xf32>
    %cst_41 = arith.constant 0.000000e+00 : f32
    %199 = vector.broadcast %cst_41 : f32 to vector<16x11xf32>
    %200 = arith.maximumf %198, %199 : vector<16x11xf32>
    %201 = vector.broadcast %196 : f32 to vector<16x11xf32>
    %202 = arith.addf %195, %201 : vector<16x11xf32>
    %cst_42 = arith.constant 0.000000e+00 : f32
    %203 = vector.broadcast %cst_42 : f32 to vector<16x11xf32>
    %204 = arith.maximumf %202, %203 : vector<16x11xf32>
    %205 = arith.maximumf %200, %204 : vector<16x11xf32>
    %c0_43 = arith.constant 0 : index
    %c0_44 = arith.constant 0 : index
    %206 = vector.load %arg4[%c0_43, %c0_44] : memref<11x128xf32, #tpu.memory_space<vmem>>, vector<11x128xf32>
    %cst_45 = arith.constant dense<0.000000e+00> : vector<16x128xf32>
    %207 = tpu.matmul %103, %206, %cst_45 {dimension_numbers = #tpu.dot_dimension_numbers<[1], [0], [0], [1], [0, 0, 1, 1], [], []>} : vector<16x11xf32>, vector<11x128xf32>, vector<16x128xf32> -> vector<16x128xf32>
    %c0_46 = arith.constant 0 : index
    %c0_47 = arith.constant 0 : index
    %208 = vector.load %arg5[%c0_46, %c0_47] : memref<11x128xf32, #tpu.memory_space<vmem>>, vector<11x128xf32>
    %cst_48 = arith.constant dense<0.000000e+00> : vector<16x128xf32>
    %209 = tpu.matmul %205, %208, %cst_48 {dimension_numbers = #tpu.dot_dimension_numbers<[1], [0], [0], [1], [0, 0, 1, 1], [], []>} : vector<16x11xf32>, vector<11x128xf32>, vector<16x128xf32> -> vector<16x128xf32>
    %210 = arith.addf %207, %209 : vector<16x128xf32>
    %c0_49 = arith.constant 0 : index
    %c0_50 = arith.constant 0 : index
    %211 = vector.load %arg7[%c0_49, %c0_50] : memref<1x128xf32, #tpu.memory_space<vmem>>, vector<1x128xf32>
    %212 = vector.broadcast %211 : vector<1x128xf32> to vector<16x128xf32>
    %213 = arith.addf %210, %212 : vector<16x128xf32>
    %c0_51 = arith.constant 0 : index
    %c0_52 = arith.constant 0 : index
    %214 = vector.load %arg6[%c0_51, %c0_52] : memref<32x128xf32, #tpu.memory_space<vmem>>, vector<32x128xf32>
    %c0_53 = arith.constant 0 : index
    %c0_54 = arith.constant 0 : index
    %c0_55 = arith.constant 0 : index
    %215 = vector.load %arg13[%c0_53, %c0_54, %c0_55] : memref<2x2x32xf32, #tpu.memory_space<vmem>>, vector<1x2x32xf32>
    %216 = vector.shape_cast %215 : vector<1x2x32xf32> to vector<2x32xf32>
    %c0_56 = arith.constant 0 : index
    %c0_57 = arith.constant 0 : index
    %c0_58 = arith.constant 0 : index
    %217 = vector.load %arg14[%c0_56, %c0_57, %c0_58] : memref<2x2x32xf32, #tpu.memory_space<vmem>>, vector<1x2x32xf32>
    %218 = vector.shape_cast %217 : vector<1x2x32xf32> to vector<2x32xf32>
    %219 = vector.extract_strided_slice %213 {offsets = [0, 0], sizes = [2, 128], strides = [1, 1]} : vector<16x128xf32> to vector<2x128xf32>
    %cst_59 = arith.constant dense<0.000000e+00> : vector<2x128xf32>
    %220 = tpu.matmul %216, %214, %cst_59 {dimension_numbers = #tpu.dot_dimension_numbers<[1], [0], [0], [1], [0, 0, 1, 1], [], []>} : vector<2x32xf32>, vector<32x128xf32>, vector<2x128xf32> -> vector<2x128xf32>
    %221 = arith.addf %219, %220 : vector<2x128xf32>
    %222 = vector.extract_strided_slice %221 {offsets = [0, 0], sizes = [2, 32], strides = [1, 1]} : vector<2x128xf32> to vector<2x32xf32>
    %223 = arith.negf %222 : vector<2x32xf32>
    %224 = math.exp %223 : vector<2x32xf32>
    %cst_60 = arith.constant 1.000000e+00 : f32
    %225 = vector.broadcast %cst_60 : f32 to vector<2x32xf32>
    %226 = arith.addf %225, %224 : vector<2x32xf32>
    %227 = arith.divf %225, %226 : vector<2x32xf32>
    %228 = vector.extract_strided_slice %221 {offsets = [0, 32], sizes = [2, 32], strides = [1, 1]} : vector<2x128xf32> to vector<2x32xf32>
    %229 = arith.negf %228 : vector<2x32xf32>
    %230 = math.exp %229 : vector<2x32xf32>
    %cst_61 = arith.constant 1.000000e+00 : f32
    %231 = vector.broadcast %cst_61 : f32 to vector<2x32xf32>
    %232 = arith.addf %231, %230 : vector<2x32xf32>
    %233 = arith.divf %231, %232 : vector<2x32xf32>
    %234 = vector.extract_strided_slice %221 {offsets = [0, 64], sizes = [2, 32], strides = [1, 1]} : vector<2x128xf32> to vector<2x32xf32>
    %235 = math.tanh %234 : vector<2x32xf32>
    %236 = vector.extract_strided_slice %221 {offsets = [0, 96], sizes = [2, 32], strides = [1, 1]} : vector<2x128xf32> to vector<2x32xf32>
    %237 = arith.negf %236 : vector<2x32xf32>
    %238 = math.exp %237 : vector<2x32xf32>
    %cst_62 = arith.constant 1.000000e+00 : f32
    %239 = vector.broadcast %cst_62 : f32 to vector<2x32xf32>
    %240 = arith.addf %239, %238 : vector<2x32xf32>
    %241 = arith.divf %239, %240 : vector<2x32xf32>
    %242 = arith.mulf %233, %218 : vector<2x32xf32>
    %243 = arith.mulf %227, %235 : vector<2x32xf32>
    %244 = arith.addf %242, %243 : vector<2x32xf32>
    %245 = math.tanh %244 : vector<2x32xf32>
    %246 = arith.mulf %241, %245 : vector<2x32xf32>
    %c0_63 = arith.constant 0 : index
    %c0_64 = arith.constant 0 : index
    %247 = vector.load %arg16[%c0_63, %c0_64] : memref<16x32xf32, #tpu.memory_space<vmem>>, vector<2x32xf32>
    tpu.vector_store %arg16[%c0_63, %c0_64], %246 {strides = array<i32>} : memref<16x32xf32, #tpu.memory_space<vmem>>, vector<2x32xf32>,
    %248 = vector.extract_strided_slice %213 {offsets = [2, 0], sizes = [2, 128], strides = [1, 1]} : vector<16x128xf32> to vector<2x128xf32>
    %cst_65 = arith.constant dense<0.000000e+00> : vector<2x128xf32>
    %249 = tpu.matmul %246, %214, %cst_65 {dimension_numbers = #tpu.dot_dimension_numbers<[1], [0], [0], [1], [0, 0, 1, 1], [], []>} : vector<2x32xf32>, vector<32x128xf32>, vector<2x128xf32> -> vector<2x128xf32>
    %250 = arith.addf %248, %249 : vector<2x128xf32>
    %251 = vector.extract_strided_slice %250 {offsets = [0, 0], sizes = [2, 32], strides = [1, 1]} : vector<2x128xf32> to vector<2x32xf32>
    %252 = arith.negf %251 : vector<2x32xf32>
    %253 = math.exp %252 : vector<2x32xf32>
    %cst_66 = arith.constant 1.000000e+00 : f32
    %254 = vector.broadcast %cst_66 : f32 to vector<2x32xf32>
    %255 = arith.addf %254, %253 : vector<2x32xf32>
    %256 = arith.divf %254, %255 : vector<2x32xf32>
    %257 = vector.extract_strided_slice %250 {offsets = [0, 32], sizes = [2, 32], strides = [1, 1]} : vector<2x128xf32> to vector<2x32xf32>
    %258 = arith.negf %257 : vector<2x32xf32>
    %259 = math.exp %258 : vector<2x32xf32>
    %cst_67 = arith.constant 1.000000e+00 : f32
    %260 = vector.broadcast %cst_67 : f32 to vector<2x32xf32>
    %261 = arith.addf %260, %259 : vector<2x32xf32>
    %262 = arith.divf %260, %261 : vector<2x32xf32>
    %263 = vector.extract_strided_slice %250 {offsets = [0, 64], sizes = [2, 32], strides = [1, 1]} : vector<2x128xf32> to vector<2x32xf32>
    %264 = math.tanh %263 : vector<2x32xf32>
    %265 = vector.extract_strided_slice %250 {offsets = [0, 96], sizes = [2, 32], strides = [1, 1]} : vector<2x128xf32> to vector<2x32xf32>
    %266 = arith.negf %265 : vector<2x32xf32>
    %267 = math.exp %266 : vector<2x32xf32>
    %cst_68 = arith.constant 1.000000e+00 : f32
    %268 = vector.broadcast %cst_68 : f32 to vector<2x32xf32>
    %269 = arith.addf %268, %267 : vector<2x32xf32>
    %270 = arith.divf %268, %269 : vector<2x32xf32>
    %271 = arith.mulf %262, %244 : vector<2x32xf32>
    %272 = arith.mulf %256, %264 : vector<2x32xf32>
    %273 = arith.addf %271, %272 : vector<2x32xf32>
    %274 = math.tanh %273 : vector<2x32xf32>
    %275 = arith.mulf %270, %274 : vector<2x32xf32>
    %c2_69 = arith.constant 2 : index
    %c0_70 = arith.constant 0 : index
    %276 = vector.load %arg16[%c2_69, %c0_70] : memref<16x32xf32, #tpu.memory_space<vmem>>, vector<2x32xf32>
    tpu.vector_store %arg16[%c2_69, %c0_70], %275 {strides = array<i32>} : memref<16x32xf32, #tpu.memory_space<vmem>>, vector<2x32xf32>,
    %277 = vector.extract_strided_slice %213 {offsets = [4, 0], sizes = [2, 128], strides = [1, 1]} : vector<16x128xf32> to vector<2x128xf32>
    %cst_71 = arith.constant dense<0.000000e+00> : vector<2x128xf32>
    %278 = tpu.matmul %275, %214, %cst_71 {dimension_numbers = #tpu.dot_dimension_numbers<[1], [0], [0], [1], [0, 0, 1, 1], [], []>} : vector<2x32xf32>, vector<32x128xf32>, vector<2x128xf32> -> vector<2x128xf32>
    %279 = arith.addf %277, %278 : vector<2x128xf32>
    %280 = vector.extract_strided_slice %279 {offsets = [0, 0], sizes = [2, 32], strides = [1, 1]} : vector<2x128xf32> to vector<2x32xf32>
    %281 = arith.negf %280 : vector<2x32xf32>
    %282 = math.exp %281 : vector<2x32xf32>
    %cst_72 = arith.constant 1.000000e+00 : f32
    %283 = vector.broadcast %cst_72 : f32 to vector<2x32xf32>
    %284 = arith.addf %283, %282 : vector<2x32xf32>
    %285 = arith.divf %283, %284 : vector<2x32xf32>
    %286 = vector.extract_strided_slice %279 {offsets = [0, 32], sizes = [2, 32], strides = [1, 1]} : vector<2x128xf32> to vector<2x32xf32>
    %287 = arith.negf %286 : vector<2x32xf32>
    %288 = math.exp %287 : vector<2x32xf32>
    %cst_73 = arith.constant 1.000000e+00 : f32
    %289 = vector.broadcast %cst_73 : f32 to vector<2x32xf32>
    %290 = arith.addf %289, %288 : vector<2x32xf32>
    %291 = arith.divf %289, %290 : vector<2x32xf32>
    %292 = vector.extract_strided_slice %279 {offsets = [0, 64], sizes = [2, 32], strides = [1, 1]} : vector<2x128xf32> to vector<2x32xf32>
    %293 = math.tanh %292 : vector<2x32xf32>
    %294 = vector.extract_strided_slice %279 {offsets = [0, 96], sizes = [2, 32], strides = [1, 1]} : vector<2x128xf32> to vector<2x32xf32>
    %295 = arith.negf %294 : vector<2x32xf32>
    %296 = math.exp %295 : vector<2x32xf32>
    %cst_74 = arith.constant 1.000000e+00 : f32
    %297 = vector.broadcast %cst_74 : f32 to vector<2x32xf32>
    %298 = arith.addf %297, %296 : vector<2x32xf32>
    %299 = arith.divf %297, %298 : vector<2x32xf32>
    %300 = arith.mulf %291, %273 : vector<2x32xf32>
    %301 = arith.mulf %285, %293 : vector<2x32xf32>
    %302 = arith.addf %300, %301 : vector<2x32xf32>
    %303 = math.tanh %302 : vector<2x32xf32>
    %304 = arith.mulf %299, %303 : vector<2x32xf32>
    %c4_75 = arith.constant 4 : index
    %c0_76 = arith.constant 0 : index
    %305 = vector.load %arg16[%c4_75, %c0_76] : memref<16x32xf32, #tpu.memory_space<vmem>>, vector<2x32xf32>
    tpu.vector_store %arg16[%c4_75, %c0_76], %304 {strides = array<i32>} : memref<16x32xf32, #tpu.memory_space<vmem>>, vector<2x32xf32>,
    %306 = vector.extract_strided_slice %213 {offsets = [6, 0], sizes = [2, 128], strides = [1, 1]} : vector<16x128xf32> to vector<2x128xf32>
    %cst_77 = arith.constant dense<0.000000e+00> : vector<2x128xf32>
    %307 = tpu.matmul %304, %214, %cst_77 {dimension_numbers = #tpu.dot_dimension_numbers<[1], [0], [0], [1], [0, 0, 1, 1], [], []>} : vector<2x32xf32>, vector<32x128xf32>, vector<2x128xf32> -> vector<2x128xf32>
    %308 = arith.addf %306, %307 : vector<2x128xf32>
    %309 = vector.extract_strided_slice %308 {offsets = [0, 0], sizes = [2, 32], strides = [1, 1]} : vector<2x128xf32> to vector<2x32xf32>
    %310 = arith.negf %309 : vector<2x32xf32>
    %311 = math.exp %310 : vector<2x32xf32>
    %cst_78 = arith.constant 1.000000e+00 : f32
    %312 = vector.broadcast %cst_78 : f32 to vector<2x32xf32>
    %313 = arith.addf %312, %311 : vector<2x32xf32>
    %314 = arith.divf %312, %313 : vector<2x32xf32>
    %315 = vector.extract_strided_slice %308 {offsets = [0, 32], sizes = [2, 32], strides = [1, 1]} : vector<2x128xf32> to vector<2x32xf32>
    %316 = arith.negf %315 : vector<2x32xf32>
    %317 = math.exp %316 : vector<2x32xf32>
    %cst_79 = arith.constant 1.000000e+00 : f32
    %318 = vector.broadcast %cst_79 : f32 to vector<2x32xf32>
    %319 = arith.addf %318, %317 : vector<2x32xf32>
    %320 = arith.divf %318, %319 : vector<2x32xf32>
    %321 = vector.extract_strided_slice %308 {offsets = [0, 64], sizes = [2, 32], strides = [1, 1]} : vector<2x128xf32> to vector<2x32xf32>
    %322 = math.tanh %321 : vector<2x32xf32>
    %323 = vector.extract_strided_slice %308 {offsets = [0, 96], sizes = [2, 32], strides = [1, 1]} : vector<2x128xf32> to vector<2x32xf32>
    %324 = arith.negf %323 : vector<2x32xf32>
    %325 = math.exp %324 : vector<2x32xf32>
    %cst_80 = arith.constant 1.000000e+00 : f32
    %326 = vector.broadcast %cst_80 : f32 to vector<2x32xf32>
    %327 = arith.addf %326, %325 : vector<2x32xf32>
    %328 = arith.divf %326, %327 : vector<2x32xf32>
    %329 = arith.mulf %320, %302 : vector<2x32xf32>
    %330 = arith.mulf %314, %322 : vector<2x32xf32>
    %331 = arith.addf %329, %330 : vector<2x32xf32>
    %332 = math.tanh %331 : vector<2x32xf32>
    %333 = arith.mulf %328, %332 : vector<2x32xf32>
    %c6_81 = arith.constant 6 : index
    %c0_82 = arith.constant 0 : index
    %334 = vector.load %arg16[%c6_81, %c0_82] : memref<16x32xf32, #tpu.memory_space<vmem>>, vector<2x32xf32>
    tpu.vector_store %arg16[%c6_81, %c0_82], %333 {strides = array<i32>} : memref<16x32xf32, #tpu.memory_space<vmem>>, vector<2x32xf32>,
    %335 = vector.extract_strided_slice %213 {offsets = [8, 0], sizes = [2, 128], strides = [1, 1]} : vector<16x128xf32> to vector<2x128xf32>
    %cst_83 = arith.constant dense<0.000000e+00> : vector<2x128xf32>
    %336 = tpu.matmul %333, %214, %cst_83 {dimension_numbers = #tpu.dot_dimension_numbers<[1], [0], [0], [1], [0, 0, 1, 1], [], []>} : vector<2x32xf32>, vector<32x128xf32>, vector<2x128xf32> -> vector<2x128xf32>
    %337 = arith.addf %335, %336 : vector<2x128xf32>
    %338 = vector.extract_strided_slice %337 {offsets = [0, 0], sizes = [2, 32], strides = [1, 1]} : vector<2x128xf32> to vector<2x32xf32>
    %339 = arith.negf %338 : vector<2x32xf32>
    %340 = math.exp %339 : vector<2x32xf32>
    %cst_84 = arith.constant 1.000000e+00 : f32
    %341 = vector.broadcast %cst_84 : f32 to vector<2x32xf32>
    %342 = arith.addf %341, %340 : vector<2x32xf32>
    %343 = arith.divf %341, %342 : vector<2x32xf32>
    %344 = vector.extract_strided_slice %337 {offsets = [0, 32], sizes = [2, 32], strides = [1, 1]} : vector<2x128xf32> to vector<2x32xf32>
    %345 = arith.negf %344 : vector<2x32xf32>
    %346 = math.exp %345 : vector<2x32xf32>
    %cst_85 = arith.constant 1.000000e+00 : f32
    %347 = vector.broadcast %cst_85 : f32 to vector<2x32xf32>
    %348 = arith.addf %347, %346 : vector<2x32xf32>
    %349 = arith.divf %347, %348 : vector<2x32xf32>
    %350 = vector.extract_strided_slice %337 {offsets = [0, 64], sizes = [2, 32], strides = [1, 1]} : vector<2x128xf32> to vector<2x32xf32>
    %351 = math.tanh %350 : vector<2x32xf32>
    %352 = vector.extract_strided_slice %337 {offsets = [0, 96], sizes = [2, 32], strides = [1, 1]} : vector<2x128xf32> to vector<2x32xf32>
    %353 = arith.negf %352 : vector<2x32xf32>
    %354 = math.exp %353 : vector<2x32xf32>
    %cst_86 = arith.constant 1.000000e+00 : f32
    %355 = vector.broadcast %cst_86 : f32 to vector<2x32xf32>
    %356 = arith.addf %355, %354 : vector<2x32xf32>
    %357 = arith.divf %355, %356 : vector<2x32xf32>
    %358 = arith.mulf %349, %331 : vector<2x32xf32>
    %359 = arith.mulf %343, %351 : vector<2x32xf32>
    %360 = arith.addf %358, %359 : vector<2x32xf32>
    %361 = math.tanh %360 : vector<2x32xf32>
    %362 = arith.mulf %357, %361 : vector<2x32xf32>
    %c8_87 = arith.constant 8 : index
    %c0_88 = arith.constant 0 : index
    %363 = vector.load %arg16[%c8_87, %c0_88] : memref<16x32xf32, #tpu.memory_space<vmem>>, vector<2x32xf32>
    tpu.vector_store %arg16[%c8_87, %c0_88], %362 {strides = array<i32>} : memref<16x32xf32, #tpu.memory_space<vmem>>, vector<2x32xf32>,
    %364 = vector.extract_strided_slice %213 {offsets = [10, 0], sizes = [2, 128], strides = [1, 1]} : vector<16x128xf32> to vector<2x128xf32>
    %cst_89 = arith.constant dense<0.000000e+00> : vector<2x128xf32>
    %365 = tpu.matmul %362, %214, %cst_89 {dimension_numbers = #tpu.dot_dimension_numbers<[1], [0], [0], [1], [0, 0, 1, 1], [], []>} : vector<2x32xf32>, vector<32x128xf32>, vector<2x128xf32> -> vector<2x128xf32>
    %366 = arith.addf %364, %365 : vector<2x128xf32>
    %367 = vector.extract_strided_slice %366 {offsets = [0, 0], sizes = [2, 32], strides = [1, 1]} : vector<2x128xf32> to vector<2x32xf32>
    %368 = arith.negf %367 : vector<2x32xf32>
    %369 = math.exp %368 : vector<2x32xf32>
    %cst_90 = arith.constant 1.000000e+00 : f32
    %370 = vector.broadcast %cst_90 : f32 to vector<2x32xf32>
    %371 = arith.addf %370, %369 : vector<2x32xf32>
    %372 = arith.divf %370, %371 : vector<2x32xf32>
    %373 = vector.extract_strided_slice %366 {offsets = [0, 32], sizes = [2, 32], strides = [1, 1]} : vector<2x128xf32> to vector<2x32xf32>
    %374 = arith.negf %373 : vector<2x32xf32>
    %375 = math.exp %374 : vector<2x32xf32>
    %cst_91 = arith.constant 1.000000e+00 : f32
    %376 = vector.broadcast %cst_91 : f32 to vector<2x32xf32>
    %377 = arith.addf %376, %375 : vector<2x32xf32>
    %378 = arith.divf %376, %377 : vector<2x32xf32>
    %379 = vector.extract_strided_slice %366 {offsets = [0, 64], sizes = [2, 32], strides = [1, 1]} : vector<2x128xf32> to vector<2x32xf32>
    %380 = math.tanh %379 : vector<2x32xf32>
    %381 = vector.extract_strided_slice %366 {offsets = [0, 96], sizes = [2, 32], strides = [1, 1]} : vector<2x128xf32> to vector<2x32xf32>
    %382 = arith.negf %381 : vector<2x32xf32>
    %383 = math.exp %382 : vector<2x32xf32>
    %cst_92 = arith.constant 1.000000e+00 : f32
    %384 = vector.broadcast %cst_92 : f32 to vector<2x32xf32>
    %385 = arith.addf %384, %383 : vector<2x32xf32>
    %386 = arith.divf %384, %385 : vector<2x32xf32>
    %387 = arith.mulf %378, %360 : vector<2x32xf32>
    %388 = arith.mulf %372, %380 : vector<2x32xf32>
    %389 = arith.addf %387, %388 : vector<2x32xf32>
    %390 = math.tanh %389 : vector<2x32xf32>
    %391 = arith.mulf %386, %390 : vector<2x32xf32>
    %c10 = arith.constant 10 : index
    %c0_93 = arith.constant 0 : index
    %392 = vector.load %arg16[%c10, %c0_93] : memref<16x32xf32, #tpu.memory_space<vmem>>, vector<2x32xf32>
    tpu.vector_store %arg16[%c10, %c0_93], %391 {strides = array<i32>} : memref<16x32xf32, #tpu.memory_space<vmem>>, vector<2x32xf32>,
    %393 = vector.extract_strided_slice %213 {offsets = [12, 0], sizes = [2, 128], strides = [1, 1]} : vector<16x128xf32> to vector<2x128xf32>
    %cst_94 = arith.constant dense<0.000000e+00> : vector<2x128xf32>
    %394 = tpu.matmul %391, %214, %cst_94 {dimension_numbers = #tpu.dot_dimension_numbers<[1], [0], [0], [1], [0, 0, 1, 1], [], []>} : vector<2x32xf32>, vector<32x128xf32>, vector<2x128xf32> -> vector<2x128xf32>
    %395 = arith.addf %393, %394 : vector<2x128xf32>
    %396 = vector.extract_strided_slice %395 {offsets = [0, 0], sizes = [2, 32], strides = [1, 1]} : vector<2x128xf32> to vector<2x32xf32>
    %397 = arith.negf %396 : vector<2x32xf32>
    %398 = math.exp %397 : vector<2x32xf32>
    %cst_95 = arith.constant 1.000000e+00 : f32
    %399 = vector.broadcast %cst_95 : f32 to vector<2x32xf32>
    %400 = arith.addf %399, %398 : vector<2x32xf32>
    %401 = arith.divf %399, %400 : vector<2x32xf32>
    %402 = vector.extract_strided_slice %395 {offsets = [0, 32], sizes = [2, 32], strides = [1, 1]} : vector<2x128xf32> to vector<2x32xf32>
    %403 = arith.negf %402 : vector<2x32xf32>
    %404 = math.exp %403 : vector<2x32xf32>
    %cst_96 = arith.constant 1.000000e+00 : f32
    %405 = vector.broadcast %cst_96 : f32 to vector<2x32xf32>
    %406 = arith.addf %405, %404 : vector<2x32xf32>
    %407 = arith.divf %405, %406 : vector<2x32xf32>
    %408 = vector.extract_strided_slice %395 {offsets = [0, 64], sizes = [2, 32], strides = [1, 1]} : vector<2x128xf32> to vector<2x32xf32>
    %409 = math.tanh %408 : vector<2x32xf32>
    %410 = vector.extract_strided_slice %395 {offsets = [0, 96], sizes = [2, 32], strides = [1, 1]} : vector<2x128xf32> to vector<2x32xf32>
    %411 = arith.negf %410 : vector<2x32xf32>
    %412 = math.exp %411 : vector<2x32xf32>
    %cst_97 = arith.constant 1.000000e+00 : f32
    %413 = vector.broadcast %cst_97 : f32 to vector<2x32xf32>
    %414 = arith.addf %413, %412 : vector<2x32xf32>
    %415 = arith.divf %413, %414 : vector<2x32xf32>
    %416 = arith.mulf %407, %389 : vector<2x32xf32>
    %417 = arith.mulf %401, %409 : vector<2x32xf32>
    %418 = arith.addf %416, %417 : vector<2x32xf32>
    %419 = math.tanh %418 : vector<2x32xf32>
    %420 = arith.mulf %415, %419 : vector<2x32xf32>
    %c12 = arith.constant 12 : index
    %c0_98 = arith.constant 0 : index
    %421 = vector.load %arg16[%c12, %c0_98] : memref<16x32xf32, #tpu.memory_space<vmem>>, vector<2x32xf32>
    tpu.vector_store %arg16[%c12, %c0_98], %420 {strides = array<i32>} : memref<16x32xf32, #tpu.memory_space<vmem>>, vector<2x32xf32>,
    %422 = vector.extract_strided_slice %213 {offsets = [14, 0], sizes = [2, 128], strides = [1, 1]} : vector<16x128xf32> to vector<2x128xf32>
    %cst_99 = arith.constant dense<0.000000e+00> : vector<2x128xf32>
    %423 = tpu.matmul %420, %214, %cst_99 {dimension_numbers = #tpu.dot_dimension_numbers<[1], [0], [0], [1], [0, 0, 1, 1], [], []>} : vector<2x32xf32>, vector<32x128xf32>, vector<2x128xf32> -> vector<2x128xf32>
    %424 = arith.addf %422, %423 : vector<2x128xf32>
    %425 = vector.extract_strided_slice %424 {offsets = [0, 0], sizes = [2, 32], strides = [1, 1]} : vector<2x128xf32> to vector<2x32xf32>
    %426 = arith.negf %425 : vector<2x32xf32>
    %427 = math.exp %426 : vector<2x32xf32>
    %cst_100 = arith.constant 1.000000e+00 : f32
    %428 = vector.broadcast %cst_100 : f32 to vector<2x32xf32>
    %429 = arith.addf %428, %427 : vector<2x32xf32>
    %430 = arith.divf %428, %429 : vector<2x32xf32>
    %431 = vector.extract_strided_slice %424 {offsets = [0, 32], sizes = [2, 32], strides = [1, 1]} : vector<2x128xf32> to vector<2x32xf32>
    %432 = arith.negf %431 : vector<2x32xf32>
    %433 = math.exp %432 : vector<2x32xf32>
    %cst_101 = arith.constant 1.000000e+00 : f32
    %434 = vector.broadcast %cst_101 : f32 to vector<2x32xf32>
    %435 = arith.addf %434, %433 : vector<2x32xf32>
    %436 = arith.divf %434, %435 : vector<2x32xf32>
    %437 = vector.extract_strided_slice %424 {offsets = [0, 64], sizes = [2, 32], strides = [1, 1]} : vector<2x128xf32> to vector<2x32xf32>
    %438 = math.tanh %437 : vector<2x32xf32>
    %439 = vector.extract_strided_slice %424 {offsets = [0, 96], sizes = [2, 32], strides = [1, 1]} : vector<2x128xf32> to vector<2x32xf32>
    %440 = arith.negf %439 : vector<2x32xf32>
    %441 = math.exp %440 : vector<2x32xf32>
    %cst_102 = arith.constant 1.000000e+00 : f32
    %442 = vector.broadcast %cst_102 : f32 to vector<2x32xf32>
    %443 = arith.addf %442, %441 : vector<2x32xf32>
    %444 = arith.divf %442, %443 : vector<2x32xf32>
    %445 = arith.mulf %436, %418 : vector<2x32xf32>
    %446 = arith.mulf %430, %438 : vector<2x32xf32>
    %447 = arith.addf %445, %446 : vector<2x32xf32>
    %448 = math.tanh %447 : vector<2x32xf32>
    %449 = arith.mulf %444, %448 : vector<2x32xf32>
    %c14 = arith.constant 14 : index
    %c0_103 = arith.constant 0 : index
    %450 = vector.load %arg16[%c14, %c0_103] : memref<16x32xf32, #tpu.memory_space<vmem>>, vector<2x32xf32>
    tpu.vector_store %arg16[%c14, %c0_103], %449 {strides = array<i32>} : memref<16x32xf32, #tpu.memory_space<vmem>>, vector<2x32xf32>,
    %c0_104 = arith.constant 0 : index
    %c0_105 = arith.constant 0 : index
    %451 = vector.load %arg16[%c0_104, %c0_105] : memref<16x32xf32, #tpu.memory_space<vmem>>, vector<16x32xf32>
    %c0_106 = arith.constant 0 : index
    %c0_107 = arith.constant 0 : index
    %452 = vector.load %arg8[%c0_106, %c0_107] : memref<32x128xf32, #tpu.memory_space<vmem>>, vector<32x128xf32>
    %cst_108 = arith.constant dense<0.000000e+00> : vector<16x128xf32>
    %453 = tpu.matmul %451, %452, %cst_108 {dimension_numbers = #tpu.dot_dimension_numbers<[1], [0], [0], [1], [0, 0, 1, 1], [], []>} : vector<16x32xf32>, vector<32x128xf32>, vector<16x128xf32> -> vector<16x128xf32>
    %c0_109 = arith.constant 0 : index
    %c0_110 = arith.constant 0 : index
    %454 = vector.load %arg10[%c0_109, %c0_110] : memref<1x128xf32, #tpu.memory_space<vmem>>, vector<1x128xf32>
    %455 = vector.broadcast %454 : vector<1x128xf32> to vector<16x128xf32>
    %456 = arith.addf %453, %455 : vector<16x128xf32>
    %c0_111 = arith.constant 0 : index
    %c0_112 = arith.constant 0 : index
    %457 = vector.load %arg9[%c0_111, %c0_112] : memref<32x128xf32, #tpu.memory_space<vmem>>, vector<32x128xf32>
    %c1_113 = arith.constant 1 : index
    %c0_114 = arith.constant 0 : index
    %c0_115 = arith.constant 0 : index
    %458 = vector.load %arg13[%c1_113, %c0_114, %c0_115] : memref<2x2x32xf32, #tpu.memory_space<vmem>>, vector<1x2x32xf32>
    %459 = vector.shape_cast %458 : vector<1x2x32xf32> to vector<2x32xf32>
    %c1_116 = arith.constant 1 : index
    %c0_117 = arith.constant 0 : index
    %c0_118 = arith.constant 0 : index
    %460 = vector.load %arg14[%c1_116, %c0_117, %c0_118] : memref<2x2x32xf32, #tpu.memory_space<vmem>>, vector<1x2x32xf32>
    %461 = vector.shape_cast %460 : vector<1x2x32xf32> to vector<2x32xf32>
    %462 = vector.extract_strided_slice %456 {offsets = [0, 0], sizes = [2, 128], strides = [1, 1]} : vector<16x128xf32> to vector<2x128xf32>
    %cst_119 = arith.constant dense<0.000000e+00> : vector<2x128xf32>
    %463 = tpu.matmul %459, %457, %cst_119 {dimension_numbers = #tpu.dot_dimension_numbers<[1], [0], [0], [1], [0, 0, 1, 1], [], []>} : vector<2x32xf32>, vector<32x128xf32>, vector<2x128xf32> -> vector<2x128xf32>
    %464 = arith.addf %462, %463 : vector<2x128xf32>
    %465 = vector.extract_strided_slice %464 {offsets = [0, 0], sizes = [2, 32], strides = [1, 1]} : vector<2x128xf32> to vector<2x32xf32>
    %466 = arith.negf %465 : vector<2x32xf32>
    %467 = math.exp %466 : vector<2x32xf32>
    %cst_120 = arith.constant 1.000000e+00 : f32
    %468 = vector.broadcast %cst_120 : f32 to vector<2x32xf32>
    %469 = arith.addf %468, %467 : vector<2x32xf32>
    %470 = arith.divf %468, %469 : vector<2x32xf32>
    %471 = vector.extract_strided_slice %464 {offsets = [0, 32], sizes = [2, 32], strides = [1, 1]} : vector<2x128xf32> to vector<2x32xf32>
    %472 = arith.negf %471 : vector<2x32xf32>
    %473 = math.exp %472 : vector<2x32xf32>
    %cst_121 = arith.constant 1.000000e+00 : f32
    %474 = vector.broadcast %cst_121 : f32 to vector<2x32xf32>
    %475 = arith.addf %474, %473 : vector<2x32xf32>
    %476 = arith.divf %474, %475 : vector<2x32xf32>
    %477 = vector.extract_strided_slice %464 {offsets = [0, 64], sizes = [2, 32], strides = [1, 1]} : vector<2x128xf32> to vector<2x32xf32>
    %478 = math.tanh %477 : vector<2x32xf32>
    %479 = vector.extract_strided_slice %464 {offsets = [0, 96], sizes = [2, 32], strides = [1, 1]} : vector<2x128xf32> to vector<2x32xf32>
    %480 = arith.negf %479 : vector<2x32xf32>
    %481 = math.exp %480 : vector<2x32xf32>
    %cst_122 = arith.constant 1.000000e+00 : f32
    %482 = vector.broadcast %cst_122 : f32 to vector<2x32xf32>
    %483 = arith.addf %482, %481 : vector<2x32xf32>
    %484 = arith.divf %482, %483 : vector<2x32xf32>
    %485 = arith.mulf %476, %461 : vector<2x32xf32>
    %486 = arith.mulf %470, %478 : vector<2x32xf32>
    %487 = arith.addf %485, %486 : vector<2x32xf32>
    %488 = math.tanh %487 : vector<2x32xf32>
    %489 = arith.mulf %484, %488 : vector<2x32xf32>
    %c0_123 = arith.constant 0 : index
    %c0_124 = arith.constant 0 : index
    %490 = vector.load %arg16[%c0_123, %c0_124] : memref<16x32xf32, #tpu.memory_space<vmem>>, vector<2x32xf32>
    tpu.vector_store %arg16[%c0_123, %c0_124], %489 {strides = array<i32>} : memref<16x32xf32, #tpu.memory_space<vmem>>, vector<2x32xf32>,
    %491 = vector.extract_strided_slice %456 {offsets = [2, 0], sizes = [2, 128], strides = [1, 1]} : vector<16x128xf32> to vector<2x128xf32>
    %cst_125 = arith.constant dense<0.000000e+00> : vector<2x128xf32>
    %492 = tpu.matmul %489, %457, %cst_125 {dimension_numbers = #tpu.dot_dimension_numbers<[1], [0], [0], [1], [0, 0, 1, 1], [], []>} : vector<2x32xf32>, vector<32x128xf32>, vector<2x128xf32> -> vector<2x128xf32>
    %493 = arith.addf %491, %492 : vector<2x128xf32>
    %494 = vector.extract_strided_slice %493 {offsets = [0, 0], sizes = [2, 32], strides = [1, 1]} : vector<2x128xf32> to vector<2x32xf32>
    %495 = arith.negf %494 : vector<2x32xf32>
    %496 = math.exp %495 : vector<2x32xf32>
    %cst_126 = arith.constant 1.000000e+00 : f32
    %497 = vector.broadcast %cst_126 : f32 to vector<2x32xf32>
    %498 = arith.addf %497, %496 : vector<2x32xf32>
    %499 = arith.divf %497, %498 : vector<2x32xf32>
    %500 = vector.extract_strided_slice %493 {offsets = [0, 32], sizes = [2, 32], strides = [1, 1]} : vector<2x128xf32> to vector<2x32xf32>
    %501 = arith.negf %500 : vector<2x32xf32>
    %502 = math.exp %501 : vector<2x32xf32>
    %cst_127 = arith.constant 1.000000e+00 : f32
    %503 = vector.broadcast %cst_127 : f32 to vector<2x32xf32>
    %504 = arith.addf %503, %502 : vector<2x32xf32>
    %505 = arith.divf %503, %504 : vector<2x32xf32>
    %506 = vector.extract_strided_slice %493 {offsets = [0, 64], sizes = [2, 32], strides = [1, 1]} : vector<2x128xf32> to vector<2x32xf32>
    %507 = math.tanh %506 : vector<2x32xf32>
    %508 = vector.extract_strided_slice %493 {offsets = [0, 96], sizes = [2, 32], strides = [1, 1]} : vector<2x128xf32> to vector<2x32xf32>
    %509 = arith.negf %508 : vector<2x32xf32>
    %510 = math.exp %509 : vector<2x32xf32>
    %cst_128 = arith.constant 1.000000e+00 : f32
    %511 = vector.broadcast %cst_128 : f32 to vector<2x32xf32>
    %512 = arith.addf %511, %510 : vector<2x32xf32>
    %513 = arith.divf %511, %512 : vector<2x32xf32>
    %514 = arith.mulf %505, %487 : vector<2x32xf32>
    %515 = arith.mulf %499, %507 : vector<2x32xf32>
    %516 = arith.addf %514, %515 : vector<2x32xf32>
    %517 = math.tanh %516 : vector<2x32xf32>
    %518 = arith.mulf %513, %517 : vector<2x32xf32>
    %c2_129 = arith.constant 2 : index
    %c0_130 = arith.constant 0 : index
    %519 = vector.load %arg16[%c2_129, %c0_130] : memref<16x32xf32, #tpu.memory_space<vmem>>, vector<2x32xf32>
    tpu.vector_store %arg16[%c2_129, %c0_130], %518 {strides = array<i32>} : memref<16x32xf32, #tpu.memory_space<vmem>>, vector<2x32xf32>,
    %520 = vector.extract_strided_slice %456 {offsets = [4, 0], sizes = [2, 128], strides = [1, 1]} : vector<16x128xf32> to vector<2x128xf32>
    %cst_131 = arith.constant dense<0.000000e+00> : vector<2x128xf32>
    %521 = tpu.matmul %518, %457, %cst_131 {dimension_numbers = #tpu.dot_dimension_numbers<[1], [0], [0], [1], [0, 0, 1, 1], [], []>} : vector<2x32xf32>, vector<32x128xf32>, vector<2x128xf32> -> vector<2x128xf32>
    %522 = arith.addf %520, %521 : vector<2x128xf32>
    %523 = vector.extract_strided_slice %522 {offsets = [0, 0], sizes = [2, 32], strides = [1, 1]} : vector<2x128xf32> to vector<2x32xf32>
    %524 = arith.negf %523 : vector<2x32xf32>
    %525 = math.exp %524 : vector<2x32xf32>
    %cst_132 = arith.constant 1.000000e+00 : f32
    %526 = vector.broadcast %cst_132 : f32 to vector<2x32xf32>
    %527 = arith.addf %526, %525 : vector<2x32xf32>
    %528 = arith.divf %526, %527 : vector<2x32xf32>
    %529 = vector.extract_strided_slice %522 {offsets = [0, 32], sizes = [2, 32], strides = [1, 1]} : vector<2x128xf32> to vector<2x32xf32>
    %530 = arith.negf %529 : vector<2x32xf32>
    %531 = math.exp %530 : vector<2x32xf32>
    %cst_133 = arith.constant 1.000000e+00 : f32
    %532 = vector.broadcast %cst_133 : f32 to vector<2x32xf32>
    %533 = arith.addf %532, %531 : vector<2x32xf32>
    %534 = arith.divf %532, %533 : vector<2x32xf32>
    %535 = vector.extract_strided_slice %522 {offsets = [0, 64], sizes = [2, 32], strides = [1, 1]} : vector<2x128xf32> to vector<2x32xf32>
    %536 = math.tanh %535 : vector<2x32xf32>
    %537 = vector.extract_strided_slice %522 {offsets = [0, 96], sizes = [2, 32], strides = [1, 1]} : vector<2x128xf32> to vector<2x32xf32>
    %538 = arith.negf %537 : vector<2x32xf32>
    %539 = math.exp %538 : vector<2x32xf32>
    %cst_134 = arith.constant 1.000000e+00 : f32
    %540 = vector.broadcast %cst_134 : f32 to vector<2x32xf32>
    %541 = arith.addf %540, %539 : vector<2x32xf32>
    %542 = arith.divf %540, %541 : vector<2x32xf32>
    %543 = arith.mulf %534, %516 : vector<2x32xf32>
    %544 = arith.mulf %528, %536 : vector<2x32xf32>
    %545 = arith.addf %543, %544 : vector<2x32xf32>
    %546 = math.tanh %545 : vector<2x32xf32>
    %547 = arith.mulf %542, %546 : vector<2x32xf32>
    %c4_135 = arith.constant 4 : index
    %c0_136 = arith.constant 0 : index
    %548 = vector.load %arg16[%c4_135, %c0_136] : memref<16x32xf32, #tpu.memory_space<vmem>>, vector<2x32xf32>
    tpu.vector_store %arg16[%c4_135, %c0_136], %547 {strides = array<i32>} : memref<16x32xf32, #tpu.memory_space<vmem>>, vector<2x32xf32>,
    %549 = vector.extract_strided_slice %456 {offsets = [6, 0], sizes = [2, 128], strides = [1, 1]} : vector<16x128xf32> to vector<2x128xf32>
    %cst_137 = arith.constant dense<0.000000e+00> : vector<2x128xf32>
    %550 = tpu.matmul %547, %457, %cst_137 {dimension_numbers = #tpu.dot_dimension_numbers<[1], [0], [0], [1], [0, 0, 1, 1], [], []>} : vector<2x32xf32>, vector<32x128xf32>, vector<2x128xf32> -> vector<2x128xf32>
    %551 = arith.addf %549, %550 : vector<2x128xf32>
    %552 = vector.extract_strided_slice %551 {offsets = [0, 0], sizes = [2, 32], strides = [1, 1]} : vector<2x128xf32> to vector<2x32xf32>
    %553 = arith.negf %552 : vector<2x32xf32>
    %554 = math.exp %553 : vector<2x32xf32>
    %cst_138 = arith.constant 1.000000e+00 : f32
    %555 = vector.broadcast %cst_138 : f32 to vector<2x32xf32>
    %556 = arith.addf %555, %554 : vector<2x32xf32>
    %557 = arith.divf %555, %556 : vector<2x32xf32>
    %558 = vector.extract_strided_slice %551 {offsets = [0, 32], sizes = [2, 32], strides = [1, 1]} : vector<2x128xf32> to vector<2x32xf32>
    %559 = arith.negf %558 : vector<2x32xf32>
    %560 = math.exp %559 : vector<2x32xf32>
    %cst_139 = arith.constant 1.000000e+00 : f32
    %561 = vector.broadcast %cst_139 : f32 to vector<2x32xf32>
    %562 = arith.addf %561, %560 : vector<2x32xf32>
    %563 = arith.divf %561, %562 : vector<2x32xf32>
    %564 = vector.extract_strided_slice %551 {offsets = [0, 64], sizes = [2, 32], strides = [1, 1]} : vector<2x128xf32> to vector<2x32xf32>
    %565 = math.tanh %564 : vector<2x32xf32>
    %566 = vector.extract_strided_slice %551 {offsets = [0, 96], sizes = [2, 32], strides = [1, 1]} : vector<2x128xf32> to vector<2x32xf32>
    %567 = arith.negf %566 : vector<2x32xf32>
    %568 = math.exp %567 : vector<2x32xf32>
    %cst_140 = arith.constant 1.000000e+00 : f32
    %569 = vector.broadcast %cst_140 : f32 to vector<2x32xf32>
    %570 = arith.addf %569, %568 : vector<2x32xf32>
    %571 = arith.divf %569, %570 : vector<2x32xf32>
    %572 = arith.mulf %563, %545 : vector<2x32xf32>
    %573 = arith.mulf %557, %565 : vector<2x32xf32>
    %574 = arith.addf %572, %573 : vector<2x32xf32>
    %575 = math.tanh %574 : vector<2x32xf32>
    %576 = arith.mulf %571, %575 : vector<2x32xf32>
    %c6_141 = arith.constant 6 : index
    %c0_142 = arith.constant 0 : index
    %577 = vector.load %arg16[%c6_141, %c0_142] : memref<16x32xf32, #tpu.memory_space<vmem>>, vector<2x32xf32>
    tpu.vector_store %arg16[%c6_141, %c0_142], %576 {strides = array<i32>} : memref<16x32xf32, #tpu.memory_space<vmem>>, vector<2x32xf32>,
    %578 = vector.extract_strided_slice %456 {offsets = [8, 0], sizes = [2, 128], strides = [1, 1]} : vector<16x128xf32> to vector<2x128xf32>
    %cst_143 = arith.constant dense<0.000000e+00> : vector<2x128xf32>
    %579 = tpu.matmul %576, %457, %cst_143 {dimension_numbers = #tpu.dot_dimension_numbers<[1], [0], [0], [1], [0, 0, 1, 1], [], []>} : vector<2x32xf32>, vector<32x128xf32>, vector<2x128xf32> -> vector<2x128xf32>
    %580 = arith.addf %578, %579 : vector<2x128xf32>
    %581 = vector.extract_strided_slice %580 {offsets = [0, 0], sizes = [2, 32], strides = [1, 1]} : vector<2x128xf32> to vector<2x32xf32>
    %582 = arith.negf %581 : vector<2x32xf32>
    %583 = math.exp %582 : vector<2x32xf32>
    %cst_144 = arith.constant 1.000000e+00 : f32
    %584 = vector.broadcast %cst_144 : f32 to vector<2x32xf32>
    %585 = arith.addf %584, %583 : vector<2x32xf32>
    %586 = arith.divf %584, %585 : vector<2x32xf32>
    %587 = vector.extract_strided_slice %580 {offsets = [0, 32], sizes = [2, 32], strides = [1, 1]} : vector<2x128xf32> to vector<2x32xf32>
    %588 = arith.negf %587 : vector<2x32xf32>
    %589 = math.exp %588 : vector<2x32xf32>
    %cst_145 = arith.constant 1.000000e+00 : f32
    %590 = vector.broadcast %cst_145 : f32 to vector<2x32xf32>
    %591 = arith.addf %590, %589 : vector<2x32xf32>
    %592 = arith.divf %590, %591 : vector<2x32xf32>
    %593 = vector.extract_strided_slice %580 {offsets = [0, 64], sizes = [2, 32], strides = [1, 1]} : vector<2x128xf32> to vector<2x32xf32>
    %594 = math.tanh %593 : vector<2x32xf32>
    %595 = vector.extract_strided_slice %580 {offsets = [0, 96], sizes = [2, 32], strides = [1, 1]} : vector<2x128xf32> to vector<2x32xf32>
    %596 = arith.negf %595 : vector<2x32xf32>
    %597 = math.exp %596 : vector<2x32xf32>
    %cst_146 = arith.constant 1.000000e+00 : f32
    %598 = vector.broadcast %cst_146 : f32 to vector<2x32xf32>
    %599 = arith.addf %598, %597 : vector<2x32xf32>
    %600 = arith.divf %598, %599 : vector<2x32xf32>
    %601 = arith.mulf %592, %574 : vector<2x32xf32>
    %602 = arith.mulf %586, %594 : vector<2x32xf32>
    %603 = arith.addf %601, %602 : vector<2x32xf32>
    %604 = math.tanh %603 : vector<2x32xf32>
    %605 = arith.mulf %600, %604 : vector<2x32xf32>
    %c8_147 = arith.constant 8 : index
    %c0_148 = arith.constant 0 : index
    %606 = vector.load %arg16[%c8_147, %c0_148] : memref<16x32xf32, #tpu.memory_space<vmem>>, vector<2x32xf32>
    tpu.vector_store %arg16[%c8_147, %c0_148], %605 {strides = array<i32>} : memref<16x32xf32, #tpu.memory_space<vmem>>, vector<2x32xf32>,
    %607 = vector.extract_strided_slice %456 {offsets = [10, 0], sizes = [2, 128], strides = [1, 1]} : vector<16x128xf32> to vector<2x128xf32>
    %cst_149 = arith.constant dense<0.000000e+00> : vector<2x128xf32>
    %608 = tpu.matmul %605, %457, %cst_149 {dimension_numbers = #tpu.dot_dimension_numbers<[1], [0], [0], [1], [0, 0, 1, 1], [], []>} : vector<2x32xf32>, vector<32x128xf32>, vector<2x128xf32> -> vector<2x128xf32>
    %609 = arith.addf %607, %608 : vector<2x128xf32>
    %610 = vector.extract_strided_slice %609 {offsets = [0, 0], sizes = [2, 32], strides = [1, 1]} : vector<2x128xf32> to vector<2x32xf32>
    %611 = arith.negf %610 : vector<2x32xf32>
    %612 = math.exp %611 : vector<2x32xf32>
    %cst_150 = arith.constant 1.000000e+00 : f32
    %613 = vector.broadcast %cst_150 : f32 to vector<2x32xf32>
    %614 = arith.addf %613, %612 : vector<2x32xf32>
    %615 = arith.divf %613, %614 : vector<2x32xf32>
    %616 = vector.extract_strided_slice %609 {offsets = [0, 32], sizes = [2, 32], strides = [1, 1]} : vector<2x128xf32> to vector<2x32xf32>
    %617 = arith.negf %616 : vector<2x32xf32>
    %618 = math.exp %617 : vector<2x32xf32>
    %cst_151 = arith.constant 1.000000e+00 : f32
    %619 = vector.broadcast %cst_151 : f32 to vector<2x32xf32>
    %620 = arith.addf %619, %618 : vector<2x32xf32>
    %621 = arith.divf %619, %620 : vector<2x32xf32>
    %622 = vector.extract_strided_slice %609 {offsets = [0, 64], sizes = [2, 32], strides = [1, 1]} : vector<2x128xf32> to vector<2x32xf32>
    %623 = math.tanh %622 : vector<2x32xf32>
    %624 = vector.extract_strided_slice %609 {offsets = [0, 96], sizes = [2, 32], strides = [1, 1]} : vector<2x128xf32> to vector<2x32xf32>
    %625 = arith.negf %624 : vector<2x32xf32>
    %626 = math.exp %625 : vector<2x32xf32>
    %cst_152 = arith.constant 1.000000e+00 : f32
    %627 = vector.broadcast %cst_152 : f32 to vector<2x32xf32>
    %628 = arith.addf %627, %626 : vector<2x32xf32>
    %629 = arith.divf %627, %628 : vector<2x32xf32>
    %630 = arith.mulf %621, %603 : vector<2x32xf32>
    %631 = arith.mulf %615, %623 : vector<2x32xf32>
    %632 = arith.addf %630, %631 : vector<2x32xf32>
    %633 = math.tanh %632 : vector<2x32xf32>
    %634 = arith.mulf %629, %633 : vector<2x32xf32>
    %c10_153 = arith.constant 10 : index
    %c0_154 = arith.constant 0 : index
    %635 = vector.load %arg16[%c10_153, %c0_154] : memref<16x32xf32, #tpu.memory_space<vmem>>, vector<2x32xf32>
    tpu.vector_store %arg16[%c10_153, %c0_154], %634 {strides = array<i32>} : memref<16x32xf32, #tpu.memory_space<vmem>>, vector<2x32xf32>,
    %636 = vector.extract_strided_slice %456 {offsets = [12, 0], sizes = [2, 128], strides = [1, 1]} : vector<16x128xf32> to vector<2x128xf32>
    %cst_155 = arith.constant dense<0.000000e+00> : vector<2x128xf32>
    %637 = tpu.matmul %634, %457, %cst_155 {dimension_numbers = #tpu.dot_dimension_numbers<[1], [0], [0], [1], [0, 0, 1, 1], [], []>} : vector<2x32xf32>, vector<32x128xf32>, vector<2x128xf32> -> vector<2x128xf32>
    %638 = arith.addf %636, %637 : vector<2x128xf32>
    %639 = vector.extract_strided_slice %638 {offsets = [0, 0], sizes = [2, 32], strides = [1, 1]} : vector<2x128xf32> to vector<2x32xf32>
    %640 = arith.negf %639 : vector<2x32xf32>
    %641 = math.exp %640 : vector<2x32xf32>
    %cst_156 = arith.constant 1.000000e+00 : f32
    %642 = vector.broadcast %cst_156 : f32 to vector<2x32xf32>
    %643 = arith.addf %642, %641 : vector<2x32xf32>
    %644 = arith.divf %642, %643 : vector<2x32xf32>
    %645 = vector.extract_strided_slice %638 {offsets = [0, 32], sizes = [2, 32], strides = [1, 1]} : vector<2x128xf32> to vector<2x32xf32>
    %646 = arith.negf %645 : vector<2x32xf32>
    %647 = math.exp %646 : vector<2x32xf32>
    %cst_157 = arith.constant 1.000000e+00 : f32
    %648 = vector.broadcast %cst_157 : f32 to vector<2x32xf32>
    %649 = arith.addf %648, %647 : vector<2x32xf32>
    %650 = arith.divf %648, %649 : vector<2x32xf32>
    %651 = vector.extract_strided_slice %638 {offsets = [0, 64], sizes = [2, 32], strides = [1, 1]} : vector<2x128xf32> to vector<2x32xf32>
    %652 = math.tanh %651 : vector<2x32xf32>
    %653 = vector.extract_strided_slice %638 {offsets = [0, 96], sizes = [2, 32], strides = [1, 1]} : vector<2x128xf32> to vector<2x32xf32>
    %654 = arith.negf %653 : vector<2x32xf32>
    %655 = math.exp %654 : vector<2x32xf32>
    %cst_158 = arith.constant 1.000000e+00 : f32
    %656 = vector.broadcast %cst_158 : f32 to vector<2x32xf32>
    %657 = arith.addf %656, %655 : vector<2x32xf32>
    %658 = arith.divf %656, %657 : vector<2x32xf32>
    %659 = arith.mulf %650, %632 : vector<2x32xf32>
    %660 = arith.mulf %644, %652 : vector<2x32xf32>
    %661 = arith.addf %659, %660 : vector<2x32xf32>
    %662 = math.tanh %661 : vector<2x32xf32>
    %663 = arith.mulf %658, %662 : vector<2x32xf32>
    %c12_159 = arith.constant 12 : index
    %c0_160 = arith.constant 0 : index
    %664 = vector.load %arg16[%c12_159, %c0_160] : memref<16x32xf32, #tpu.memory_space<vmem>>, vector<2x32xf32>
    tpu.vector_store %arg16[%c12_159, %c0_160], %663 {strides = array<i32>} : memref<16x32xf32, #tpu.memory_space<vmem>>, vector<2x32xf32>,
    %665 = vector.extract_strided_slice %456 {offsets = [14, 0], sizes = [2, 128], strides = [1, 1]} : vector<16x128xf32> to vector<2x128xf32>
    %cst_161 = arith.constant dense<0.000000e+00> : vector<2x128xf32>
    %666 = tpu.matmul %663, %457, %cst_161 {dimension_numbers = #tpu.dot_dimension_numbers<[1], [0], [0], [1], [0, 0, 1, 1], [], []>} : vector<2x32xf32>, vector<32x128xf32>, vector<2x128xf32> -> vector<2x128xf32>
    %667 = arith.addf %665, %666 : vector<2x128xf32>
    %668 = vector.extract_strided_slice %667 {offsets = [0, 0], sizes = [2, 32], strides = [1, 1]} : vector<2x128xf32> to vector<2x32xf32>
    %669 = arith.negf %668 : vector<2x32xf32>
    %670 = math.exp %669 : vector<2x32xf32>
    %cst_162 = arith.constant 1.000000e+00 : f32
    %671 = vector.broadcast %cst_162 : f32 to vector<2x32xf32>
    %672 = arith.addf %671, %670 : vector<2x32xf32>
    %673 = arith.divf %671, %672 : vector<2x32xf32>
    %674 = vector.extract_strided_slice %667 {offsets = [0, 32], sizes = [2, 32], strides = [1, 1]} : vector<2x128xf32> to vector<2x32xf32>
    %675 = arith.negf %674 : vector<2x32xf32>
    %676 = math.exp %675 : vector<2x32xf32>
    %cst_163 = arith.constant 1.000000e+00 : f32
    %677 = vector.broadcast %cst_163 : f32 to vector<2x32xf32>
    %678 = arith.addf %677, %676 : vector<2x32xf32>
    %679 = arith.divf %677, %678 : vector<2x32xf32>
    %680 = vector.extract_strided_slice %667 {offsets = [0, 64], sizes = [2, 32], strides = [1, 1]} : vector<2x128xf32> to vector<2x32xf32>
    %681 = math.tanh %680 : vector<2x32xf32>
    %682 = vector.extract_strided_slice %667 {offsets = [0, 96], sizes = [2, 32], strides = [1, 1]} : vector<2x128xf32> to vector<2x32xf32>
    %683 = arith.negf %682 : vector<2x32xf32>
    %684 = math.exp %683 : vector<2x32xf32>
    %cst_164 = arith.constant 1.000000e+00 : f32
    %685 = vector.broadcast %cst_164 : f32 to vector<2x32xf32>
    %686 = arith.addf %685, %684 : vector<2x32xf32>
    %687 = arith.divf %685, %686 : vector<2x32xf32>
    %688 = arith.mulf %679, %661 : vector<2x32xf32>
    %689 = arith.mulf %673, %681 : vector<2x32xf32>
    %690 = arith.addf %688, %689 : vector<2x32xf32>
    %691 = math.tanh %690 : vector<2x32xf32>
    %692 = arith.mulf %687, %691 : vector<2x32xf32>
    %c14_165 = arith.constant 14 : index
    %c0_166 = arith.constant 0 : index
    %693 = vector.load %arg16[%c14_165, %c0_166] : memref<16x32xf32, #tpu.memory_space<vmem>>, vector<2x32xf32>
    tpu.vector_store %arg16[%c14_165, %c0_166], %692 {strides = array<i32>} : memref<16x32xf32, #tpu.memory_space<vmem>>, vector<2x32xf32>,
    %c0_167 = arith.constant 0 : index
    %c0_168 = arith.constant 0 : index
    %694 = vector.load %arg16[%c0_167, %c0_168] : memref<16x32xf32, #tpu.memory_space<vmem>>, vector<16x32xf32>
    %c0_169 = arith.constant 0 : index
    %c0_170 = arith.constant 0 : index
    %695 = vector.load %arg11[%c0_169, %c0_170] : memref<32x3xf32, #tpu.memory_space<vmem>>, vector<32x3xf32>
    %cst_171 = arith.constant dense<0.000000e+00> : vector<16x3xf32>
    %696 = tpu.matmul %694, %695, %cst_171 {dimension_numbers = #tpu.dot_dimension_numbers<[1], [0], [0], [1], [0, 0, 1, 1], [], []>} : vector<16x32xf32>, vector<32x3xf32>, vector<16x3xf32> -> vector<16x3xf32>
    %c0_172 = arith.constant 0 : index
    %c0_173 = arith.constant 0 : index
    %697 = vector.load %arg12[%c0_172, %c0_173] : memref<1x3xf32, #tpu.memory_space<vmem>>, vector<1x3xf32>
    %698 = vector.broadcast %697 : vector<1x3xf32> to vector<16x3xf32>
    %699 = arith.addf %696, %698 : vector<16x3xf32>
    %700 = vector.extract_strided_slice %699 {offsets = [0, 0], sizes = [2, 3], strides = [1, 1]} : vector<16x3xf32> to vector<2x3xf32>
    %cst_174 = arith.constant dense<0xFF800000> : vector<3xf32>
    %701 = vector.multi_reduction <maximumf>, %700, %cst_174 [0] : vector<2x3xf32> to vector<3xf32>
    %702 = vector.shape_cast %701 : vector<3xf32> to vector<1x3xf32>
    %703 = vector.broadcast %702 : vector<1x3xf32> to vector<2x3xf32>
    %704 = arith.subf %700, %703 : vector<2x3xf32>
    %705 = math.exp %704 : vector<2x3xf32>
    %cst_175 = arith.constant dense<0.000000e+00> : vector<3xf32>
    %706 = vector.multi_reduction <add>, %705, %cst_175 [0] : vector<2x3xf32> to vector<3xf32>
    %707 = vector.shape_cast %706 : vector<3xf32> to vector<1x3xf32>
    %708 = vector.broadcast %707 : vector<1x3xf32> to vector<2x3xf32>
    %709 = arith.divf %705, %708 : vector<2x3xf32>
    %c0_176 = arith.constant 0 : index
    %c0_177 = arith.constant 0 : index
    %c0_178 = arith.constant 0 : index
    %710 = vector.load %arg15[%c0_176, %c0_177, %c0_178] : memref<8x2x3xf32, #tpu.memory_space<vmem>>, vector<1x2x3xf32>
    %711 = vector.shape_cast %710 : vector<1x2x3xf32> to vector<2x3xf32>
    %712 = vector.shape_cast %709 : vector<2x3xf32> to vector<1x2x3xf32>
    tpu.vector_store %arg15[%c0_176, %c0_177, %c0_178], %712 {strides = array<i32>} : memref<8x2x3xf32, #tpu.memory_space<vmem>>, vector<1x2x3xf32>,
    %713 = vector.extract_strided_slice %699 {offsets = [2, 0], sizes = [2, 3], strides = [1, 1]} : vector<16x3xf32> to vector<2x3xf32>
    %cst_179 = arith.constant dense<0xFF800000> : vector<3xf32>
    %714 = vector.multi_reduction <maximumf>, %713, %cst_179 [0] : vector<2x3xf32> to vector<3xf32>
    %715 = vector.shape_cast %714 : vector<3xf32> to vector<1x3xf32>
    %716 = vector.broadcast %715 : vector<1x3xf32> to vector<2x3xf32>
    %717 = arith.subf %713, %716 : vector<2x3xf32>
    %718 = math.exp %717 : vector<2x3xf32>
    %cst_180 = arith.constant dense<0.000000e+00> : vector<3xf32>
    %719 = vector.multi_reduction <add>, %718, %cst_180 [0] : vector<2x3xf32> to vector<3xf32>
    %720 = vector.shape_cast %719 : vector<3xf32> to vector<1x3xf32>
    %721 = vector.broadcast %720 : vector<1x3xf32> to vector<2x3xf32>
    %722 = arith.divf %718, %721 : vector<2x3xf32>
    %c1_181 = arith.constant 1 : index
    %c0_182 = arith.constant 0 : index
    %c0_183 = arith.constant 0 : index
    %723 = vector.load %arg15[%c1_181, %c0_182, %c0_183] : memref<8x2x3xf32, #tpu.memory_space<vmem>>, vector<1x2x3xf32>
    %724 = vector.shape_cast %723 : vector<1x2x3xf32> to vector<2x3xf32>
    %725 = vector.shape_cast %722 : vector<2x3xf32> to vector<1x2x3xf32>
    tpu.vector_store %arg15[%c1_181, %c0_182, %c0_183], %725 {strides = array<i32>} : memref<8x2x3xf32, #tpu.memory_space<vmem>>, vector<1x2x3xf32>,
    %726 = vector.extract_strided_slice %699 {offsets = [4, 0], sizes = [2, 3], strides = [1, 1]} : vector<16x3xf32> to vector<2x3xf32>
    %cst_184 = arith.constant dense<0xFF800000> : vector<3xf32>
    %727 = vector.multi_reduction <maximumf>, %726, %cst_184 [0] : vector<2x3xf32> to vector<3xf32>
    %728 = vector.shape_cast %727 : vector<3xf32> to vector<1x3xf32>
    %729 = vector.broadcast %728 : vector<1x3xf32> to vector<2x3xf32>
    %730 = arith.subf %726, %729 : vector<2x3xf32>
    %731 = math.exp %730 : vector<2x3xf32>
    %cst_185 = arith.constant dense<0.000000e+00> : vector<3xf32>
    %732 = vector.multi_reduction <add>, %731, %cst_185 [0] : vector<2x3xf32> to vector<3xf32>
    %733 = vector.shape_cast %732 : vector<3xf32> to vector<1x3xf32>
    %734 = vector.broadcast %733 : vector<1x3xf32> to vector<2x3xf32>
    %735 = arith.divf %731, %734 : vector<2x3xf32>
    %c2_186 = arith.constant 2 : index
    %c0_187 = arith.constant 0 : index
    %c0_188 = arith.constant 0 : index
    %736 = vector.load %arg15[%c2_186, %c0_187, %c0_188] : memref<8x2x3xf32, #tpu.memory_space<vmem>>, vector<1x2x3xf32>
    %737 = vector.shape_cast %736 : vector<1x2x3xf32> to vector<2x3xf32>
    %738 = vector.shape_cast %735 : vector<2x3xf32> to vector<1x2x3xf32>
    tpu.vector_store %arg15[%c2_186, %c0_187, %c0_188], %738 {strides = array<i32>} : memref<8x2x3xf32, #tpu.memory_space<vmem>>, vector<1x2x3xf32>,
    %739 = vector.extract_strided_slice %699 {offsets = [6, 0], sizes = [2, 3], strides = [1, 1]} : vector<16x3xf32> to vector<2x3xf32>
    %cst_189 = arith.constant dense<0xFF800000> : vector<3xf32>
    %740 = vector.multi_reduction <maximumf>, %739, %cst_189 [0] : vector<2x3xf32> to vector<3xf32>
    %741 = vector.shape_cast %740 : vector<3xf32> to vector<1x3xf32>
    %742 = vector.broadcast %741 : vector<1x3xf32> to vector<2x3xf32>
    %743 = arith.subf %739, %742 : vector<2x3xf32>
    %744 = math.exp %743 : vector<2x3xf32>
    %cst_190 = arith.constant dense<0.000000e+00> : vector<3xf32>
    %745 = vector.multi_reduction <add>, %744, %cst_190 [0] : vector<2x3xf32> to vector<3xf32>
    %746 = vector.shape_cast %745 : vector<3xf32> to vector<1x3xf32>
    %747 = vector.broadcast %746 : vector<1x3xf32> to vector<2x3xf32>
    %748 = arith.divf %744, %747 : vector<2x3xf32>
    %c3_191 = arith.constant 3 : index
    %c0_192 = arith.constant 0 : index
    %c0_193 = arith.constant 0 : index
    %749 = vector.load %arg15[%c3_191, %c0_192, %c0_193] : memref<8x2x3xf32, #tpu.memory_space<vmem>>, vector<1x2x3xf32>
    %750 = vector.shape_cast %749 : vector<1x2x3xf32> to vector<2x3xf32>
    %751 = vector.shape_cast %748 : vector<2x3xf32> to vector<1x2x3xf32>
    tpu.vector_store %arg15[%c3_191, %c0_192, %c0_193], %751 {strides = array<i32>} : memref<8x2x3xf32, #tpu.memory_space<vmem>>, vector<1x2x3xf32>,
    %752 = vector.extract_strided_slice %699 {offsets = [8, 0], sizes = [2, 3], strides = [1, 1]} : vector<16x3xf32> to vector<2x3xf32>
    %cst_194 = arith.constant dense<0xFF800000> : vector<3xf32>
    %753 = vector.multi_reduction <maximumf>, %752, %cst_194 [0] : vector<2x3xf32> to vector<3xf32>
    %754 = vector.shape_cast %753 : vector<3xf32> to vector<1x3xf32>
    %755 = vector.broadcast %754 : vector<1x3xf32> to vector<2x3xf32>
    %756 = arith.subf %752, %755 : vector<2x3xf32>
    %757 = math.exp %756 : vector<2x3xf32>
    %cst_195 = arith.constant dense<0.000000e+00> : vector<3xf32>
    %758 = vector.multi_reduction <add>, %757, %cst_195 [0] : vector<2x3xf32> to vector<3xf32>
    %759 = vector.shape_cast %758 : vector<3xf32> to vector<1x3xf32>
    %760 = vector.broadcast %759 : vector<1x3xf32> to vector<2x3xf32>
    %761 = arith.divf %757, %760 : vector<2x3xf32>
    %c4_196 = arith.constant 4 : index
    %c0_197 = arith.constant 0 : index
    %c0_198 = arith.constant 0 : index
    %762 = vector.load %arg15[%c4_196, %c0_197, %c0_198] : memref<8x2x3xf32, #tpu.memory_space<vmem>>, vector<1x2x3xf32>
    %763 = vector.shape_cast %762 : vector<1x2x3xf32> to vector<2x3xf32>
    %764 = vector.shape_cast %761 : vector<2x3xf32> to vector<1x2x3xf32>
    tpu.vector_store %arg15[%c4_196, %c0_197, %c0_198], %764 {strides = array<i32>} : memref<8x2x3xf32, #tpu.memory_space<vmem>>, vector<1x2x3xf32>,
    %765 = vector.extract_strided_slice %699 {offsets = [10, 0], sizes = [2, 3], strides = [1, 1]} : vector<16x3xf32> to vector<2x3xf32>
    %cst_199 = arith.constant dense<0xFF800000> : vector<3xf32>
    %766 = vector.multi_reduction <maximumf>, %765, %cst_199 [0] : vector<2x3xf32> to vector<3xf32>
    %767 = vector.shape_cast %766 : vector<3xf32> to vector<1x3xf32>
    %768 = vector.broadcast %767 : vector<1x3xf32> to vector<2x3xf32>
    %769 = arith.subf %765, %768 : vector<2x3xf32>
    %770 = math.exp %769 : vector<2x3xf32>
    %cst_200 = arith.constant dense<0.000000e+00> : vector<3xf32>
    %771 = vector.multi_reduction <add>, %770, %cst_200 [0] : vector<2x3xf32> to vector<3xf32>
    %772 = vector.shape_cast %771 : vector<3xf32> to vector<1x3xf32>
    %773 = vector.broadcast %772 : vector<1x3xf32> to vector<2x3xf32>
    %774 = arith.divf %770, %773 : vector<2x3xf32>
    %c5_201 = arith.constant 5 : index
    %c0_202 = arith.constant 0 : index
    %c0_203 = arith.constant 0 : index
    %775 = vector.load %arg15[%c5_201, %c0_202, %c0_203] : memref<8x2x3xf32, #tpu.memory_space<vmem>>, vector<1x2x3xf32>
    %776 = vector.shape_cast %775 : vector<1x2x3xf32> to vector<2x3xf32>
    %777 = vector.shape_cast %774 : vector<2x3xf32> to vector<1x2x3xf32>
    tpu.vector_store %arg15[%c5_201, %c0_202, %c0_203], %777 {strides = array<i32>} : memref<8x2x3xf32, #tpu.memory_space<vmem>>, vector<1x2x3xf32>,
    %778 = vector.extract_strided_slice %699 {offsets = [12, 0], sizes = [2, 3], strides = [1, 1]} : vector<16x3xf32> to vector<2x3xf32>
    %cst_204 = arith.constant dense<0xFF800000> : vector<3xf32>
    %779 = vector.multi_reduction <maximumf>, %778, %cst_204 [0] : vector<2x3xf32> to vector<3xf32>
    %780 = vector.shape_cast %779 : vector<3xf32> to vector<1x3xf32>
    %781 = vector.broadcast %780 : vector<1x3xf32> to vector<2x3xf32>
    %782 = arith.subf %778, %781 : vector<2x3xf32>
    %783 = math.exp %782 : vector<2x3xf32>
    %cst_205 = arith.constant dense<0.000000e+00> : vector<3xf32>
    %784 = vector.multi_reduction <add>, %783, %cst_205 [0] : vector<2x3xf32> to vector<3xf32>
    %785 = vector.shape_cast %784 : vector<3xf32> to vector<1x3xf32>
    %786 = vector.broadcast %785 : vector<1x3xf32> to vector<2x3xf32>
    %787 = arith.divf %783, %786 : vector<2x3xf32>
    %c6_206 = arith.constant 6 : index
    %c0_207 = arith.constant 0 : index
    %c0_208 = arith.constant 0 : index
    %788 = vector.load %arg15[%c6_206, %c0_207, %c0_208] : memref<8x2x3xf32, #tpu.memory_space<vmem>>, vector<1x2x3xf32>
    %789 = vector.shape_cast %788 : vector<1x2x3xf32> to vector<2x3xf32>
    %790 = vector.shape_cast %787 : vector<2x3xf32> to vector<1x2x3xf32>
    tpu.vector_store %arg15[%c6_206, %c0_207, %c0_208], %790 {strides = array<i32>} : memref<8x2x3xf32, #tpu.memory_space<vmem>>, vector<1x2x3xf32>,
    %791 = vector.extract_strided_slice %699 {offsets = [14, 0], sizes = [2, 3], strides = [1, 1]} : vector<16x3xf32> to vector<2x3xf32>
    %cst_209 = arith.constant dense<0xFF800000> : vector<3xf32>
    %792 = vector.multi_reduction <maximumf>, %791, %cst_209 [0] : vector<2x3xf32> to vector<3xf32>
    %793 = vector.shape_cast %792 : vector<3xf32> to vector<1x3xf32>
    %794 = vector.broadcast %793 : vector<1x3xf32> to vector<2x3xf32>
    %795 = arith.subf %791, %794 : vector<2x3xf32>
    %796 = math.exp %795 : vector<2x3xf32>
    %cst_210 = arith.constant dense<0.000000e+00> : vector<3xf32>
    %797 = vector.multi_reduction <add>, %796, %cst_210 [0] : vector<2x3xf32> to vector<3xf32>
    %798 = vector.shape_cast %797 : vector<3xf32> to vector<1x3xf32>
    %799 = vector.broadcast %798 : vector<1x3xf32> to vector<2x3xf32>
    %800 = arith.divf %796, %799 : vector<2x3xf32>
    %c7_211 = arith.constant 7 : index
    %c0_212 = arith.constant 0 : index
    %c0_213 = arith.constant 0 : index
    %801 = vector.load %arg15[%c7_211, %c0_212, %c0_213] : memref<8x2x3xf32, #tpu.memory_space<vmem>>, vector<1x2x3xf32>
    %802 = vector.shape_cast %801 : vector<1x2x3xf32> to vector<2x3xf32>
    %803 = vector.shape_cast %800 : vector<2x3xf32> to vector<1x2x3xf32>
    tpu.vector_store %arg15[%c7_211, %c0_212, %c0_213], %803 {strides = array<i32>} : memref<8x2x3xf32, #tpu.memory_space<vmem>>, vector<1x2x3xf32>,
    return
  }
}

</mosaic_0001>

<llo_original>
// kernel: tpu_custom_call.1
$region0: #{tpu_custom_call.1}
  #allocation0 [shape = 'u32[]', space=smem, size = 0x4, offset = 0x4, fixed_abs, tag = 'smem constant byte address 0x4 - core index']
  #allocation1 [shape = 'u32[144,128]{1,0:T(1,128)}', space=vmem, size = 0x12000, scoped, tag = 'internal scratch']
  #allocation2 [shape = 'f32[16,32]{1,0:T(8,128)}', space=vmem, size = 0x2000, scoped, tag = 'scratch operand']
  %s0 = inlined_call_operand.hbm [shape: f32[16,16], index: 0, kind: input, shape index: {}]
  %s1 = inlined_call_operand.hbm [shape: f32[16,16], index: 1, kind: input, shape index: {}]
  %s2 = inlined_call_operand.vmem [shape: f32[2,10], index: 2, kind: input, shape index: {}]
  %s3 = inlined_call_operand.vmem [shape: f32[2], index: 3, kind: input, shape index: {}]
  %s4 = inlined_call_operand.hbm [shape: f32[11,128], index: 4, kind: input, shape index: {}]
  %s5 = inlined_call_operand.hbm [shape: f32[11,128], index: 5, kind: input, shape index: {}]
  %s6 = inlined_call_operand.vmem [shape: f32[32,128], index: 6, kind: input, shape index: {}]
  %s7 = inlined_call_operand.vmem [shape: f32[1,128], index: 7, kind: input, shape index: {}]
  %s8 = inlined_call_operand.hbm [shape: f32[32,128], index: 8, kind: input, shape index: {}]
  %s9 = inlined_call_operand.hbm [shape: f32[32,128], index: 9, kind: input, shape index: {}]
  %s10 = inlined_call_operand.vmem [shape: f32[1,128], index: 10, kind: input, shape index: {}]
  %s11 = inlined_call_operand.vmem [shape: f32[32,3], index: 11, kind: input, shape index: {}]
  %s12 = inlined_call_operand.vmem [shape: f32[1,3], index: 12, kind: input, shape index: {}]
  %s13 = inlined_call_operand.vmem [shape: f32[2,2,32], index: 13, kind: input, shape index: {}]
  %s14 = inlined_call_operand.vmem [shape: f32[2,2,32], index: 14, kind: input, shape index: {}]
  %s15 = inlined_call_operand.vmem [shape: f32[8,2,3], index: 15, kind: output, shape index: {}]
  %s16 = sld [smem:[#allocation0]]
  $region102: #{tpu_custom_call.1} parent=0
    _
  %s18 = ssub.s32 1, %s16
  %s19 = scalar_select 0, %s18, %s16
  $region1: #{tpu_custom_call.1} parent=0
    #allocation3 [shape = 'u8[8192]{0}', space=vmem, size = 0x2000, scoped, tag = 'input window, operand 0, single buffered']
    #allocation4 [shape = 's32[1]{0}', space=sflag, size = 0x4, scoped, tag = 'scoped memory for tpu_custom_call.1']
    #allocation5 [shape = 's32[1]{0}', space=sflag, size = 0x4, scoped, tag = 'scoped memory for tpu_custom_call.1']
    #allocation6 [shape = 'u8[8192]{0}', space=vmem, size = 0x2000, scoped, tag = 'input window, operand 1, single buffered']
    #allocation7 [shape = 's32[1]{0}', space=sflag, size = 0x4, scoped, tag = 'scoped memory for tpu_custom_call.1']
    #allocation8 [shape = 'u8[1024]{0}', space=smem, size = 0x400, scoped, tag = 'input window, operand 2, single buffered']
    #allocation9 [shape = 'u8[512]{0}', space=smem, size = 0x200, scoped, tag = 'input window, operand 3, single buffered']
    #allocation10 [shape = 's32[1]{0}', space=sflag, size = 0x4, scoped, tag = 'scoped memory for tpu_custom_call.1']
    #allocation11 [shape = 'u8[8192]{0}', space=vmem, size = 0x2000, scoped, tag = 'input window, operand 4, single buffered']
    #allocation12 [shape = 'u8[8192]{0}', space=vmem, size = 0x2000, scoped, tag = 'input window, operand 5, single buffered']
    #allocation13 [shape = 's32[1]{0}', space=sflag, size = 0x4, scoped, tag = 'scoped memory for tpu_custom_call.1']
    #allocation14 [shape = 'u8[16384]{0}', space=vmem, size = 0x4000, scoped, tag = 'input window, operand 8, single buffered']
    #allocation15 [shape = 'u8[16384]{0}', space=vmem, size = 0x4000, scoped, tag = 'input window, operand 9, single buffered']
    #allocation16 [shape = 's32[1]{0}', space=sflag, size = 0x4, scoped, tag = 'scoped memory for tpu_custom_call.1']
    %20 = vsyncpa [#allocation4], 0
    %21 = vsyncpa [#allocation7], 0
    %22 = vsyncpa [#allocation5], 0
    %23 = vsyncpa [#allocation10], 0
    %24 = vsyncpa [#allocation13], 0
    %25 = vsyncpa [#allocation16], 0
    // Predicated region
    $region2: #{tpu_custom_call.1} parent=1 // pred_check
      _
    $region3: #{tpu_custom_call.1} parent=1 // pred_check_branch
      %27 = sbr.rel (0) target = $region5
    $region4: #{tpu_custom_call.1} parent=1 // pred_region
      %s29 = ssub.s32 256, 256
      %30 = vsyncadd [#allocation4], %s29
      %s31 = sshll.u32 [#allocation3], 4
      %s32 = int_to_ptr.vmem [resolvable:$true] %s31
      %37 = dma.hbm_to_vmem [thread:$0]  %s0, 256, %s32, [#allocation4], 128, 128, 8
    $region5: #{tpu_custom_call.1} parent=1 // pred_fallthru
      _
    // Predicated region
    $region6: #{tpu_custom_call.1} parent=1 // pred_check
      _
    $region7: #{tpu_custom_call.1} parent=1 // pred_check_branch
      %39 = sbr.rel (0) target = $region9
    $region8: #{tpu_custom_call.1} parent=1 // pred_region
      %s41 = ssub.s32 256, 256
      %42 = vsyncadd [#allocation7], %s41
      %s43 = sshll.u32 [#allocation6], 4
      %s44 = int_to_ptr.vmem [resolvable:$true] %s43
      %49 = dma.hbm_to_vmem [thread:$0]  %s1, 256, %s44, [#allocation7], 128, 128, 8
    $region9: #{tpu_custom_call.1} parent=1 // pred_fallthru
      _
    // Predicated region
    $region10: #{tpu_custom_call.1} parent=1 // pred_check
      _
    $region11: #{tpu_custom_call.1} parent=1 // pred_check_branch
      %51 = sbr.rel (0) target = $region13
    $region12: #{tpu_custom_call.1} parent=1 // pred_region
      %s53 = ssub.s32 32, 32
      %54 = vsyncadd [#allocation5], %s53
      %s56 = sshll.u32 %s2, 4
      %s57 = int_to_ptr.vmem [resolvable:$true] %s56
      %59 = dma.vmem_to_smem %s57, 32, [#allocation8], [#allocation5]
    $region13: #{tpu_custom_call.1} parent=1 // pred_fallthru
      _
    // Predicated region
    $region14: #{tpu_custom_call.1} parent=1 // pred_check
      _
    $region15: #{tpu_custom_call.1} parent=1 // pred_check_branch
      %61 = sbr.rel (0) target = $region17
    $region16: #{tpu_custom_call.1} parent=1 // pred_region
      %s63 = ssub.s32 16, 16
      %64 = vsyncadd [#allocation10], %s63
      %s66 = sshll.u32 %s3, 4
      %s67 = int_to_ptr.vmem [resolvable:$true] %s66
      %69 = dma.vmem_to_smem %s67, 16, [#allocation9], [#allocation10]
    $region17: #{tpu_custom_call.1} parent=1 // pred_fallthru
      _
    // Predicated region
    $region18: #{tpu_custom_call.1} parent=1 // pred_check
      _
    $region19: #{tpu_custom_call.1} parent=1 // pred_check_branch
      %71 = sbr.rel (0) target = $region21
    $region20: #{tpu_custom_call.1} parent=1 // pred_region
      %s73 = ssub.s32 256, 256
      %74 = vsyncadd [#allocation7], %s73
      %s75 = sshll.u32 [#allocation11], 4
      %s76 = int_to_ptr.vmem [resolvable:$true] %s75
      %81 = dma.hbm_to_vmem [thread:$0]  %s4, 256, %s76, [#allocation7], 128, 128, 8
    $region21: #{tpu_custom_call.1} parent=1 // pred_fallthru
      _
    // Predicated region
    $region22: #{tpu_custom_call.1} parent=1 // pred_check
      _
    $region23: #{tpu_custom_call.1} parent=1 // pred_check_branch
      %83 = sbr.rel (0) target = $region25
    $region24: #{tpu_custom_call.1} parent=1 // pred_region
      %s85 = ssub.s32 256, 256
      %86 = vsyncadd [#allocation13], %s85
      %s87 = sshll.u32 [#allocation12], 4
      %s88 = int_to_ptr.vmem [resolvable:$true] %s87
      %93 = dma.hbm_to_vmem [thread:$0]  %s5, 256, %s88, [#allocation13], 128, 128, 8
    $region25: #{tpu_custom_call.1} parent=1 // pred_fallthru
      _
    // Predicated region
    $region26: #{tpu_custom_call.1} parent=1 // pred_check
      _
    $region27: #{tpu_custom_call.1} parent=1 // pred_check_branch
      %95 = sbr.rel (0) target = $region29
    $region28: #{tpu_custom_call.1} parent=1 // pred_region
      _
    $region29: #{tpu_custom_call.1} parent=1 // pred_fallthru
      _
    // Predicated region
    $region30: #{tpu_custom_call.1} parent=1 // pred_check
      _
    $region31: #{tpu_custom_call.1} parent=1 // pred_check_branch
      %97 = sbr.rel (0) target = $region33
    $region32: #{tpu_custom_call.1} parent=1 // pred_region
      _
    $region33: #{tpu_custom_call.1} parent=1 // pred_fallthru
      _
    // Predicated region
    $region34: #{tpu_custom_call.1} parent=1 // pred_check
      _
    $region35: #{tpu_custom_call.1} parent=1 // pred_check_branch
      %99 = sbr.rel (0) target = $region37
    $region36: #{tpu_custom_call.1} parent=1 // pred_region
      %s101 = ssub.s32 512, 512
      %102 = vsyncadd [#allocation13], %s101
      %s103 = sshll.u32 [#allocation14], 4
      %s104 = int_to_ptr.vmem [resolvable:$true] %s103
      %109 = dma.hbm_to_vmem [thread:$0]  %s8, 512, %s104, [#allocation13], 128, 128, 8
    $region37: #{tpu_custom_call.1} parent=1 // pred_fallthru
      _
    // Predicated region
    $region38: #{tpu_custom_call.1} parent=1 // pred_check
      _
    $region39: #{tpu_custom_call.1} parent=1 // pred_check_branch
      %111 = sbr.rel (0) target = $region41
    $region40: #{tpu_custom_call.1} parent=1 // pred_region
      %s113 = ssub.s32 512, 512
      %114 = vsyncadd [#allocation16], %s113
      %s115 = sshll.u32 [#allocation15], 4
      %s116 = int_to_ptr.vmem [resolvable:$true] %s115
      %121 = dma.hbm_to_vmem [thread:$0]  %s9, 512, %s116, [#allocation16], 128, 128, 8
    $region41: #{tpu_custom_call.1} parent=1 // pred_fallthru
      _
    // Predicated region
    $region42: #{tpu_custom_call.1} parent=1 // pred_check
      _
    $region43: #{tpu_custom_call.1} parent=1 // pred_check_branch
      %123 = sbr.rel (0) target = $region45
    $region44: #{tpu_custom_call.1} parent=1 // pred_region
      _
    $region45: #{tpu_custom_call.1} parent=1 // pred_fallthru
      _
    // Predicated region
    $region46: #{tpu_custom_call.1} parent=1 // pred_check
      _
    $region47: #{tpu_custom_call.1} parent=1 // pred_check_branch
      %125 = sbr.rel (0) target = $region49
    $region48: #{tpu_custom_call.1} parent=1 // pred_region
      _
    $region49: #{tpu_custom_call.1} parent=1 // pred_fallthru
      _
    // Predicated region
    $region50: #{tpu_custom_call.1} parent=1 // pred_check
      _
    $region51: #{tpu_custom_call.1} parent=1 // pred_check_branch
      %127 = sbr.rel (0) target = $region53
    $region52: #{tpu_custom_call.1} parent=1 // pred_region
      _
    $region53: #{tpu_custom_call.1} parent=1 // pred_fallthru
      _
    // Predicated region
    $region54: #{tpu_custom_call.1} parent=1 // pred_check
      _
    $region55: #{tpu_custom_call.1} parent=1 // pred_check_branch
      %129 = sbr.rel (0) target = $region57
    $region56: #{tpu_custom_call.1} parent=1 // pred_region
      _
    $region57: #{tpu_custom_call.1} parent=1 // pred_fallthru
      _
    // Predicated region
    $region58: #{tpu_custom_call.1} parent=1 // pred_check
      _
    $region59: #{tpu_custom_call.1} parent=1 // pred_check_branch
      %131 = sbr.rel (0) target = $region61
    $region60: #{tpu_custom_call.1} parent=1 // pred_region
      _
    $region61: #{tpu_custom_call.1} parent=1 // pred_fallthru
      _
    // Predicated region
    $region62: #{tpu_custom_call.1} parent=1 // pred_check
      _
    $region63: #{tpu_custom_call.1} parent=1 // pred_check_branch
      %133 = sbr.rel (0) target = $region65
    $region64: #{tpu_custom_call.1} parent=1 // pred_region
      %134 = dma.done [#allocation4], 256
    $region65: #{tpu_custom_call.1} parent=1 // pred_fallthru
      _
    // Predicated region
    $region66: #{tpu_custom_call.1} parent=1 // pred_check
      _
    $region67: #{tpu_custom_call.1} parent=1 // pred_check_branch
      %136 = sbr.rel (0) target = $region69
    $region68: #{tpu_custom_call.1} parent=1 // pred_region
      %137 = dma.done [#allocation7], 256
    $region69: #{tpu_custom_call.1} parent=1 // pred_fallthru
      _
    // Predicated region
    $region70: #{tpu_custom_call.1} parent=1 // pred_check
      _
    $region71: #{tpu_custom_call.1} parent=1 // pred_check_branch
      %139 = sbr.rel (0) target = $region73
    $region72: #{tpu_custom_call.1} parent=1 // pred_region
      %140 = dma.done [#allocation5], 32
    $region73: #{tpu_custom_call.1} parent=1 // pred_fallthru
      _
    // Predicated region
    $region74: #{tpu_custom_call.1} parent=1 // pred_check
      _
    $region75: #{tpu_custom_call.1} parent=1 // pred_check_branch
      %142 = sbr.rel (0) target = $region77
    $region76: #{tpu_custom_call.1} parent=1 // pred_region
      %143 = dma.done [#allocation10], 16
    $region77: #{tpu_custom_call.1} parent=1 // pred_fallthru
      _
    // Predicated region
    $region78: #{tpu_custom_call.1} parent=1 // pred_check
      _
    $region79: #{tpu_custom_call.1} parent=1 // pred_check_branch
      %145 = sbr.rel (0) target = $region81
    $region80: #{tpu_custom_call.1} parent=1 // pred_region
      %146 = dma.done [#allocation7], 256
    $region81: #{tpu_custom_call.1} parent=1 // pred_fallthru
      _
    // Predicated region
    $region82: #{tpu_custom_call.1} parent=1 // pred_check
      _
    $region83: #{tpu_custom_call.1} parent=1 // pred_check_branch
      %148 = sbr.rel (0) target = $region85
    $region84: #{tpu_custom_call.1} parent=1 // pred_region
      %149 = dma.done [#allocation13], 256
    $region85: #{tpu_custom_call.1} parent=1 // pred_fallthru
      _
    // Predicated region
    $region86: #{tpu_custom_call.1} parent=1 // pred_check
      _
    $region87: #{tpu_custom_call.1} parent=1 // pred_check_branch
      %151 = sbr.rel (0) target = $region89
    $region88: #{tpu_custom_call.1} parent=1 // pred_region
      %152 = dma.done [#allocation13], 512
    $region89: #{tpu_custom_call.1} parent=1 // pred_fallthru
      _
    // Predicated region
    $region90: #{tpu_custom_call.1} parent=1 // pred_check
      _
    $region91: #{tpu_custom_call.1} parent=1 // pred_check_branch
      %154 = sbr.rel (0) target = $region93
    $region92: #{tpu_custom_call.1} parent=1 // pred_region
      %155 = dma.done [#allocation16], 512
    $region93: #{tpu_custom_call.1} parent=1 // pred_fallthru
      _
    %156 = sfence
    %v157 = vld [vmem:[#allocation3] sm:$0xff]
    %v158 = vld [vmem:[#allocation3 + $0x8] sm:$0xff]
    %v159 = vld [vmem:[#allocation6] sm:$0xff]
    %v160 = vld [vmem:[#allocation6 + $0x8] sm:$0xff]
    %s161 = sld [smem:[#allocation8]]
    %v162 = vstv %s161
    %v163 = vmul.f32 %v162, %v157
    %v164 = vmul.f32 %v162, %v158
    %v165 = vadd.f32 %v163, 0.0
    %v166 = vadd.f32 %v164, 0.0
    %v167 = vmul.f32 %v162, %v159
    %v168 = vmul.f32 %v162, %v160
    %v169 = vadd.f32 %v167, 0.0
    %v170 = vadd.f32 %v168, 0.0
    %s171 = sld [smem:[#allocation8 + $0x1]]
    %v172 = vstv %s171
    %v173 = vmul.f32 %v172, %v159
    %v174 = vmul.f32 %v172, %v160
    %v175 = vadd.f32 %v165, %v173
    %v176 = vadd.f32 %v166, %v174
    %v177 = vmul.f32 %v172, %v157
    %v178 = vmul.f32 %v172, %v158
    %181 = vrot.lane.b32.xlu0 %v177, 127
    %v182 = vpop.permute.xlu0 %181
    %183 = vrot.lane.b32.xlu0 %v178, 127
    %v184 = vpop.permute.xlu0 %183
    %v187 = vadd.f32 %v169, %v182
    %v188 = vadd.f32 %v170, %v184
    %s189 = sld [smem:[#allocation8 + $0x2]]
    %v190 = vstv %s189
    %v191 = vmul.f32 %v190, %v157
    %v192 = vmul.f32 %v190, %v158
    %195 = vrot.lane.b32.xlu0 %v191, 127
    %v196 = vpop.permute.xlu0 %195
    %197 = vrot.lane.b32.xlu0 %v192, 127
    %v198 = vpop.permute.xlu0 %197
    %v201 = vadd.f32 %v175, %v196
    %v202 = vadd.f32 %v176, %v198
    %v203 = vmul.f32 %v190, %v159
    %v204 = vmul.f32 %v190, %v160
    %207 = vrot.lane.b32.xlu0 %v203, 127
    %v208 = vpop.permute.xlu0 %207
    %209 = vrot.lane.b32.xlu0 %v204, 127
    %v210 = vpop.permute.xlu0 %209
    %v213 = vadd.f32 %v187, %v208
    %v214 = vadd.f32 %v188, %v210
    %s215 = sld [smem:[#allocation8 + $0x3]]
    %v216 = vstv %s215
    %v217 = vmul.f32 %v216, %v159
    %v218 = vmul.f32 %v216, %v160
    %221 = vrot.lane.b32.xlu0 %v217, 127
    %v222 = vpop.permute.xlu0 %221
    %223 = vrot.lane.b32.xlu0 %v218, 127
    %v224 = vpop.permute.xlu0 %223
    %v227 = vadd.f32 %v201, %v222
    %v228 = vadd.f32 %v202, %v224
    %v229 = vmul.f32 %v216, %v157
    %v230 = vmul.f32 %v216, %v158
    %233 = vrot.lane.b32.xlu0 %v229, 126
    %v234 = vpop.permute.xlu0 %233
    %235 = vrot.lane.b32.xlu0 %v230, 126
    %v236 = vpop.permute.xlu0 %235
    %v239 = vadd.f32 %v213, %v234
    %v240 = vadd.f32 %v214, %v236
    %s241 = sld [smem:[#allocation8 + $0x4]]
    %v242 = vstv %s241
    %v243 = vmul.f32 %v242, %v157
    %v244 = vmul.f32 %v242, %v158
    %247 = vrot.lane.b32.xlu0 %v243, 126
    %v248 = vpop.permute.xlu0 %247
    %249 = vrot.lane.b32.xlu0 %v244, 126
    %v250 = vpop.permute.xlu0 %249
    %v253 = vadd.f32 %v227, %v248
    %v254 = vadd.f32 %v228, %v250
    %v255 = vmul.f32 %v242, %v159
    %v256 = vmul.f32 %v242, %v160
    %259 = vrot.lane.b32.xlu0 %v255, 126
    %v260 = vpop.permute.xlu0 %259
    %261 = vrot.lane.b32.xlu0 %v256, 126
    %v262 = vpop.permute.xlu0 %261
    %v265 = vadd.f32 %v239, %v260
    %v266 = vadd.f32 %v240, %v262
    %s267 = sld [smem:[#allocation8 + $0x5]]
    %v268 = vstv %s267
    %v269 = vmul.f32 %v268, %v159
    %v270 = vmul.f32 %v268, %v160
    %273 = vrot.lane.b32.xlu0 %v269, 126
    %v274 = vpop.permute.xlu0 %273
    %275 = vrot.lane.b32.xlu0 %v270, 126
    %v276 = vpop.permute.xlu0 %275
    %v279 = vadd.f32 %v253, %v274
    %v280 = vadd.f32 %v254, %v276
    %v281 = vmul.f32 %v268, %v157
    %v282 = vmul.f32 %v268, %v158
    %285 = vrot.lane.b32.xlu0 %v281, 125
    %v286 = vpop.permute.xlu0 %285
    %287 = vrot.lane.b32.xlu0 %v282, 125
    %v288 = vpop.permute.xlu0 %287
    %v291 = vadd.f32 %v265, %v286
    %v292 = vadd.f32 %v266, %v288
    %s293 = sld [smem:[#allocation8 + $0x6]]
    %v294 = vstv %s293
    %v295 = vmul.f32 %v294, %v157
    %v296 = vmul.f32 %v294, %v158
    %299 = vrot.lane.b32.xlu0 %v295, 125
    %v300 = vpop.permute.xlu0 %299
    %301 = vrot.lane.b32.xlu0 %v296, 125
    %v302 = vpop.permute.xlu0 %301
    %v305 = vadd.f32 %v279, %v300
    %v306 = vadd.f32 %v280, %v302
    %v307 = vmul.f32 %v294, %v159
    %v308 = vmul.f32 %v294, %v160
    %311 = vrot.lane.b32.xlu0 %v307, 125
    %v312 = vpop.permute.xlu0 %311
    %313 = vrot.lane.b32.xlu0 %v308, 125
    %v314 = vpop.permute.xlu0 %313
    %v317 = vadd.f32 %v291, %v312
    %v318 = vadd.f32 %v292, %v314
    %s319 = sld [smem:[#allocation8 + $0x7]]
    %v320 = vstv %s319
    %v321 = vmul.f32 %v320, %v159
    %v322 = vmul.f32 %v320, %v160
    %325 = vrot.lane.b32.xlu0 %v321, 125
    %v326 = vpop.permute.xlu0 %325
    %327 = vrot.lane.b32.xlu0 %v322, 125
    %v328 = vpop.permute.xlu0 %327
    %v331 = vadd.f32 %v305, %v326
    %v332 = vadd.f32 %v306, %v328
    %v333 = vmul.f32 %v320, %v157
    %v334 = vmul.f32 %v320, %v158
    %337 = vrot.lane.b32.xlu0 %v333, 124
    %v338 = vpop.permute.xlu0 %337
    %339 = vrot.lane.b32.xlu0 %v334, 124
    %v340 = vpop.permute.xlu0 %339
    %v343 = vadd.f32 %v317, %v338
    %v344 = vadd.f32 %v318, %v340
    %s345 = sld [smem:[#allocation8 + $0x8]]
    %v346 = vstv %s345
    %v347 = vmul.f32 %v346, %v157
    %v348 = vmul.f32 %v346, %v158
    %351 = vrot.lane.b32.xlu0 %v347, 124
    %v352 = vpop.permute.xlu0 %351
    %353 = vrot.lane.b32.xlu0 %v348, 124
    %v354 = vpop.permute.xlu0 %353
    %v357 = vadd.f32 %v331, %v352
    %v358 = vadd.f32 %v332, %v354
    %v359 = vmul.f32 %v346, %v159
    %v360 = vmul.f32 %v346, %v160
    %363 = vrot.lane.b32.xlu0 %v359, 124
    %v364 = vpop.permute.xlu0 %363
    %365 = vrot.lane.b32.xlu0 %v360, 124
    %v366 = vpop.permute.xlu0 %365
    %v369 = vadd.f32 %v343, %v364
    %v370 = vadd.f32 %v344, %v366
    %s371 = sld [smem:[#allocation8 + $0x9]]
    %v372 = vstv %s371
    %v373 = vmul.f32 %v372, %v159
    %v374 = vmul.f32 %v372, %v160
    %377 = vrot.lane.b32.xlu0 %v373, 124
    %v378 = vpop.permute.xlu0 %377
    %379 = vrot.lane.b32.xlu0 %v374, 124
    %v380 = vpop.permute.xlu0 %379
    %v383 = vadd.f32 %v357, %v378
    %v384 = vadd.f32 %v358, %v380
    %v385 = vmul.f32 %v372, %v157
    %v386 = vmul.f32 %v372, %v158
    %389 = vrot.lane.b32.xlu0 %v385, 123
    %v390 = vpop.permute.xlu0 %389
    %391 = vrot.lane.b32.xlu0 %v386, 123
    %v392 = vpop.permute.xlu0 %391
    %v395 = vadd.f32 %v369, %v390
    %v396 = vadd.f32 %v370, %v392
    %s397 = sld [smem:[#allocation9]]
    %v398 = vstv %s397
    %v399 = vadd.f32 %v383, %v398
    %v400 = vadd.f32 %v384, %v398
    %v401 = vmax.f32 %v399, 0.0
    %v402 = vmax.f32 %v400, 0.0
    %v403 = vadd.f32 %v395, %v398
    %v404 = vadd.f32 %v396, %v398
    %v405 = vmax.f32 %v403, 0.0
    %v406 = vmax.f32 %v404, 0.0
    %v407 = vmax.f32 %v401, %v405
    %v408 = vmax.f32 %v402, %v406
    %s409 = sld [smem:[#allocation8 + $0x80]]
    %v410 = vstv %s409
    %v411 = vmul.f32 %v410, %v157
    %v412 = vmul.f32 %v410, %v158
    %v413 = vadd.f32 %v411, 0.0
    %v414 = vadd.f32 %v412, 0.0
    %v415 = vmul.f32 %v410, %v159
    %v416 = vmul.f32 %v410, %v160
    %v417 = vadd.f32 %v415, 0.0
    %v418 = vadd.f32 %v416, 0.0
    %s419 = sld [smem:[#allocation8 + $0x81]]
    %v420 = vstv %s419
    %v421 = vmul.f32 %v420, %v159
    %v422 = vmul.f32 %v420, %v160
    %v423 = vadd.f32 %v413, %v421
    %v424 = vadd.f32 %v414, %v422
    %v425 = vmul.f32 %v420, %v157
    %v426 = vmul.f32 %v420, %v158
    %429 = vrot.lane.b32.xlu0 %v425, 127
    %v430 = vpop.permute.xlu0 %429
    %431 = vrot.lane.b32.xlu0 %v426, 127
    %v432 = vpop.permute.xlu0 %431
    %v435 = vadd.f32 %v417, %v430
    %v436 = vadd.f32 %v418, %v432
    %s437 = sld [smem:[#allocation8 + $0x82]]
    %v438 = vstv %s437
    %v439 = vmul.f32 %v438, %v157
    %v440 = vmul.f32 %v438, %v158
    %443 = vrot.lane.b32.xlu0 %v439, 127
    %v444 = vpop.permute.xlu0 %443
    %445 = vrot.lane.b32.xlu0 %v440, 127
    %v446 = vpop.permute.xlu0 %445
    %v449 = vadd.f32 %v423, %v444
    %v450 = vadd.f32 %v424, %v446
    %v451 = vmul.f32 %v438, %v159
    %v452 = vmul.f32 %v438, %v160
    %455 = vrot.lane.b32.xlu0 %v451, 127
    %v456 = vpop.permute.xlu0 %455
    %457 = vrot.lane.b32.xlu0 %v452, 127
    %v458 = vpop.permute.xlu0 %457
    %v461 = vadd.f32 %v435, %v456
    %v462 = vadd.f32 %v436, %v458
    %s463 = sld [smem:[#allocation8 + $0x83]]
    %v464 = vstv %s463
    %v465 = vmul.f32 %v464, %v159
    %v466 = vmul.f32 %v464, %v160
    %469 = vrot.lane.b32.xlu0 %v465, 127
    %v470 = vpop.permute.xlu0 %469
    %471 = vrot.lane.b32.xlu0 %v466, 127
    %v472 = vpop.permute.xlu0 %471
    %v475 = vadd.f32 %v449, %v470
    %v476 = vadd.f32 %v450, %v472
    %v477 = vmul.f32 %v464, %v157
    %v478 = vmul.f32 %v464, %v158
    %481 = vrot.lane.b32.xlu0 %v477, 126
    %v482 = vpop.permute.xlu0 %481
    %483 = vrot.lane.b32.xlu0 %v478, 126
    %v484 = vpop.permute.xlu0 %483
    %v487 = vadd.f32 %v461, %v482
    %v488 = vadd.f32 %v462, %v484
    %s489 = sld [smem:[#allocation8 + $0x84]]
    %v490 = vstv %s489
    %v491 = vmul.f32 %v490, %v157
    %v492 = vmul.f32 %v490, %v158
    %495 = vrot.lane.b32.xlu0 %v491, 126
    %v496 = vpop.permute.xlu0 %495
    %497 = vrot.lane.b32.xlu0 %v492, 126
    %v498 = vpop.permute.xlu0 %497
    %v501 = vadd.f32 %v475, %v496
    %v502 = vadd.f32 %v476, %v498
    %v503 = vmul.f32 %v490, %v159
    %v504 = vmul.f32 %v490, %v160
    %507 = vrot.lane.b32.xlu0 %v503, 126
    %v508 = vpop.permute.xlu0 %507
    %509 = vrot.lane.b32.xlu0 %v504, 126
    %v510 = vpop.permute.xlu0 %509
    %v513 = vadd.f32 %v487, %v508
    %v514 = vadd.f32 %v488, %v510
    %s515 = sld [smem:[#allocation8 + $0x85]]
    %v516 = vstv %s515
    %v517 = vmul.f32 %v516, %v159
    %v518 = vmul.f32 %v516, %v160
    %521 = vrot.lane.b32.xlu0 %v517, 126
    %v522 = vpop.permute.xlu0 %521
    %523 = vrot.lane.b32.xlu0 %v518, 126
    %v524 = vpop.permute.xlu0 %523
    %v527 = vadd.f32 %v501, %v522
    %v528 = vadd.f32 %v502, %v524
    %v529 = vmul.f32 %v516, %v157
    %v530 = vmul.f32 %v516, %v158
    %533 = vrot.lane.b32.xlu0 %v529, 125
    %v534 = vpop.permute.xlu0 %533
    %535 = vrot.lane.b32.xlu0 %v530, 125
    %v536 = vpop.permute.xlu0 %535
    %v539 = vadd.f32 %v513, %v534
    %v540 = vadd.f32 %v514, %v536
    %s541 = sld [smem:[#allocation8 + $0x86]]
    %v542 = vstv %s541
    %v543 = vmul.f32 %v542, %v157
    %v544 = vmul.f32 %v542, %v158
    %547 = vrot.lane.b32.xlu0 %v543, 125
    %v548 = vpop.permute.xlu0 %547
    %549 = vrot.lane.b32.xlu0 %v544, 125
    %v550 = vpop.permute.xlu0 %549
    %v553 = vadd.f32 %v527, %v548
    %v554 = vadd.f32 %v528, %v550
    %v555 = vmul.f32 %v542, %v159
    %v556 = vmul.f32 %v542, %v160
    %559 = vrot.lane.b32.xlu0 %v555, 125
    %v560 = vpop.permute.xlu0 %559
    %561 = vrot.lane.b32.xlu0 %v556, 125
    %v562 = vpop.permute.xlu0 %561
    %v565 = vadd.f32 %v539, %v560
    %v566 = vadd.f32 %v540, %v562
    %s567 = sld [smem:[#allocation8 + $0x87]]
    %v568 = vstv %s567
    %v569 = vmul.f32 %v568, %v159
    %v570 = vmul.f32 %v568, %v160
    %573 = vrot.lane.b32.xlu0 %v569, 125
    %v574 = vpop.permute.xlu0 %573
    %575 = vrot.lane.b32.xlu0 %v570, 125
    %v576 = vpop.permute.xlu0 %575
    %v579 = vadd.f32 %v553, %v574
    %v580 = vadd.f32 %v554, %v576
    %v581 = vmul.f32 %v568, %v157
    %v582 = vmul.f32 %v568, %v158
    %585 = vrot.lane.b32.xlu0 %v581, 124
    %v586 = vpop.permute.xlu0 %585
    %587 = vrot.lane.b32.xlu0 %v582, 124
    %v588 = vpop.permute.xlu0 %587
    %v591 = vadd.f32 %v565, %v586
    %v592 = vadd.f32 %v566, %v588
    %s593 = sld [smem:[#allocation8 + $0x88]]
    %v594 = vstv %s593
    %v595 = vmul.f32 %v594, %v157
    %v596 = vmul.f32 %v594, %v158
    %599 = vrot.lane.b32.xlu0 %v595, 124
    %v600 = vpop.permute.xlu0 %599
    %601 = vrot.lane.b32.xlu0 %v596, 124
    %v602 = vpop.permute.xlu0 %601
    %v605 = vadd.f32 %v579, %v600
    %v606 = vadd.f32 %v580, %v602
    %v607 = vmul.f32 %v594, %v159
    %v608 = vmul.f32 %v594, %v160
    %611 = vrot.lane.b32.xlu0 %v607, 124
    %v612 = vpop.permute.xlu0 %611
    %613 = vrot.lane.b32.xlu0 %v608, 124
    %v614 = vpop.permute.xlu0 %613
    %v617 = vadd.f32 %v591, %v612
    %v618 = vadd.f32 %v592, %v614
    %s619 = sld [smem:[#allocation8 + $0x89]]
    %v620 = vstv %s619
    %v621 = vmul.f32 %v620, %v159
    %v622 = vmul.f32 %v620, %v160
    %625 = vrot.lane.b32.xlu0 %v621, 124
    %v626 = vpop.permute.xlu0 %625
    %627 = vrot.lane.b32.xlu0 %v622, 124
    %v628 = vpop.permute.xlu0 %627
    %v631 = vadd.f32 %v605, %v626
    %v632 = vadd.f32 %v606, %v628
    %v633 = vmul.f32 %v620, %v157
    %v634 = vmul.f32 %v620, %v158
    %637 = vrot.lane.b32.xlu0 %v633, 123
    %v638 = vpop.permute.xlu0 %637
    %639 = vrot.lane.b32.xlu0 %v634, 123
    %v640 = vpop.permute.xlu0 %639
    %v643 = vadd.f32 %v617, %v638
    %v644 = vadd.f32 %v618, %v640
    %s645 = sld [smem:[#allocation9 + $0x1]]
    %v646 = vstv %s645
    %v647 = vadd.f32 %v631, %v646
    %v648 = vadd.f32 %v632, %v646
    %v649 = vmax.f32 %v647, 0.0
    %v650 = vmax.f32 %v648, 0.0
    %v651 = vadd.f32 %v643, %v646
    %v652 = vadd.f32 %v644, %v646
    %v653 = vmax.f32 %v651, 0.0
    %v654 = vmax.f32 %v652, 0.0
    %v655 = vmax.f32 %v649, %v653
    %v656 = vmax.f32 %v650, %v654
    %v657 = vld [vmem:[#allocation11] sm:$0xff]
    %v658 = vld [vmem:[#allocation11 + $0x8] sm:$0x7]
    %v659 = vld [vmem:[#allocation12] sm:$0xff]
    %v660 = vld [vmem:[#allocation12 + $0x8] sm:$0x7]
    %vm661 = vcmask 89088
    %v663 = vsel %vm661, %v655, 0
    %v666 = vsel %vm661, %v656, 0
    %vm668 = vcmask 1042432
    %v670 = vsel %vm668, %v660, 0
    %672 = vmatprep.subr.mxu0 0.0
    %673 = vmatpush1.msra.mxu0 0.0
    %674 = vmatprep.subr.mxu0 0.0
    %675 = vmatpush1.msra.mxu0 0.0
    %676 = vmatprep.subr.mxu0 0.0
    %677 = vmatpush1.msra.mxu0 0.0
    %678 = vmatprep.subr.mxu0 0.0
    %679 = vmatpush1.msra.mxu0 0.0
    %680 = vmatprep.subr.mxu0 0.0
    %681 = vmatpush1.msra.mxu0 0.0
    %682 = vmatprep.subr.mxu0 0.0
    %683 = vmatpush1.msra.mxu0 0.0
    %684 = vmatprep.subr.mxu0 0.0
    %685 = vmatpush1.msra.mxu0 0.0
    %686 = vmatprep.subr.mxu0 0.0
    %687 = vmatpush1.msra.mxu0 0.0
    %688 = vmatprep.subr.mxu0 0.0
    %689 = vmatpush1.msra.mxu0 0.0
    %690 = vmatprep.subr.mxu0 0.0
    %691 = vmatpush1.msra.mxu0 0.0
    %692 = vmatprep.subr.mxu0 0.0
    %693 = vmatpush1.msra.mxu0 0.0
    %694 = vmatprep.subr.mxu0 0.0
    %695 = vmatpush1.msra.mxu0 0.0
    %696 = vmatprep.subr.mxu0 0.0
    %697 = vmatpush1.msra.mxu0 0.0
    %698 = vmatprep.subr.mxu0 0.0
    %699 = vmatpush1.msra.mxu0 0.0
    %700 = vmatprep.subr.mxu0 0.0
    %701 = vmatpush1.msra.mxu0 %v670
    %702 = vmatprep.subr.mxu0 0.0
    %703 = vmatpush1.msra.mxu0 %v659
    %704 = vmatprep.subr.mxu0 0.0
    %705 = vmatpush2.msra.mxu0 0.0
    %706 = vmatprep.subr.mxu0 0.0
    %707 = vmatpush2.msra.mxu0 0.0
    %708 = vmatprep.subr.mxu0 0.0
    %709 = vmatpush2.msra.mxu0 0.0
    %710 = vmatprep.subr.mxu0 0.0
    %711 = vmatpush2.msra.mxu0 0.0
    %712 = vmatprep.subr.mxu0 0.0
    %713 = vmatpush2.msra.mxu0 0.0
    %714 = vmatprep.subr.mxu0 0.0
    %715 = vmatpush2.msra.mxu0 0.0
    %716 = vmatprep.subr.mxu0 0.0
    %717 = vmatpush2.msra.mxu0 0.0
    %718 = vmatprep.subr.mxu0 0.0
    %719 = vmatpush2.msra.mxu0 0.0
    %720 = vmatprep.subr.mxu0 0.0
    %721 = vmatpush2.msra.mxu0 0.0
    %722 = vmatprep.subr.mxu0 0.0
    %723 = vmatpush2.msra.mxu0 0.0
    %724 = vmatprep.subr.mxu0 0.0
    %725 = vmatpush2.msra.mxu0 0.0
    %726 = vmatprep.subr.mxu0 0.0
    %727 = vmatpush2.msra.mxu0 0.0
    %728 = vmatprep.subr.mxu0 0.0
    %729 = vmatpush2.msra.mxu0 0.0
    %730 = vmatprep.subr.mxu0 0.0
    %731 = vmatpush2.msra.mxu0 0.0
    %732 = vmatprep.subr.mxu0 0.0
    %733 = vmatpush2.msra.mxu0 0.0
    %734 = vmatprep.subr.mxu0 0.0
    %735 = vmatpush2.msra.mxu0 0.0
    %736 = vmatprep.mubr.f32.mxu0 0.0
    %737 = vmatmul.mubr.f32.gmra.mxu0 %v663
    %v738 = vpop.f32.mrf.mxu0
    %v739 = vadd.f32 0.0, %v738
    %v740 = vpop.f32.mrf.mxu0
    %741 = vmatprep.mubr.f32.mxu0 0.0
    %742 = vmatmul.mubr.f32.gmra.mxu0 %v666
    %v743 = vpop.f32.mrf.mxu0
    %v744 = vadd.f32 0.0, %v743
    %v745 = vpop.f32.mrf.mxu0
    %746 = vdwg.mxu0
    %v748 = vsel %vm661, %v407, 0
    %v751 = vsel %vm661, %v408, 0
    %v754 = vsel %vm668, %v658, 0
    %756 = vmatprep.subr.mxu0 0.0
    %757 = vmatpush1.msra.mxu0 0.0
    %758 = vmatprep.subr.mxu0 0.0
    %759 = vmatpush1.msra.mxu0 0.0
    %760 = vmatprep.subr.mxu0 0.0
    %761 = vmatpush1.msra.mxu0 0.0
    %762 = vmatprep.subr.mxu0 0.0
    %763 = vmatpush1.msra.mxu0 0.0
    %764 = vmatprep.subr.mxu0 0.0
    %765 = vmatpush1.msra.mxu0 0.0
    %766 = vmatprep.subr.mxu0 0.0
    %767 = vmatpush1.msra.mxu0 0.0
    %768 = vmatprep.subr.mxu0 0.0
    %769 = vmatpush1.msra.mxu0 0.0
    %770 = vmatprep.subr.mxu0 0.0
    %771 = vmatpush1.msra.mxu0 0.0
    %772 = vmatprep.subr.mxu0 0.0
    %773 = vmatpush1.msra.mxu0 0.0
    %774 = vmatprep.subr.mxu0 0.0
    %775 = vmatpush1.msra.mxu0 0.0
    %776 = vmatprep.subr.mxu0 0.0
    %777 = vmatpush1.msra.mxu0 0.0
    %778 = vmatprep.subr.mxu0 0.0
    %779 = vmatpush1.msra.mxu0 0.0
    %780 = vmatprep.subr.mxu0 0.0
    %781 = vmatpush1.msra.mxu0 0.0
    %782 = vmatprep.subr.mxu0 0.0
    %783 = vmatpush1.msra.mxu0 0.0
    %784 = vmatprep.subr.mxu0 0.0
    %785 = vmatpush1.msra.mxu0 %v754
    %786 = vmatprep.subr.mxu0 0.0
    %787 = vmatpush1.msra.mxu0 %v657
    %788 = vmatprep.subr.mxu0 0.0
    %789 = vmatpush2.msra.mxu0 0.0
    %790 = vmatprep.subr.mxu0 0.0
    %791 = vmatpush2.msra.mxu0 0.0
    %792 = vmatprep.subr.mxu0 0.0
    %793 = vmatpush2.msra.mxu0 0.0
    %794 = vmatprep.subr.mxu0 0.0
    %795 = vmatpush2.msra.mxu0 0.0
    %796 = vmatprep.subr.mxu0 0.0
    %797 = vmatpush2.msra.mxu0 0.0
    %798 = vmatprep.subr.mxu0 0.0
    %799 = vmatpush2.msra.mxu0 0.0
    %800 = vmatprep.subr.mxu0 0.0
    %801 = vmatpush2.msra.mxu0 0.0
    %802 = vmatprep.subr.mxu0 0.0
    %803 = vmatpush2.msra.mxu0 0.0
    %804 = vmatprep.subr.mxu0 0.0
    %805 = vmatpush2.msra.mxu0 0.0
    %806 = vmatprep.subr.mxu0 0.0
    %807 = vmatpush2.msra.mxu0 0.0
    %808 = vmatprep.subr.mxu0 0.0
    %809 = vmatpush2.msra.mxu0 0.0
    %810 = vmatprep.subr.mxu0 0.0
    %811 = vmatpush2.msra.mxu0 0.0
    %812 = vmatprep.subr.mxu0 0.0
    %813 = vmatpush2.msra.mxu0 0.0
    %814 = vmatprep.subr.mxu0 0.0
    %815 = vmatpush2.msra.mxu0 0.0
    %816 = vmatprep.subr.mxu0 0.0
    %817 = vmatpush2.msra.mxu0 0.0
    %818 = vmatprep.subr.mxu0 0.0
    %819 = vmatpush2.msra.mxu0 0.0
    %820 = vmatprep.mubr.f32.mxu0 0.0
    %821 = vmatmul.mubr.f32.gmra.mxu0 %v748
    %v822 = vpop.f32.mrf.mxu0
    %v823 = vadd.f32 %v739, %v822
    %v824 = vpop.f32.mrf.mxu0
    %825 = vmatprep.mubr.f32.mxu0 0.0
    %826 = vmatmul.mubr.f32.gmra.mxu0 %v751
    %v827 = vpop.f32.mrf.mxu0
    %v828 = vadd.f32 %v744, %v827
    %v829 = vpop.f32.mrf.mxu0
    %830 = vdwg.mxu0
    %v831 = vld [vmem:[%s7] sm:$0x1]
    %v833 = vlaneseq
    %v834 = vshrl.u32 %v833, 7
    %v835 = vsub.s32 0, %v834
    %v836 = vrot.slane %v831, %v835
    %v838 = vadd.f32 %v823, %v836
    %v839 = vadd.f32 %v828, %v836
    %v840 = vld [vmem:[%s6] sm:$0xff]
    %v841 = vld [vmem:[%s6 + $0x8] sm:$0xff]
    %v842 = vld [vmem:[%s6 + $0x10] sm:$0xff]
    %v843 = vld [vmem:[%s6 + $0x18] sm:$0xff]
    %v844 = vld [vmem:[%s13] sm:$0x3]
    %v845 = vld [vmem:[%s14] sm:$0x3]
    %vm846 = vcmask 261120
    %v848 = vsel %vm846, %v844, 0
    %850 = vmatprep.subr.mxu0 0.0
    %851 = vmatpush1.msra.mxu0 0.0
    %852 = vmatprep.subr.mxu0 0.0
    %853 = vmatpush1.msra.mxu0 0.0
    %854 = vmatprep.subr.mxu0 0.0
    %855 = vmatpush1.msra.mxu0 0.0
    %856 = vmatprep.subr.mxu0 0.0
    %857 = vmatpush1.msra.mxu0 0.0
    %858 = vmatprep.subr.mxu0 0.0
    %859 = vmatpush1.msra.mxu0 0.0
    %860 = vmatprep.subr.mxu0 0.0
    %861 = vmatpush1.msra.mxu0 0.0
    %862 = vmatprep.subr.mxu0 0.0
    %863 = vmatpush1.msra.mxu0 0.0
    %864 = vmatprep.subr.mxu0 0.0
    %865 = vmatpush1.msra.mxu0 0.0
    %866 = vmatprep.subr.mxu0 0.0
    %867 = vmatpush1.msra.mxu0 0.0
    %868 = vmatprep.subr.mxu0 0.0
    %869 = vmatpush1.msra.mxu0 0.0
    %870 = vmatprep.subr.mxu0 0.0
    %871 = vmatpush1.msra.mxu0 0.0
    %872 = vmatprep.subr.mxu0 0.0
    %873 = vmatpush1.msra.mxu0 0.0
    %874 = vmatprep.subr.mxu0 0.0
    %875 = vmatpush1.msra.mxu0 %v843
    %876 = vmatprep.subr.mxu0 0.0
    %877 = vmatpush1.msra.mxu0 %v842
    %878 = vmatprep.subr.mxu0 0.0
    %879 = vmatpush1.msra.mxu0 %v841
    %880 = vmatprep.subr.mxu0 0.0
    %881 = vmatpush1.msra.mxu0 %v840
    %882 = vmatprep.subr.mxu0 0.0
    %883 = vmatpush2.msra.mxu0 0.0
    %884 = vmatprep.subr.mxu0 0.0
    %885 = vmatpush2.msra.mxu0 0.0
    %886 = vmatprep.subr.mxu0 0.0
    %887 = vmatpush2.msra.mxu0 0.0
    %888 = vmatprep.subr.mxu0 0.0
    %889 = vmatpush2.msra.mxu0 0.0
    %890 = vmatprep.subr.mxu0 0.0
    %891 = vmatpush2.msra.mxu0 0.0
    %892 = vmatprep.subr.mxu0 0.0
    %893 = vmatpush2.msra.mxu0 0.0
    %894 = vmatprep.subr.mxu0 0.0
    %895 = vmatpush2.msra.mxu0 0.0
    %896 = vmatprep.subr.mxu0 0.0
    %897 = vmatpush2.msra.mxu0 0.0
    %898 = vmatprep.subr.mxu0 0.0
    %899 = vmatpush2.msra.mxu0 0.0
    %900 = vmatprep.subr.mxu0 0.0
    %901 = vmatpush2.msra.mxu0 0.0
    %902 = vmatprep.subr.mxu0 0.0
    %903 = vmatpush2.msra.mxu0 0.0
    %904 = vmatprep.subr.mxu0 0.0
    %905 = vmatpush2.msra.mxu0 0.0
    %906 = vmatprep.subr.mxu0 0.0
    %907 = vmatpush2.msra.mxu0 0.0
    %908 = vmatprep.subr.mxu0 0.0
    %909 = vmatpush2.msra.mxu0 0.0
    %910 = vmatprep.subr.mxu0 0.0
    %911 = vmatpush2.msra.mxu0 0.0
    %912 = vmatprep.subr.mxu0 0.0
    %913 = vmatpush2.msra.mxu0 0.0
    %914 = vmatprep.mubr.f32.mxu0 0.0
    %915 = vmatmul.mubr.f32.gmra.mxu0 %v848
    %v916 = vpop.f32.mrf.mxu0
    %v917 = vadd.f32 0.0, %v916
    %v918 = vpop.f32.mrf.mxu0
    %919 = vdwg.mxu0
    %v920 = vadd.f32 %v838, %v917
    %v921 = vxor.u32 %v920, 2147483648
    %v922 = vmul.f32 %v921, 1.442695
    %v923 = vpow.pop %v922
    %v924 = vadd.f32 %v923, 1.0
    %v925 = vrcp.pop %v924
    %v926 = vmul.f32 1.0, %v925
    %v927 = vtanh.pop %v920
    %929 = vrot.lane.b32.xlu0 %v845, 32
    %v930 = vpop.permute.xlu0 %929
    %v932 = vmul.f32 %v926, %v930
    %934 = vrot.lane.b32.xlu0 %v927, 64
    %v935 = vpop.permute.xlu0 %934
    %v937 = vmul.f32 %v926, %v935
    %939 = vrot.lane.b32.xlu0 %v937, 32
    %v940 = vpop.permute.xlu0 %939
    %v942 = vadd.f32 %v932, %v940
    %v943 = vtanh.pop %v942
    %945 = vrot.lane.b32.xlu0 %v943, 64
    %v946 = vpop.permute.xlu0 %945
    %v948 = vmul.f32 %v926, %v946
    %950 = vrot.lane.b32.xlu0 %v948, 32
    %v951 = vpop.permute.xlu0 %950
    %vm953 = vcmask 254976
    %954 = vst.msk [vmem:[#allocation2] sm:$0x3] %vm953, %v951
    %v955 = vsel %vm846, %v951, 0
    %957 = vmatprep.subr.mxu0 0.0
    %958 = vmatpush1.msra.mxu0 0.0
    %959 = vmatprep.subr.mxu0 0.0
    %960 = vmatpush1.msra.mxu0 0.0
    %961 = vmatprep.subr.mxu0 0.0
    %962 = vmatpush1.msra.mxu0 0.0
    %963 = vmatprep.subr.mxu0 0.0
    %964 = vmatpush1.msra.mxu0 0.0
    %965 = vmatprep.subr.mxu0 0.0
    %966 = vmatpush1.msra.mxu0 0.0
    %967 = vmatprep.subr.mxu0 0.0
    %968 = vmatpush1.msra.mxu0 0.0
    %969 = vmatprep.subr.mxu0 0.0
    %970 = vmatpush1.msra.mxu0 0.0
    %971 = vmatprep.subr.mxu0 0.0
    %972 = vmatpush1.msra.mxu0 0.0
    %973 = vmatprep.subr.mxu0 0.0
    %974 = vmatpush1.msra.mxu0 0.0
    %975 = vmatprep.subr.mxu0 0.0
    %976 = vmatpush1.msra.mxu0 0.0
    %977 = vmatprep.subr.mxu0 0.0
    %978 = vmatpush1.msra.mxu0 0.0
    %979 = vmatprep.subr.mxu0 0.0
    %980 = vmatpush1.msra.mxu0 0.0
    %981 = vmatprep.subr.mxu0 0.0
    %982 = vmatpush1.msra.mxu0 %v843
    %983 = vmatprep.subr.mxu0 0.0
    %984 = vmatpush1.msra.mxu0 %v842
    %985 = vmatprep.subr.mxu0 0.0
    %986 = vmatpush1.msra.mxu0 %v841
    %987 = vmatprep.subr.mxu0 0.0
    %988 = vmatpush1.msra.mxu0 %v840
    %989 = vmatprep.subr.mxu0 0.0
    %990 = vmatpush2.msra.mxu0 0.0
    %991 = vmatprep.subr.mxu0 0.0
    %992 = vmatpush2.msra.mxu0 0.0
    %993 = vmatprep.subr.mxu0 0.0
    %994 = vmatpush2.msra.mxu0 0.0
    %995 = vmatprep.subr.mxu0 0.0
    %996 = vmatpush2.msra.mxu0 0.0
    %997 = vmatprep.subr.mxu0 0.0
    %998 = vmatpush2.msra.mxu0 0.0
    %999 = vmatprep.subr.mxu0 0.0
    %1000 = vmatpush2.msra.mxu0 0.0
    %1001 = vmatprep.subr.mxu0 0.0
    %1002 = vmatpush2.msra.mxu0 0.0
    %1003 = vmatprep.subr.mxu0 0.0
    %1004 = vmatpush2.msra.mxu0 0.0
    %1005 = vmatprep.subr.mxu0 0.0
    %1006 = vmatpush2.msra.mxu0 0.0
    %1007 = vmatprep.subr.mxu0 0.0
    %1008 = vmatpush2.msra.mxu0 0.0
    %1009 = vmatprep.subr.mxu0 0.0
    %1010 = vmatpush2.msra.mxu0 0.0
    %1011 = vmatprep.subr.mxu0 0.0
    %1012 = vmatpush2.msra.mxu0 0.0
    %1013 = vmatprep.subr.mxu0 0.0
    %1014 = vmatpush2.msra.mxu0 0.0
    %1015 = vmatprep.subr.mxu0 0.0
    %1016 = vmatpush2.msra.mxu0 0.0
    %1017 = vmatprep.subr.mxu0 0.0
    %1018 = vmatpush2.msra.mxu0 0.0
    %1019 = vmatprep.subr.mxu0 0.0
    %1020 = vmatpush2.msra.mxu0 0.0
    %1021 = vmatprep.mubr.f32.mxu0 0.0
    %1022 = vmatmul.mubr.f32.gmra.mxu0 %v955
    %v1023 = vpop.f32.mrf.mxu0
    %v1024 = vadd.f32 0.0, %v1023
    %v1025 = vpop.f32.mrf.mxu0
    %1026 = vdwg.mxu0
    %v1028 = vrot.slane %v1024, 6
    %v1030 = vadd.f32 %v838, %v1028
    %v1031 = vxor.u32 %v1030, 2147483648
    %v1032 = vmul.f32 %v1031, 1.442695
    %v1033 = vpow.pop %v1032
    %v1034 = vadd.f32 %v1033, 1.0
    %v1035 = vrcp.pop %v1034
    %v1036 = vmul.f32 1.0, %v1035
    %v1037 = vtanh.pop %v1030
    %v1039 = vrot.slane %v942, 6
    %v1041 = vmul.f32 %v1036, %v1039
    %1043 = vrot.lane.b32.xlu0 %v1037, 64
    %v1044 = vpop.permute.xlu0 %1043
    %v1046 = vmul.f32 %v1036, %v1044
    %1048 = vrot.lane.b32.xlu0 %v1046, 32
    %v1049 = vpop.permute.xlu0 %1048
    %v1051 = vadd.f32 %v1041, %v1049
    %v1052 = vtanh.pop %v1051
    %1054 = vrot.lane.b32.xlu0 %v1052, 64
    %v1055 = vpop.permute.xlu0 %1054
    %v1057 = vmul.f32 %v1036, %v1055
    %1059 = vrot.lane.b32.xlu0 %v1057, 32
    %v1060 = vpop.permute.xlu0 %1059
    %vm1062 = vcmask 257026
    %1063 = vst.msk [vmem:[#allocation2] sm:$0xc] %vm1062, %v1060
    %v1064 = vrot.slane %v1057, 2
    %1065 = vrot.lane.b32.xlu0 %v1064, 32
    %v1066 = vpop.permute.xlu0 %1065
    %v1067 = vsel %vm846, %v1066, 0
    %1069 = vmatprep.subr.mxu0 0.0
    %1070 = vmatpush1.msra.mxu0 0.0
    %1071 = vmatprep.subr.mxu0 0.0
    %1072 = vmatpush1.msra.mxu0 0.0
    %1073 = vmatprep.subr.mxu0 0.0
    %1074 = vmatpush1.msra.mxu0 0.0
    %1075 = vmatprep.subr.mxu0 0.0
    %1076 = vmatpush1.msra.mxu0 0.0
    %1077 = vmatprep.subr.mxu0 0.0
    %1078 = vmatpush1.msra.mxu0 0.0
    %1079 = vmatprep.subr.mxu0 0.0
    %1080 = vmatpush1.msra.mxu0 0.0
    %1081 = vmatprep.subr.mxu0 0.0
    %1082 = vmatpush1.msra.mxu0 0.0
    %1083 = vmatprep.subr.mxu0 0.0
    %1084 = vmatpush1.msra.mxu0 0.0
    %1085 = vmatprep.subr.mxu0 0.0
    %1086 = vmatpush1.msra.mxu0 0.0
    %1087 = vmatprep.subr.mxu0 0.0
    %1088 = vmatpush1.msra.mxu0 0.0
    %1089 = vmatprep.subr.mxu0 0.0
    %1090 = vmatpush1.msra.mxu0 0.0
    %1091 = vmatprep.subr.mxu0 0.0
    %1092 = vmatpush1.msra.mxu0 0.0
    %1093 = vmatprep.subr.mxu0 0.0
    %1094 = vmatpush1.msra.mxu0 %v843
    %1095 = vmatprep.subr.mxu0 0.0
    %1096 = vmatpush1.msra.mxu0 %v842
    %1097 = vmatprep.subr.mxu0 0.0
    %1098 = vmatpush1.msra.mxu0 %v841
    %1099 = vmatprep.subr.mxu0 0.0
    %1100 = vmatpush1.msra.mxu0 %v840
    %1101 = vmatprep.subr.mxu0 0.0
    %1102 = vmatpush2.msra.mxu0 0.0
    %1103 = vmatprep.subr.mxu0 0.0
    %1104 = vmatpush2.msra.mxu0 0.0
    %1105 = vmatprep.subr.mxu0 0.0
    %1106 = vmatpush2.msra.mxu0 0.0
    %1107 = vmatprep.subr.mxu0 0.0
    %1108 = vmatpush2.msra.mxu0 0.0
    %1109 = vmatprep.subr.mxu0 0.0
    %1110 = vmatpush2.msra.mxu0 0.0
    %1111 = vmatprep.subr.mxu0 0.0
    %1112 = vmatpush2.msra.mxu0 0.0
    %1113 = vmatprep.subr.mxu0 0.0
    %1114 = vmatpush2.msra.mxu0 0.0
    %1115 = vmatprep.subr.mxu0 0.0
    %1116 = vmatpush2.msra.mxu0 0.0
    %1117 = vmatprep.subr.mxu0 0.0
    %1118 = vmatpush2.msra.mxu0 0.0
    %1119 = vmatprep.subr.mxu0 0.0
    %1120 = vmatpush2.msra.mxu0 0.0
    %1121 = vmatprep.subr.mxu0 0.0
    %1122 = vmatpush2.msra.mxu0 0.0
    %1123 = vmatprep.subr.mxu0 0.0
    %1124 = vmatpush2.msra.mxu0 0.0
    %1125 = vmatprep.subr.mxu0 0.0
    %1126 = vmatpush2.msra.mxu0 0.0
    %1127 = vmatprep.subr.mxu0 0.0
    %1128 = vmatpush2.msra.mxu0 0.0
    %1129 = vmatprep.subr.mxu0 0.0
    %1130 = vmatpush2.msra.mxu0 0.0
    %1131 = vmatprep.subr.mxu0 0.0
    %1132 = vmatpush2.msra.mxu0 0.0
    %1133 = vmatprep.mubr.f32.mxu0 0.0
    %1134 = vmatmul.mubr.f32.gmra.mxu0 %v1067
    %v1135 = vpop.f32.mrf.mxu0
    %v1136 = vadd.f32 0.0, %v1135
    %v1137 = vpop.f32.mrf.mxu0
    %1138 = vdwg.mxu0
    %v1140 = vrot.slane %v1136, 4
    %v1142 = vadd.f32 %v838, %v1140
    %v1143 = vxor.u32 %v1142, 2147483648
    %v1144 = vmul.f32 %v1143, 1.442695
    %v1145 = vpow.pop %v1144
    %v1146 = vadd.f32 %v1145, 1.0
    %v1147 = vrcp.pop %v1146
    %v1148 = vmul.f32 1.0, %v1147
    %v1149 = vtanh.pop %v1142
    %v1151 = vrot.slane %v1051, 6
    %v1153 = vmul.f32 %v1148, %v1151
    %1155 = vrot.lane.b32.xlu0 %v1149, 64
    %v1156 = vpop.permute.xlu0 %1155
    %v1158 = vmul.f32 %v1148, %v1156
    %1160 = vrot.lane.b32.xlu0 %v1158, 32
    %v1161 = vpop.permute.xlu0 %1160
    %v1163 = vadd.f32 %v1153, %v1161
    %v1164 = vtanh.pop %v1163
    %1166 = vrot.lane.b32.xlu0 %v1164, 64
    %v1167 = vpop.permute.xlu0 %1166
    %v1169 = vmul.f32 %v1148, %v1167
    %1171 = vrot.lane.b32.xlu0 %v1169, 32
    %v1172 = vpop.permute.xlu0 %1171
    %vm1174 = vcmask 259076
    %1175 = vst.msk [vmem:[#allocation2] sm:$0x30] %vm1174, %v1172
    %v1176 = vrot.slane %v1169, 4
    %1177 = vrot.lane.b32.xlu0 %v1176, 32
    %v1178 = vpop.permute.xlu0 %1177
    %v1179 = vsel %vm846, %v1178, 0
    %1181 = vmatprep.subr.mxu0 0.0
    %1182 = vmatpush1.msra.mxu0 0.0
    %1183 = vmatprep.subr.mxu0 0.0
    %1184 = vmatpush1.msra.mxu0 0.0
    %1185 = vmatprep.subr.mxu0 0.0
    %1186 = vmatpush1.msra.mxu0 0.0
    %1187 = vmatprep.subr.mxu0 0.0
    %1188 = vmatpush1.msra.mxu0 0.0
    %1189 = vmatprep.subr.mxu0 0.0
    %1190 = vmatpush1.msra.mxu0 0.0
    %1191 = vmatprep.subr.mxu0 0.0
    %1192 = vmatpush1.msra.mxu0 0.0
    %1193 = vmatprep.subr.mxu0 0.0
    %1194 = vmatpush1.msra.mxu0 0.0
    %1195 = vmatprep.subr.mxu0 0.0
    %1196 = vmatpush1.msra.mxu0 0.0
    %1197 = vmatprep.subr.mxu0 0.0
    %1198 = vmatpush1.msra.mxu0 0.0
    %1199 = vmatprep.subr.mxu0 0.0
    %1200 = vmatpush1.msra.mxu0 0.0
    %1201 = vmatprep.subr.mxu0 0.0
    %1202 = vmatpush1.msra.mxu0 0.0
    %1203 = vmatprep.subr.mxu0 0.0
    %1204 = vmatpush1.msra.mxu0 0.0
    %1205 = vmatprep.subr.mxu0 0.0
    %1206 = vmatpush1.msra.mxu0 %v843
    %1207 = vmatprep.subr.mxu0 0.0
    %1208 = vmatpush1.msra.mxu0 %v842
    %1209 = vmatprep.subr.mxu0 0.0
    %1210 = vmatpush1.msra.mxu0 %v841
    %1211 = vmatprep.subr.mxu0 0.0
    %1212 = vmatpush1.msra.mxu0 %v840
    %1213 = vmatprep.subr.mxu0 0.0
    %1214 = vmatpush2.msra.mxu0 0.0
    %1215 = vmatprep.subr.mxu0 0.0
    %1216 = vmatpush2.msra.mxu0 0.0
    %1217 = vmatprep.subr.mxu0 0.0
    %1218 = vmatpush2.msra.mxu0 0.0
    %1219 = vmatprep.subr.mxu0 0.0
    %1220 = vmatpush2.msra.mxu0 0.0
    %1221 = vmatprep.subr.mxu0 0.0
    %1222 = vmatpush2.msra.mxu0 0.0
    %1223 = vmatprep.subr.mxu0 0.0
    %1224 = vmatpush2.msra.mxu0 0.0
    %1225 = vmatprep.subr.mxu0 0.0
    %1226 = vmatpush2.msra.mxu0 0.0
    %1227 = vmatprep.subr.mxu0 0.0
    %1228 = vmatpush2.msra.mxu0 0.0
    %1229 = vmatprep.subr.mxu0 0.0
    %1230 = vmatpush2.msra.mxu0 0.0
    %1231 = vmatprep.subr.mxu0 0.0
    %1232 = vmatpush2.msra.mxu0 0.0
    %1233 = vmatprep.subr.mxu0 0.0
    %1234 = vmatpush2.msra.mxu0 0.0
    %1235 = vmatprep.subr.mxu0 0.0
    %1236 = vmatpush2.msra.mxu0 0.0
    %1237 = vmatprep.subr.mxu0 0.0
    %1238 = vmatpush2.msra.mxu0 0.0
    %1239 = vmatprep.subr.mxu0 0.0
    %1240 = vmatpush2.msra.mxu0 0.0
    %1241 = vmatprep.subr.mxu0 0.0
    %1242 = vmatpush2.msra.mxu0 0.0
    %1243 = vmatprep.subr.mxu0 0.0
    %1244 = vmatpush2.msra.mxu0 0.0
    %1245 = vmatprep.mubr.f32.mxu0 0.0
    %1246 = vmatmul.mubr.f32.gmra.mxu0 %v1179
    %v1247 = vpop.f32.mrf.mxu0
    %v1248 = vadd.f32 0.0, %v1247
    %v1249 = vpop.f32.mrf.mxu0
    %1250 = vdwg.mxu0
    %v1252 = vrot.slane %v1248, 2
    %v1254 = vadd.f32 %v838, %v1252
    %v1255 = vxor.u32 %v1254, 2147483648
    %v1256 = vmul.f32 %v1255, 1.442695
    %v1257 = vpow.pop %v1256
    %v1258 = vadd.f32 %v1257, 1.0
    %v1259 = vrcp.pop %v1258
    %v1260 = vmul.f32 1.0, %v1259
    %v1261 = vtanh.pop %v1254
    %v1263 = vrot.slane %v1163, 6
    %v1265 = vmul.f32 %v1260, %v1263
    %1267 = vrot.lane.b32.xlu0 %v1261, 64
    %v1268 = vpop.permute.xlu0 %1267
    %v1270 = vmul.f32 %v1260, %v1268
    %1272 = vrot.lane.b32.xlu0 %v1270, 32
    %v1273 = vpop.permute.xlu0 %1272
    %v1275 = vadd.f32 %v1265, %v1273
    %v1276 = vtanh.pop %v1275
    %1278 = vrot.lane.b32.xlu0 %v1276, 64
    %v1279 = vpop.permute.xlu0 %1278
    %v1281 = vmul.f32 %v1260, %v1279
    %1283 = vrot.lane.b32.xlu0 %v1281, 32
    %v1284 = vpop.permute.xlu0 %1283
    %vm1286 = vcmask 261126
    %1287 = vst.msk [vmem:[#allocation2] sm:$0xc0] %vm1286, %v1284
    %v1288 = vrot.slane %v1281, 6
    %1289 = vrot.lane.b32.xlu0 %v1288, 32
    %v1290 = vpop.permute.xlu0 %1289
    %v1291 = vsel %vm846, %v1290, 0
    %1293 = vmatprep.subr.mxu0 0.0
    %1294 = vmatpush1.msra.mxu0 0.0
    %1295 = vmatprep.subr.mxu0 0.0
    %1296 = vmatpush1.msra.mxu0 0.0
    %1297 = vmatprep.subr.mxu0 0.0
    %1298 = vmatpush1.msra.mxu0 0.0
    %1299 = vmatprep.subr.mxu0 0.0
    %1300 = vmatpush1.msra.mxu0 0.0
    %1301 = vmatprep.subr.mxu0 0.0
    %1302 = vmatpush1.msra.mxu0 0.0
    %1303 = vmatprep.subr.mxu0 0.0
    %1304 = vmatpush1.msra.mxu0 0.0
    %1305 = vmatprep.subr.mxu0 0.0
    %1306 = vmatpush1.msra.mxu0 0.0
    %1307 = vmatprep.subr.mxu0 0.0
    %1308 = vmatpush1.msra.mxu0 0.0
    %1309 = vmatprep.subr.mxu0 0.0
    %1310 = vmatpush1.msra.mxu0 0.0
    %1311 = vmatprep.subr.mxu0 0.0
    %1312 = vmatpush1.msra.mxu0 0.0
    %1313 = vmatprep.subr.mxu0 0.0
    %1314 = vmatpush1.msra.mxu0 0.0
    %1315 = vmatprep.subr.mxu0 0.0
    %1316 = vmatpush1.msra.mxu0 0.0
    %1317 = vmatprep.subr.mxu0 0.0
    %1318 = vmatpush1.msra.mxu0 %v843
    %1319 = vmatprep.subr.mxu0 0.0
    %1320 = vmatpush1.msra.mxu0 %v842
    %1321 = vmatprep.subr.mxu0 0.0
    %1322 = vmatpush1.msra.mxu0 %v841
    %1323 = vmatprep.subr.mxu0 0.0
    %1324 = vmatpush1.msra.mxu0 %v840
    %1325 = vmatprep.subr.mxu0 0.0
    %1326 = vmatpush2.msra.mxu0 0.0
    %1327 = vmatprep.subr.mxu0 0.0
    %1328 = vmatpush2.msra.mxu0 0.0
    %1329 = vmatprep.subr.mxu0 0.0
    %1330 = vmatpush2.msra.mxu0 0.0
    %1331 = vmatprep.subr.mxu0 0.0
    %1332 = vmatpush2.msra.mxu0 0.0
    %1333 = vmatprep.subr.mxu0 0.0
    %1334 = vmatpush2.msra.mxu0 0.0
    %1335 = vmatprep.subr.mxu0 0.0
    %1336 = vmatpush2.msra.mxu0 0.0
    %1337 = vmatprep.subr.mxu0 0.0
    %1338 = vmatpush2.msra.mxu0 0.0
    %1339 = vmatprep.subr.mxu0 0.0
    %1340 = vmatpush2.msra.mxu0 0.0
    %1341 = vmatprep.subr.mxu0 0.0
    %1342 = vmatpush2.msra.mxu0 0.0
    %1343 = vmatprep.subr.mxu0 0.0
    %1344 = vmatpush2.msra.mxu0 0.0
    %1345 = vmatprep.subr.mxu0 0.0
    %1346 = vmatpush2.msra.mxu0 0.0
    %1347 = vmatprep.subr.mxu0 0.0
    %1348 = vmatpush2.msra.mxu0 0.0
    %1349 = vmatprep.subr.mxu0 0.0
    %1350 = vmatpush2.msra.mxu0 0.0
    %1351 = vmatprep.subr.mxu0 0.0
    %1352 = vmatpush2.msra.mxu0 0.0
    %1353 = vmatprep.subr.mxu0 0.0
    %1354 = vmatpush2.msra.mxu0 0.0
    %1355 = vmatprep.subr.mxu0 0.0
    %1356 = vmatpush2.msra.mxu0 0.0
    %1357 = vmatprep.mubr.f32.mxu0 0.0
    %1358 = vmatmul.mubr.f32.gmra.mxu0 %v1291
    %v1359 = vpop.f32.mrf.mxu0
    %v1360 = vadd.f32 0.0, %v1359
    %v1361 = vpop.f32.mrf.mxu0
    %1362 = vdwg.mxu0
    %v1363 = vadd.f32 %v839, %v1360
    %v1364 = vxor.u32 %v1363, 2147483648
    %v1365 = vmul.f32 %v1364, 1.442695
    %v1366 = vpow.pop %v1365
    %v1367 = vadd.f32 %v1366, 1.0
    %v1368 = vrcp.pop %v1367
    %v1369 = vmul.f32 1.0, %v1368
    %v1370 = vtanh.pop %v1363
    %v1372 = vrot.slane %v1275, 6
    %v1374 = vmul.f32 %v1369, %v1372
    %1376 = vrot.lane.b32.xlu0 %v1370, 64
    %v1377 = vpop.permute.xlu0 %1376
    %v1379 = vmul.f32 %v1369, %v1377
    %1381 = vrot.lane.b32.xlu0 %v1379, 32
    %v1382 = vpop.permute.xlu0 %1381
    %v1384 = vadd.f32 %v1374, %v1382
    %v1385 = vtanh.pop %v1384
    %1387 = vrot.lane.b32.xlu0 %v1385, 64
    %v1388 = vpop.permute.xlu0 %1387
    %v1390 = vmul.f32 %v1369, %v1388
    %1392 = vrot.lane.b32.xlu0 %v1390, 32
    %v1393 = vpop.permute.xlu0 %1392
    %1395 = vst.msk [vmem:[#allocation2 + $0x8] sm:$0x3] %vm953, %v1393
    %v1396 = vsel %vm846, %v1393, 0
    %1398 = vmatprep.subr.mxu0 0.0
    %1399 = vmatpush1.msra.mxu0 0.0
    %1400 = vmatprep.subr.mxu0 0.0
    %1401 = vmatpush1.msra.mxu0 0.0
    %1402 = vmatprep.subr.mxu0 0.0
    %1403 = vmatpush1.msra.mxu0 0.0
    %1404 = vmatprep.subr.mxu0 0.0
    %1405 = vmatpush1.msra.mxu0 0.0
    %1406 = vmatprep.subr.mxu0 0.0
    %1407 = vmatpush1.msra.mxu0 0.0
    %1408 = vmatprep.subr.mxu0 0.0
    %1409 = vmatpush1.msra.mxu0 0.0
    %1410 = vmatprep.subr.mxu0 0.0
    %1411 = vmatpush1.msra.mxu0 0.0
    %1412 = vmatprep.subr.mxu0 0.0
    %1413 = vmatpush1.msra.mxu0 0.0
    %1414 = vmatprep.subr.mxu0 0.0
    %1415 = vmatpush1.msra.mxu0 0.0
    %1416 = vmatprep.subr.mxu0 0.0
    %1417 = vmatpush1.msra.mxu0 0.0
    %1418 = vmatprep.subr.mxu0 0.0
    %1419 = vmatpush1.msra.mxu0 0.0
    %1420 = vmatprep.subr.mxu0 0.0
    %1421 = vmatpush1.msra.mxu0 0.0
    %1422 = vmatprep.subr.mxu0 0.0
    %1423 = vmatpush1.msra.mxu0 %v843
    %1424 = vmatprep.subr.mxu0 0.0
    %1425 = vmatpush1.msra.mxu0 %v842
    %1426 = vmatprep.subr.mxu0 0.0
    %1427 = vmatpush1.msra.mxu0 %v841
    %1428 = vmatprep.subr.mxu0 0.0
    %1429 = vmatpush1.msra.mxu0 %v840
    %1430 = vmatprep.subr.mxu0 0.0
    %1431 = vmatpush2.msra.mxu0 0.0
    %1432 = vmatprep.subr.mxu0 0.0
    %1433 = vmatpush2.msra.mxu0 0.0
    %1434 = vmatprep.subr.mxu0 0.0
    %1435 = vmatpush2.msra.mxu0 0.0
    %1436 = vmatprep.subr.mxu0 0.0
    %1437 = vmatpush2.msra.mxu0 0.0
    %1438 = vmatprep.subr.mxu0 0.0
    %1439 = vmatpush2.msra.mxu0 0.0
    %1440 = vmatprep.subr.mxu0 0.0
    %1441 = vmatpush2.msra.mxu0 0.0
    %1442 = vmatprep.subr.mxu0 0.0
    %1443 = vmatpush2.msra.mxu0 0.0
    %1444 = vmatprep.subr.mxu0 0.0
    %1445 = vmatpush2.msra.mxu0 0.0
    %1446 = vmatprep.subr.mxu0 0.0
    %1447 = vmatpush2.msra.mxu0 0.0
    %1448 = vmatprep.subr.mxu0 0.0
    %1449 = vmatpush2.msra.mxu0 0.0
    %1450 = vmatprep.subr.mxu0 0.0
    %1451 = vmatpush2.msra.mxu0 0.0
    %1452 = vmatprep.subr.mxu0 0.0
    %1453 = vmatpush2.msra.mxu0 0.0
    %1454 = vmatprep.subr.mxu0 0.0
    %1455 = vmatpush2.msra.mxu0 0.0
    %1456 = vmatprep.subr.mxu0 0.0
    %1457 = vmatpush2.msra.mxu0 0.0
    %1458 = vmatprep.subr.mxu0 0.0
    %1459 = vmatpush2.msra.mxu0 0.0
    %1460 = vmatprep.subr.mxu0 0.0
    %1461 = vmatpush2.msra.mxu0 0.0
    %1462 = vmatprep.mubr.f32.mxu0 0.0
    %1463 = vmatmul.mubr.f32.gmra.mxu0 %v1396
    %v1464 = vpop.f32.mrf.mxu0
    %v1465 = vadd.f32 0.0, %v1464
    %v1466 = vpop.f32.mrf.mxu0
    %1467 = vdwg.mxu0
    %v1469 = vrot.slane %v1465, 6
    %v1471 = vadd.f32 %v839, %v1469
    %v1472 = vxor.u32 %v1471, 2147483648
    %v1473 = vmul.f32 %v1472, 1.442695
    %v1474 = vpow.pop %v1473
    %v1475 = vadd.f32 %v1474, 1.0
    %v1476 = vrcp.pop %v1475
    %v1477 = vmul.f32 1.0, %v1476
    %v1478 = vtanh.pop %v1471
    %v1480 = vrot.slane %v1384, 6
    %v1482 = vmul.f32 %v1477, %v1480
    %1484 = vrot.lane.b32.xlu0 %v1478, 64
    %v1485 = vpop.permute.xlu0 %1484
    %v1487 = vmul.f32 %v1477, %v1485
    %1489 = vrot.lane.b32.xlu0 %v1487, 32
    %v1490 = vpop.permute.xlu0 %1489
    %v1492 = vadd.f32 %v1482, %v1490
    %v1493 = vtanh.pop %v1492
    %1495 = vrot.lane.b32.xlu0 %v1493, 64
    %v1496 = vpop.permute.xlu0 %1495
    %v1498 = vmul.f32 %v1477, %v1496
    %1500 = vrot.lane.b32.xlu0 %v1498, 32
    %v1501 = vpop.permute.xlu0 %1500
    %1503 = vst.msk [vmem:[#allocation2 + $0x8] sm:$0xc] %vm1062, %v1501
    %v1504 = vrot.slane %v1498, 2
    %1505 = vrot.lane.b32.xlu0 %v1504, 32
    %v1506 = vpop.permute.xlu0 %1505
    %v1507 = vsel %vm846, %v1506, 0
    %1509 = vmatprep.subr.mxu0 0.0
    %1510 = vmatpush1.msra.mxu0 0.0
    %1511 = vmatprep.subr.mxu0 0.0
    %1512 = vmatpush1.msra.mxu0 0.0
    %1513 = vmatprep.subr.mxu0 0.0
    %1514 = vmatpush1.msra.mxu0 0.0
    %1515 = vmatprep.subr.mxu0 0.0
    %1516 = vmatpush1.msra.mxu0 0.0
    %1517 = vmatprep.subr.mxu0 0.0
    %1518 = vmatpush1.msra.mxu0 0.0
    %1519 = vmatprep.subr.mxu0 0.0
    %1520 = vmatpush1.msra.mxu0 0.0
    %1521 = vmatprep.subr.mxu0 0.0
    %1522 = vmatpush1.msra.mxu0 0.0
    %1523 = vmatprep.subr.mxu0 0.0
    %1524 = vmatpush1.msra.mxu0 0.0
    %1525 = vmatprep.subr.mxu0 0.0
    %1526 = vmatpush1.msra.mxu0 0.0
    %1527 = vmatprep.subr.mxu0 0.0
    %1528 = vmatpush1.msra.mxu0 0.0
    %1529 = vmatprep.subr.mxu0 0.0
    %1530 = vmatpush1.msra.mxu0 0.0
    %1531 = vmatprep.subr.mxu0 0.0
    %1532 = vmatpush1.msra.mxu0 0.0
    %1533 = vmatprep.subr.mxu0 0.0
    %1534 = vmatpush1.msra.mxu0 %v843
    %1535 = vmatprep.subr.mxu0 0.0
    %1536 = vmatpush1.msra.mxu0 %v842
    %1537 = vmatprep.subr.mxu0 0.0
    %1538 = vmatpush1.msra.mxu0 %v841
    %1539 = vmatprep.subr.mxu0 0.0
    %1540 = vmatpush1.msra.mxu0 %v840
    %1541 = vmatprep.subr.mxu0 0.0
    %1542 = vmatpush2.msra.mxu0 0.0
    %1543 = vmatprep.subr.mxu0 0.0
    %1544 = vmatpush2.msra.mxu0 0.0
    %1545 = vmatprep.subr.mxu0 0.0
    %1546 = vmatpush2.msra.mxu0 0.0
    %1547 = vmatprep.subr.mxu0 0.0
    %1548 = vmatpush2.msra.mxu0 0.0
    %1549 = vmatprep.subr.mxu0 0.0
    %1550 = vmatpush2.msra.mxu0 0.0
    %1551 = vmatprep.subr.mxu0 0.0
    %1552 = vmatpush2.msra.mxu0 0.0
    %1553 = vmatprep.subr.mxu0 0.0
    %1554 = vmatpush2.msra.mxu0 0.0
    %1555 = vmatprep.subr.mxu0 0.0
    %1556 = vmatpush2.msra.mxu0 0.0
    %1557 = vmatprep.subr.mxu0 0.0
    %1558 = vmatpush2.msra.mxu0 0.0
    %1559 = vmatprep.subr.mxu0 0.0
    %1560 = vmatpush2.msra.mxu0 0.0
    %1561 = vmatprep.subr.mxu0 0.0
    %1562 = vmatpush2.msra.mxu0 0.0
    %1563 = vmatprep.subr.mxu0 0.0
    %1564 = vmatpush2.msra.mxu0 0.0
    %1565 = vmatprep.subr.mxu0 0.0
    %1566 = vmatpush2.msra.mxu0 0.0
    %1567 = vmatprep.subr.mxu0 0.0
    %1568 = vmatpush2.msra.mxu0 0.0
    %1569 = vmatprep.subr.mxu0 0.0
    %1570 = vmatpush2.msra.mxu0 0.0
    %1571 = vmatprep.subr.mxu0 0.0
    %1572 = vmatpush2.msra.mxu0 0.0
    %1573 = vmatprep.mubr.f32.mxu0 0.0
    %1574 = vmatmul.mubr.f32.gmra.mxu0 %v1507
    %v1575 = vpop.f32.mrf.mxu0
    %v1576 = vadd.f32 0.0, %v1575
    %v1577 = vpop.f32.mrf.mxu0
    %1578 = vdwg.mxu0
    %v1580 = vrot.slane %v1576, 4
    %v1582 = vadd.f32 %v839, %v1580
    %v1583 = vxor.u32 %v1582, 2147483648
    %v1584 = vmul.f32 %v1583, 1.442695
    %v1585 = vpow.pop %v1584
    %v1586 = vadd.f32 %v1585, 1.0
    %v1587 = vrcp.pop %v1586
    %v1588 = vmul.f32 1.0, %v1587
    %v1589 = vtanh.pop %v1582
    %v1591 = vrot.slane %v1492, 6
    %v1593 = vmul.f32 %v1588, %v1591
    %1595 = vrot.lane.b32.xlu0 %v1589, 64
    %v1596 = vpop.permute.xlu0 %1595
    %v1598 = vmul.f32 %v1588, %v1596
    %1600 = vrot.lane.b32.xlu0 %v1598, 32
    %v1601 = vpop.permute.xlu0 %1600
    %v1603 = vadd.f32 %v1593, %v1601
    %v1604 = vtanh.pop %v1603
    %1606 = vrot.lane.b32.xlu0 %v1604, 64
    %v1607 = vpop.permute.xlu0 %1606
    %v1609 = vmul.f32 %v1588, %v1607
    %1611 = vrot.lane.b32.xlu0 %v1609, 32
    %v1612 = vpop.permute.xlu0 %1611
    %1614 = vst.msk [vmem:[#allocation2 + $0x8] sm:$0x30] %vm1174, %v1612
    %v1615 = vrot.slane %v1609, 4
    %1616 = vrot.lane.b32.xlu0 %v1615, 32
    %v1617 = vpop.permute.xlu0 %1616
    %v1618 = vsel %vm846, %v1617, 0
    %1620 = vmatprep.subr.mxu0 0.0
    %1621 = vmatpush1.msra.mxu0 0.0
    %1622 = vmatprep.subr.mxu0 0.0
    %1623 = vmatpush1.msra.mxu0 0.0
    %1624 = vmatprep.subr.mxu0 0.0
    %1625 = vmatpush1.msra.mxu0 0.0
    %1626 = vmatprep.subr.mxu0 0.0
    %1627 = vmatpush1.msra.mxu0 0.0
    %1628 = vmatprep.subr.mxu0 0.0
    %1629 = vmatpush1.msra.mxu0 0.0
    %1630 = vmatprep.subr.mxu0 0.0
    %1631 = vmatpush1.msra.mxu0 0.0
    %1632 = vmatprep.subr.mxu0 0.0
    %1633 = vmatpush1.msra.mxu0 0.0
    %1634 = vmatprep.subr.mxu0 0.0
    %1635 = vmatpush1.msra.mxu0 0.0
    %1636 = vmatprep.subr.mxu0 0.0
    %1637 = vmatpush1.msra.mxu0 0.0
    %1638 = vmatprep.subr.mxu0 0.0
    %1639 = vmatpush1.msra.mxu0 0.0
    %1640 = vmatprep.subr.mxu0 0.0
    %1641 = vmatpush1.msra.mxu0 0.0
    %1642 = vmatprep.subr.mxu0 0.0
    %1643 = vmatpush1.msra.mxu0 0.0
    %1644 = vmatprep.subr.mxu0 0.0
    %1645 = vmatpush1.msra.mxu0 %v843
    %1646 = vmatprep.subr.mxu0 0.0
    %1647 = vmatpush1.msra.mxu0 %v842
    %1648 = vmatprep.subr.mxu0 0.0
    %1649 = vmatpush1.msra.mxu0 %v841
    %1650 = vmatprep.subr.mxu0 0.0
    %1651 = vmatpush1.msra.mxu0 %v840
    %1652 = vmatprep.subr.mxu0 0.0
    %1653 = vmatpush2.msra.mxu0 0.0
    %1654 = vmatprep.subr.mxu0 0.0
    %1655 = vmatpush2.msra.mxu0 0.0
    %1656 = vmatprep.subr.mxu0 0.0
    %1657 = vmatpush2.msra.mxu0 0.0
    %1658 = vmatprep.subr.mxu0 0.0
    %1659 = vmatpush2.msra.mxu0 0.0
    %1660 = vmatprep.subr.mxu0 0.0
    %1661 = vmatpush2.msra.mxu0 0.0
    %1662 = vmatprep.subr.mxu0 0.0
    %1663 = vmatpush2.msra.mxu0 0.0
    %1664 = vmatprep.subr.mxu0 0.0
    %1665 = vmatpush2.msra.mxu0 0.0
    %1666 = vmatprep.subr.mxu0 0.0
    %1667 = vmatpush2.msra.mxu0 0.0
    %1668 = vmatprep.subr.mxu0 0.0
    %1669 = vmatpush2.msra.mxu0 0.0
    %1670 = vmatprep.subr.mxu0 0.0
    %1671 = vmatpush2.msra.mxu0 0.0
    %1672 = vmatprep.subr.mxu0 0.0
    %1673 = vmatpush2.msra.mxu0 0.0
    %1674 = vmatprep.subr.mxu0 0.0
    %1675 = vmatpush2.msra.mxu0 0.0
    %1676 = vmatprep.subr.mxu0 0.0
    %1677 = vmatpush2.msra.mxu0 0.0
    %1678 = vmatprep.subr.mxu0 0.0
    %1679 = vmatpush2.msra.mxu0 0.0
    %1680 = vmatprep.subr.mxu0 0.0
    %1681 = vmatpush2.msra.mxu0 0.0
    %1682 = vmatprep.subr.mxu0 0.0
    %1683 = vmatpush2.msra.mxu0 0.0
    %1684 = vmatprep.mubr.f32.mxu0 0.0
    %1685 = vmatmul.mubr.f32.gmra.mxu0 %v1618
    %v1686 = vpop.f32.mrf.mxu0
    %v1687 = vadd.f32 0.0, %v1686
    %v1688 = vpop.f32.mrf.mxu0
    %1689 = vdwg.mxu0
    %v1691 = vrot.slane %v1687, 2
    %v1693 = vadd.f32 %v839, %v1691
    %v1694 = vxor.u32 %v1693, 2147483648
    %v1695 = vmul.f32 %v1694, 1.442695
    %v1696 = vpow.pop %v1695
    %v1697 = vadd.f32 %v1696, 1.0
    %v1698 = vrcp.pop %v1697
    %v1699 = vmul.f32 1.0, %v1698
    %v1700 = vtanh.pop %v1693
    %v1702 = vrot.slane %v1603, 6
    %v1704 = vmul.f32 %v1699, %v1702
    %1706 = vrot.lane.b32.xlu0 %v1700, 64
    %v1707 = vpop.permute.xlu0 %1706
    %v1709 = vmul.f32 %v1699, %v1707
    %1711 = vrot.lane.b32.xlu0 %v1709, 32
    %v1712 = vpop.permute.xlu0 %1711
    %v1714 = vadd.f32 %v1704, %v1712
    %v1715 = vtanh.pop %v1714
    %1717 = vrot.lane.b32.xlu0 %v1715, 64
    %v1718 = vpop.permute.xlu0 %1717
    %v1720 = vmul.f32 %v1699, %v1718
    %1722 = vrot.lane.b32.xlu0 %v1720, 32
    %v1723 = vpop.permute.xlu0 %1722
    %1725 = vst.msk [vmem:[#allocation2 + $0x8] sm:$0xc0] %vm1286, %v1723
    %v1726 = vld [vmem:[#allocation2] sm:$0xff]
    %v1727 = vld [vmem:[#allocation2 + $0x8] sm:$0xff]
    %v1728 = vld [vmem:[#allocation14] sm:$0xff]
    %v1729 = vld [vmem:[#allocation14 + $0x8] sm:$0xff]
    %v1730 = vld [vmem:[#allocation14 + $0x10] sm:$0xff]
    %v1731 = vld [vmem:[#allocation14 + $0x18] sm:$0xff]
    %v1732 = vld [vmem:[%s10] sm:$0x1]
    %v1734 = vlaneseq
    %v1735 = vshrl.u32 %v1734, 7
    %v1736 = vsub.s32 0, %v1735
    %v1737 = vrot.slane %v1732, %v1736
    %v1740 = vsel %vm846, %v1726, 0
    %v1743 = vsel %vm846, %v1727, 0
    %1745 = vmatprep.subr.mxu0 0.0
    %1746 = vmatpush1.msra.mxu0 0.0
    %1747 = vmatprep.subr.mxu0 0.0
    %1748 = vmatpush1.msra.mxu0 0.0
    %1749 = vmatprep.subr.mxu0 0.0
    %1750 = vmatpush1.msra.mxu0 0.0
    %1751 = vmatprep.subr.mxu0 0.0
    %1752 = vmatpush1.msra.mxu0 0.0
    %1753 = vmatprep.subr.mxu0 0.0
    %1754 = vmatpush1.msra.mxu0 0.0
    %1755 = vmatprep.subr.mxu0 0.0
    %1756 = vmatpush1.msra.mxu0 0.0
    %1757 = vmatprep.subr.mxu0 0.0
    %1758 = vmatpush1.msra.mxu0 0.0
    %1759 = vmatprep.subr.mxu0 0.0
    %1760 = vmatpush1.msra.mxu0 0.0
    %1761 = vmatprep.subr.mxu0 0.0
    %1762 = vmatpush1.msra.mxu0 0.0
    %1763 = vmatprep.subr.mxu0 0.0
    %1764 = vmatpush1.msra.mxu0 0.0
    %1765 = vmatprep.subr.mxu0 0.0
    %1766 = vmatpush1.msra.mxu0 0.0
    %1767 = vmatprep.subr.mxu0 0.0
    %1768 = vmatpush1.msra.mxu0 0.0
    %1769 = vmatprep.subr.mxu0 0.0
    %1770 = vmatpush1.msra.mxu0 %v1731
    %1771 = vmatprep.subr.mxu0 0.0
    %1772 = vmatpush1.msra.mxu0 %v1730
    %1773 = vmatprep.subr.mxu0 0.0
    %1774 = vmatpush1.msra.mxu0 %v1729
    %1775 = vmatprep.subr.mxu0 0.0
    %1776 = vmatpush1.msra.mxu0 %v1728
    %1777 = vmatprep.subr.mxu0 0.0
    %1778 = vmatpush2.msra.mxu0 0.0
    %1779 = vmatprep.subr.mxu0 0.0
    %1780 = vmatpush2.msra.mxu0 0.0
    %1781 = vmatprep.subr.mxu0 0.0
    %1782 = vmatpush2.msra.mxu0 0.0
    %1783 = vmatprep.subr.mxu0 0.0
    %1784 = vmatpush2.msra.mxu0 0.0
    %1785 = vmatprep.subr.mxu0 0.0
    %1786 = vmatpush2.msra.mxu0 0.0
    %1787 = vmatprep.subr.mxu0 0.0
    %1788 = vmatpush2.msra.mxu0 0.0
    %1789 = vmatprep.subr.mxu0 0.0
    %1790 = vmatpush2.msra.mxu0 0.0
    %1791 = vmatprep.subr.mxu0 0.0
    %1792 = vmatpush2.msra.mxu0 0.0
    %1793 = vmatprep.subr.mxu0 0.0
    %1794 = vmatpush2.msra.mxu0 0.0
    %1795 = vmatprep.subr.mxu0 0.0
    %1796 = vmatpush2.msra.mxu0 0.0
    %1797 = vmatprep.subr.mxu0 0.0
    %1798 = vmatpush2.msra.mxu0 0.0
    %1799 = vmatprep.subr.mxu0 0.0
    %1800 = vmatpush2.msra.mxu0 0.0
    %1801 = vmatprep.subr.mxu0 0.0
    %1802 = vmatpush2.msra.mxu0 0.0
    %1803 = vmatprep.subr.mxu0 0.0
    %1804 = vmatpush2.msra.mxu0 0.0
    %1805 = vmatprep.subr.mxu0 0.0
    %1806 = vmatpush2.msra.mxu0 0.0
    %1807 = vmatprep.subr.mxu0 0.0
    %1808 = vmatpush2.msra.mxu0 0.0
    %1809 = vmatprep.mubr.f32.mxu0 0.0
    %1810 = vmatmul.mubr.f32.gmra.mxu0 %v1740
    %v1811 = vpop.f32.mrf.mxu0
    %v1812 = vadd.f32 %v1737, %v1811
    %v1813 = vpop.f32.mrf.mxu0
    %1814 = vmatprep.mubr.f32.mxu0 0.0
    %1815 = vmatmul.mubr.f32.gmra.mxu0 %v1743
    %v1816 = vpop.f32.mrf.mxu0
    %v1817 = vadd.f32 %v1737, %v1816
    %v1818 = vpop.f32.mrf.mxu0
    %1819 = vdwg.mxu0
    %v1820 = vld [vmem:[#allocation15] sm:$0xff]
    %v1821 = vld [vmem:[#allocation15 + $0x8] sm:$0xff]
    %v1822 = vld [vmem:[#allocation15 + $0x10] sm:$0xff]
    %v1823 = vld [vmem:[#allocation15 + $0x18] sm:$0xff]
    %s1824 = scalar_lea.vmem %s13, 2
    %v1825 = vld [vmem:[%s1824] sm:$0x3]
    %s1826 = scalar_lea.vmem %s14, 2
    %v1827 = vld [vmem:[%s1826] sm:$0x3]
    %v1829 = vsel %vm846, %v1825, 0
    %1831 = vmatprep.subr.mxu0 0.0
    %1832 = vmatpush1.msra.mxu0 0.0
    %1833 = vmatprep.subr.mxu0 0.0
    %1834 = vmatpush1.msra.mxu0 0.0
    %1835 = vmatprep.subr.mxu0 0.0
    %1836 = vmatpush1.msra.mxu0 0.0
    %1837 = vmatprep.subr.mxu0 0.0
    %1838 = vmatpush1.msra.mxu0 0.0
    %1839 = vmatprep.subr.mxu0 0.0
    %1840 = vmatpush1.msra.mxu0 0.0
    %1841 = vmatprep.subr.mxu0 0.0
    %1842 = vmatpush1.msra.mxu0 0.0
    %1843 = vmatprep.subr.mxu0 0.0
    %1844 = vmatpush1.msra.mxu0 0.0
    %1845 = vmatprep.subr.mxu0 0.0
    %1846 = vmatpush1.msra.mxu0 0.0
    %1847 = vmatprep.subr.mxu0 0.0
    %1848 = vmatpush1.msra.mxu0 0.0
    %1849 = vmatprep.subr.mxu0 0.0
    %1850 = vmatpush1.msra.mxu0 0.0
    %1851 = vmatprep.subr.mxu0 0.0
    %1852 = vmatpush1.msra.mxu0 0.0
    %1853 = vmatprep.subr.mxu0 0.0
    %1854 = vmatpush1.msra.mxu0 0.0
    %1855 = vmatprep.subr.mxu0 0.0
    %1856 = vmatpush1.msra.mxu0 %v1823
    %1857 = vmatprep.subr.mxu0 0.0
    %1858 = vmatpush1.msra.mxu0 %v1822
    %1859 = vmatprep.subr.mxu0 0.0
    %1860 = vmatpush1.msra.mxu0 %v1821
    %1861 = vmatprep.subr.mxu0 0.0
    %1862 = vmatpush1.msra.mxu0 %v1820
    %1863 = vmatprep.subr.mxu0 0.0
    %1864 = vmatpush2.msra.mxu0 0.0
    %1865 = vmatprep.subr.mxu0 0.0
    %1866 = vmatpush2.msra.mxu0 0.0
    %1867 = vmatprep.subr.mxu0 0.0
    %1868 = vmatpush2.msra.mxu0 0.0
    %1869 = vmatprep.subr.mxu0 0.0
    %1870 = vmatpush2.msra.mxu0 0.0
    %1871 = vmatprep.subr.mxu0 0.0
    %1872 = vmatpush2.msra.mxu0 0.0
    %1873 = vmatprep.subr.mxu0 0.0
    %1874 = vmatpush2.msra.mxu0 0.0
    %1875 = vmatprep.subr.mxu0 0.0
    %1876 = vmatpush2.msra.mxu0 0.0
    %1877 = vmatprep.subr.mxu0 0.0
    %1878 = vmatpush2.msra.mxu0 0.0
    %1879 = vmatprep.subr.mxu0 0.0
    %1880 = vmatpush2.msra.mxu0 0.0
    %1881 = vmatprep.subr.mxu0 0.0
    %1882 = vmatpush2.msra.mxu0 0.0
    %1883 = vmatprep.subr.mxu0 0.0
    %1884 = vmatpush2.msra.mxu0 0.0
    %1885 = vmatprep.subr.mxu0 0.0
    %1886 = vmatpush2.msra.mxu0 0.0
    %1887 = vmatprep.subr.mxu0 0.0
    %1888 = vmatpush2.msra.mxu0 0.0
    %1889 = vmatprep.subr.mxu0 0.0
    %1890 = vmatpush2.msra.mxu0 0.0
    %1891 = vmatprep.subr.mxu0 0.0
    %1892 = vmatpush2.msra.mxu0 0.0
    %1893 = vmatprep.subr.mxu0 0.0
    %1894 = vmatpush2.msra.mxu0 0.0
    %1895 = vmatprep.mubr.f32.mxu0 0.0
    %1896 = vmatmul.mubr.f32.gmra.mxu0 %v1829
    %v1897 = vpop.f32.mrf.mxu0
    %v1898 = vadd.f32 0.0, %v1897
    %v1899 = vpop.f32.mrf.mxu0
    %1900 = vdwg.mxu0
    %v1901 = vadd.f32 %v1812, %v1898
    %v1902 = vxor.u32 %v1901, 2147483648
    %v1903 = vmul.f32 %v1902, 1.442695
    %v1904 = vpow.pop %v1903
    %v1905 = vadd.f32 %v1904, 1.0
    %v1906 = vrcp.pop %v1905
    %v1907 = vmul.f32 1.0, %v1906
    %v1908 = vtanh.pop %v1901
    %1910 = vrot.lane.b32.xlu0 %v1827, 32
    %v1911 = vpop.permute.xlu0 %1910
    %v1913 = vmul.f32 %v1907, %v1911
    %1915 = vrot.lane.b32.xlu0 %v1908, 64
    %v1916 = vpop.permute.xlu0 %1915
    %v1918 = vmul.f32 %v1907, %v1916
    %1920 = vrot.lane.b32.xlu0 %v1918, 32
    %v1921 = vpop.permute.xlu0 %1920
    %v1923 = vadd.f32 %v1913, %v1921
    %v1924 = vtanh.pop %v1923
    %1926 = vrot.lane.b32.xlu0 %v1924, 64
    %v1927 = vpop.permute.xlu0 %1926
    %v1929 = vmul.f32 %v1907, %v1927
    %1931 = vrot.lane.b32.xlu0 %v1929, 32
    %v1932 = vpop.permute.xlu0 %1931
    %1934 = vst.msk [vmem:[#allocation2] sm:$0x3] %vm953, %v1932
    %v1935 = vsel %vm846, %v1932, 0
    %1937 = vmatprep.subr.mxu0 0.0
    %1938 = vmatpush1.msra.mxu0 0.0
    %1939 = vmatprep.subr.mxu0 0.0
    %1940 = vmatpush1.msra.mxu0 0.0
    %1941 = vmatprep.subr.mxu0 0.0
    %1942 = vmatpush1.msra.mxu0 0.0
    %1943 = vmatprep.subr.mxu0 0.0
    %1944 = vmatpush1.msra.mxu0 0.0
    %1945 = vmatprep.subr.mxu0 0.0
    %1946 = vmatpush1.msra.mxu0 0.0
    %1947 = vmatprep.subr.mxu0 0.0
    %1948 = vmatpush1.msra.mxu0 0.0
    %1949 = vmatprep.subr.mxu0 0.0
    %1950 = vmatpush1.msra.mxu0 0.0
    %1951 = vmatprep.subr.mxu0 0.0
    %1952 = vmatpush1.msra.mxu0 0.0
    %1953 = vmatprep.subr.mxu0 0.0
    %1954 = vmatpush1.msra.mxu0 0.0
    %1955 = vmatprep.subr.mxu0 0.0
    %1956 = vmatpush1.msra.mxu0 0.0
    %1957 = vmatprep.subr.mxu0 0.0
    %1958 = vmatpush1.msra.mxu0 0.0
    %1959 = vmatprep.subr.mxu0 0.0
    %1960 = vmatpush1.msra.mxu0 0.0
    %1961 = vmatprep.subr.mxu0 0.0
    %1962 = vmatpush1.msra.mxu0 %v1823
    %1963 = vmatprep.subr.mxu0 0.0
    %1964 = vmatpush1.msra.mxu0 %v1822
    %1965 = vmatprep.subr.mxu0 0.0
    %1966 = vmatpush1.msra.mxu0 %v1821
    %1967 = vmatprep.subr.mxu0 0.0
    %1968 = vmatpush1.msra.mxu0 %v1820
    %1969 = vmatprep.subr.mxu0 0.0
    %1970 = vmatpush2.msra.mxu0 0.0
    %1971 = vmatprep.subr.mxu0 0.0
    %1972 = vmatpush2.msra.mxu0 0.0
    %1973 = vmatprep.subr.mxu0 0.0
    %1974 = vmatpush2.msra.mxu0 0.0
    %1975 = vmatprep.subr.mxu0 0.0
    %1976 = vmatpush2.msra.mxu0 0.0
    %1977 = vmatprep.subr.mxu0 0.0
    %1978 = vmatpush2.msra.mxu0 0.0
    %1979 = vmatprep.subr.mxu0 0.0
    %1980 = vmatpush2.msra.mxu0 0.0
    %1981 = vmatprep.subr.mxu0 0.0
    %1982 = vmatpush2.msra.mxu0 0.0
    %1983 = vmatprep.subr.mxu0 0.0
    %1984 = vmatpush2.msra.mxu0 0.0
    %1985 = vmatprep.subr.mxu0 0.0
    %1986 = vmatpush2.msra.mxu0 0.0
    %1987 = vmatprep.subr.mxu0 0.0
    %1988 = vmatpush2.msra.mxu0 0.0
    %1989 = vmatprep.subr.mxu0 0.0
    %1990 = vmatpush2.msra.mxu0 0.0
    %1991 = vmatprep.subr.mxu0 0.0
    %1992 = vmatpush2.msra.mxu0 0.0
    %1993 = vmatprep.subr.mxu0 0.0
    %1994 = vmatpush2.msra.mxu0 0.0
    %1995 = vmatprep.subr.mxu0 0.0
    %1996 = vmatpush2.msra.mxu0 0.0
    %1997 = vmatprep.subr.mxu0 0.0
    %1998 = vmatpush2.msra.mxu0 0.0
    %1999 = vmatprep.subr.mxu0 0.0
    %2000 = vmatpush2.msra.mxu0 0.0
    %2001 = vmatprep.mubr.f32.mxu0 0.0
    %2002 = vmatmul.mubr.f32.gmra.mxu0 %v1935
    %v2003 = vpop.f32.mrf.mxu0
    %v2004 = vadd.f32 0.0, %v2003
    %v2005 = vpop.f32.mrf.mxu0
    %2006 = vdwg.mxu0
    %v2008 = vrot.slane %v2004, 6
    %v2010 = vadd.f32 %v1812, %v2008
    %v2011 = vxor.u32 %v2010, 2147483648
    %v2012 = vmul.f32 %v2011, 1.442695
    %v2013 = vpow.pop %v2012
    %v2014 = vadd.f32 %v2013, 1.0
    %v2015 = vrcp.pop %v2014
    %v2016 = vmul.f32 1.0, %v2015
    %v2017 = vtanh.pop %v2010
    %v2019 = vrot.slane %v1923, 6
    %v2021 = vmul.f32 %v2016, %v2019
    %2023 = vrot.lane.b32.xlu0 %v2017, 64
    %v2024 = vpop.permute.xlu0 %2023
    %v2026 = vmul.f32 %v2016, %v2024
    %2028 = vrot.lane.b32.xlu0 %v2026, 32
    %v2029 = vpop.permute.xlu0 %2028
    %v2031 = vadd.f32 %v2021, %v2029
    %v2032 = vtanh.pop %v2031
    %2034 = vrot.lane.b32.xlu0 %v2032, 64
    %v2035 = vpop.permute.xlu0 %2034
    %v2037 = vmul.f32 %v2016, %v2035
    %2039 = vrot.lane.b32.xlu0 %v2037, 32
    %v2040 = vpop.permute.xlu0 %2039
    %2042 = vst.msk [vmem:[#allocation2] sm:$0xc] %vm1062, %v2040
    %v2043 = vrot.slane %v2037, 2
    %2044 = vrot.lane.b32.xlu0 %v2043, 32
    %v2045 = vpop.permute.xlu0 %2044
    %v2046 = vsel %vm846, %v2045, 0
    %2048 = vmatprep.subr.mxu0 0.0
    %2049 = vmatpush1.msra.mxu0 0.0
    %2050 = vmatprep.subr.mxu0 0.0
    %2051 = vmatpush1.msra.mxu0 0.0
    %2052 = vmatprep.subr.mxu0 0.0
    %2053 = vmatpush1.msra.mxu0 0.0
    %2054 = vmatprep.subr.mxu0 0.0
    %2055 = vmatpush1.msra.mxu0 0.0
    %2056 = vmatprep.subr.mxu0 0.0
    %2057 = vmatpush1.msra.mxu0 0.0
    %2058 = vmatprep.subr.mxu0 0.0
    %2059 = vmatpush1.msra.mxu0 0.0
    %2060 = vmatprep.subr.mxu0 0.0
    %2061 = vmatpush1.msra.mxu0 0.0
    %2062 = vmatprep.subr.mxu0 0.0
    %2063 = vmatpush1.msra.mxu0 0.0
    %2064 = vmatprep.subr.mxu0 0.0
    %2065 = vmatpush1.msra.mxu0 0.0
    %2066 = vmatprep.subr.mxu0 0.0
    %2067 = vmatpush1.msra.mxu0 0.0
    %2068 = vmatprep.subr.mxu0 0.0
    %2069 = vmatpush1.msra.mxu0 0.0
    %2070 = vmatprep.subr.mxu0 0.0
    %2071 = vmatpush1.msra.mxu0 0.0
    %2072 = vmatprep.subr.mxu0 0.0
    %2073 = vmatpush1.msra.mxu0 %v1823
    %2074 = vmatprep.subr.mxu0 0.0
    %2075 = vmatpush1.msra.mxu0 %v1822
    %2076 = vmatprep.subr.mxu0 0.0
    %2077 = vmatpush1.msra.mxu0 %v1821
    %2078 = vmatprep.subr.mxu0 0.0
    %2079 = vmatpush1.msra.mxu0 %v1820
    %2080 = vmatprep.subr.mxu0 0.0
    %2081 = vmatpush2.msra.mxu0 0.0
    %2082 = vmatprep.subr.mxu0 0.0
    %2083 = vmatpush2.msra.mxu0 0.0
    %2084 = vmatprep.subr.mxu0 0.0
    %2085 = vmatpush2.msra.mxu0 0.0
    %2086 = vmatprep.subr.mxu0 0.0
    %2087 = vmatpush2.msra.mxu0 0.0
    %2088 = vmatprep.subr.mxu0 0.0
    %2089 = vmatpush2.msra.mxu0 0.0
    %2090 = vmatprep.subr.mxu0 0.0
    %2091 = vmatpush2.msra.mxu0 0.0
    %2092 = vmatprep.subr.mxu0 0.0
    %2093 = vmatpush2.msra.mxu0 0.0
    %2094 = vmatprep.subr.mxu0 0.0
    %2095 = vmatpush2.msra.mxu0 0.0
    %2096 = vmatprep.subr.mxu0 0.0
    %2097 = vmatpush2.msra.mxu0 0.0
    %2098 = vmatprep.subr.mxu0 0.0
    %2099 = vmatpush2.msra.mxu0 0.0
    %2100 = vmatprep.subr.mxu0 0.0
    %2101 = vmatpush2.msra.mxu0 0.0
    %2102 = vmatprep.subr.mxu0 0.0
    %2103 = vmatpush2.msra.mxu0 0.0
    %2104 = vmatprep.subr.mxu0 0.0
    %2105 = vmatpush2.msra.mxu0 0.0
    %2106 = vmatprep.subr.mxu0 0.0
    %2107 = vmatpush2.msra.mxu0 0.0
    %2108 = vmatprep.subr.mxu0 0.0
    %2109 = vmatpush2.msra.mxu0 0.0
    %2110 = vmatprep.subr.mxu0 0.0
    %2111 = vmatpush2.msra.mxu0 0.0
    %2112 = vmatprep.mubr.f32.mxu0 0.0
    %2113 = vmatmul.mubr.f32.gmra.mxu0 %v2046
    %v2114 = vpop.f32.mrf.mxu0
    %v2115 = vadd.f32 0.0, %v2114
    %v2116 = vpop.f32.mrf.mxu0
    %2117 = vdwg.mxu0
    %v2119 = vrot.slane %v2115, 4
    %v2121 = vadd.f32 %v1812, %v2119
    %v2122 = vxor.u32 %v2121, 2147483648
    %v2123 = vmul.f32 %v2122, 1.442695
    %v2124 = vpow.pop %v2123
    %v2125 = vadd.f32 %v2124, 1.0
    %v2126 = vrcp.pop %v2125
    %v2127 = vmul.f32 1.0, %v2126
    %v2128 = vtanh.pop %v2121
    %v2130 = vrot.slane %v2031, 6
    %v2132 = vmul.f32 %v2127, %v2130
    %2134 = vrot.lane.b32.xlu0 %v2128, 64
    %v2135 = vpop.permute.xlu0 %2134
    %v2137 = vmul.f32 %v2127, %v2135
    %2139 = vrot.lane.b32.xlu0 %v2137, 32
    %v2140 = vpop.permute.xlu0 %2139
    %v2142 = vadd.f32 %v2132, %v2140
    %v2143 = vtanh.pop %v2142
    %2145 = vrot.lane.b32.xlu0 %v2143, 64
    %v2146 = vpop.permute.xlu0 %2145
    %v2148 = vmul.f32 %v2127, %v2146
    %2150 = vrot.lane.b32.xlu0 %v2148, 32
    %v2151 = vpop.permute.xlu0 %2150
    %2153 = vst.msk [vmem:[#allocation2] sm:$0x30] %vm1174, %v2151
    %v2154 = vrot.slane %v2148, 4
    %2155 = vrot.lane.b32.xlu0 %v2154, 32
    %v2156 = vpop.permute.xlu0 %2155
    %v2157 = vsel %vm846, %v2156, 0
    %2159 = vmatprep.subr.mxu0 0.0
    %2160 = vmatpush1.msra.mxu0 0.0
    %2161 = vmatprep.subr.mxu0 0.0
    %2162 = vmatpush1.msra.mxu0 0.0
    %2163 = vmatprep.subr.mxu0 0.0
    %2164 = vmatpush1.msra.mxu0 0.0
    %2165 = vmatprep.subr.mxu0 0.0
    %2166 = vmatpush1.msra.mxu0 0.0
    %2167 = vmatprep.subr.mxu0 0.0
    %2168 = vmatpush1.msra.mxu0 0.0
    %2169 = vmatprep.subr.mxu0 0.0
    %2170 = vmatpush1.msra.mxu0 0.0
    %2171 = vmatprep.subr.mxu0 0.0
    %2172 = vmatpush1.msra.mxu0 0.0
    %2173 = vmatprep.subr.mxu0 0.0
    %2174 = vmatpush1.msra.mxu0 0.0
    %2175 = vmatprep.subr.mxu0 0.0
    %2176 = vmatpush1.msra.mxu0 0.0
    %2177 = vmatprep.subr.mxu0 0.0
    %2178 = vmatpush1.msra.mxu0 0.0
    %2179 = vmatprep.subr.mxu0 0.0
    %2180 = vmatpush1.msra.mxu0 0.0
    %2181 = vmatprep.subr.mxu0 0.0
    %2182 = vmatpush1.msra.mxu0 0.0
    %2183 = vmatprep.subr.mxu0 0.0
    %2184 = vmatpush1.msra.mxu0 %v1823
    %2185 = vmatprep.subr.mxu0 0.0
    %2186 = vmatpush1.msra.mxu0 %v1822
    %2187 = vmatprep.subr.mxu0 0.0
    %2188 = vmatpush1.msra.mxu0 %v1821
    %2189 = vmatprep.subr.mxu0 0.0
    %2190 = vmatpush1.msra.mxu0 %v1820
    %2191 = vmatprep.subr.mxu0 0.0
    %2192 = vmatpush2.msra.mxu0 0.0
    %2193 = vmatprep.subr.mxu0 0.0
    %2194 = vmatpush2.msra.mxu0 0.0
    %2195 = vmatprep.subr.mxu0 0.0
    %2196 = vmatpush2.msra.mxu0 0.0
    %2197 = vmatprep.subr.mxu0 0.0
    %2198 = vmatpush2.msra.mxu0 0.0
    %2199 = vmatprep.subr.mxu0 0.0
    %2200 = vmatpush2.msra.mxu0 0.0
    %2201 = vmatprep.subr.mxu0 0.0
    %2202 = vmatpush2.msra.mxu0 0.0
    %2203 = vmatprep.subr.mxu0 0.0
    %2204 = vmatpush2.msra.mxu0 0.0
    %2205 = vmatprep.subr.mxu0 0.0
    %2206 = vmatpush2.msra.mxu0 0.0
    %2207 = vmatprep.subr.mxu0 0.0
    %2208 = vmatpush2.msra.mxu0 0.0
    %2209 = vmatprep.subr.mxu0 0.0
    %2210 = vmatpush2.msra.mxu0 0.0
    %2211 = vmatprep.subr.mxu0 0.0
    %2212 = vmatpush2.msra.mxu0 0.0
    %2213 = vmatprep.subr.mxu0 0.0
    %2214 = vmatpush2.msra.mxu0 0.0
    %2215 = vmatprep.subr.mxu0 0.0
    %2216 = vmatpush2.msra.mxu0 0.0
    %2217 = vmatprep.subr.mxu0 0.0
    %2218 = vmatpush2.msra.mxu0 0.0
    %2219 = vmatprep.subr.mxu0 0.0
    %2220 = vmatpush2.msra.mxu0 0.0
    %2221 = vmatprep.subr.mxu0 0.0
    %2222 = vmatpush2.msra.mxu0 0.0
    %2223 = vmatprep.mubr.f32.mxu0 0.0
    %2224 = vmatmul.mubr.f32.gmra.mxu0 %v2157
    %v2225 = vpop.f32.mrf.mxu0
    %v2226 = vadd.f32 0.0, %v2225
    %v2227 = vpop.f32.mrf.mxu0
    %2228 = vdwg.mxu0
    %v2230 = vrot.slane %v2226, 2
    %v2232 = vadd.f32 %v1812, %v2230
    %v2233 = vxor.u32 %v2232, 2147483648
    %v2234 = vmul.f32 %v2233, 1.442695
    %v2235 = vpow.pop %v2234
    %v2236 = vadd.f32 %v2235, 1.0
    %v2237 = vrcp.pop %v2236
    %v2238 = vmul.f32 1.0, %v2237
    %v2239 = vtanh.pop %v2232
    %v2241 = vrot.slane %v2142, 6
    %v2243 = vmul.f32 %v2238, %v2241
    %2245 = vrot.lane.b32.xlu0 %v2239, 64
    %v2246 = vpop.permute.xlu0 %2245
    %v2248 = vmul.f32 %v2238, %v2246
    %2250 = vrot.lane.b32.xlu0 %v2248, 32
    %v2251 = vpop.permute.xlu0 %2250
    %v2253 = vadd.f32 %v2243, %v2251
    %v2254 = vtanh.pop %v2253
    %2256 = vrot.lane.b32.xlu0 %v2254, 64
    %v2257 = vpop.permute.xlu0 %2256
    %v2259 = vmul.f32 %v2238, %v2257
    %2261 = vrot.lane.b32.xlu0 %v2259, 32
    %v2262 = vpop.permute.xlu0 %2261
    %2264 = vst.msk [vmem:[#allocation2] sm:$0xc0] %vm1286, %v2262
    %v2265 = vrot.slane %v2259, 6
    %2266 = vrot.lane.b32.xlu0 %v2265, 32
    %v2267 = vpop.permute.xlu0 %2266
    %v2268 = vsel %vm846, %v2267, 0
    %2270 = vmatprep.subr.mxu0 0.0
    %2271 = vmatpush1.msra.mxu0 0.0
    %2272 = vmatprep.subr.mxu0 0.0
    %2273 = vmatpush1.msra.mxu0 0.0
    %2274 = vmatprep.subr.mxu0 0.0
    %2275 = vmatpush1.msra.mxu0 0.0
    %2276 = vmatprep.subr.mxu0 0.0
    %2277 = vmatpush1.msra.mxu0 0.0
    %2278 = vmatprep.subr.mxu0 0.0
    %2279 = vmatpush1.msra.mxu0 0.0
    %2280 = vmatprep.subr.mxu0 0.0
    %2281 = vmatpush1.msra.mxu0 0.0
    %2282 = vmatprep.subr.mxu0 0.0
    %2283 = vmatpush1.msra.mxu0 0.0
    %2284 = vmatprep.subr.mxu0 0.0
    %2285 = vmatpush1.msra.mxu0 0.0
    %2286 = vmatprep.subr.mxu0 0.0
    %2287 = vmatpush1.msra.mxu0 0.0
    %2288 = vmatprep.subr.mxu0 0.0
    %2289 = vmatpush1.msra.mxu0 0.0
    %2290 = vmatprep.subr.mxu0 0.0
    %2291 = vmatpush1.msra.mxu0 0.0
    %2292 = vmatprep.subr.mxu0 0.0
    %2293 = vmatpush1.msra.mxu0 0.0
    %2294 = vmatprep.subr.mxu0 0.0
    %2295 = vmatpush1.msra.mxu0 %v1823
    %2296 = vmatprep.subr.mxu0 0.0
    %2297 = vmatpush1.msra.mxu0 %v1822
    %2298 = vmatprep.subr.mxu0 0.0
    %2299 = vmatpush1.msra.mxu0 %v1821
    %2300 = vmatprep.subr.mxu0 0.0
    %2301 = vmatpush1.msra.mxu0 %v1820
    %2302 = vmatprep.subr.mxu0 0.0
    %2303 = vmatpush2.msra.mxu0 0.0
    %2304 = vmatprep.subr.mxu0 0.0
    %2305 = vmatpush2.msra.mxu0 0.0
    %2306 = vmatprep.subr.mxu0 0.0
    %2307 = vmatpush2.msra.mxu0 0.0
    %2308 = vmatprep.subr.mxu0 0.0
    %2309 = vmatpush2.msra.mxu0 0.0
    %2310 = vmatprep.subr.mxu0 0.0
    %2311 = vmatpush2.msra.mxu0 0.0
    %2312 = vmatprep.subr.mxu0 0.0
    %2313 = vmatpush2.msra.mxu0 0.0
    %2314 = vmatprep.subr.mxu0 0.0
    %2315 = vmatpush2.msra.mxu0 0.0
    %2316 = vmatprep.subr.mxu0 0.0
    %2317 = vmatpush2.msra.mxu0 0.0
    %2318 = vmatprep.subr.mxu0 0.0
    %2319 = vmatpush2.msra.mxu0 0.0
    %2320 = vmatprep.subr.mxu0 0.0
    %2321 = vmatpush2.msra.mxu0 0.0
    %2322 = vmatprep.subr.mxu0 0.0
    %2323 = vmatpush2.msra.mxu0 0.0
    %2324 = vmatprep.subr.mxu0 0.0
    %2325 = vmatpush2.msra.mxu0 0.0
    %2326 = vmatprep.subr.mxu0 0.0
    %2327 = vmatpush2.msra.mxu0 0.0
    %2328 = vmatprep.subr.mxu0 0.0
    %2329 = vmatpush2.msra.mxu0 0.0
    %2330 = vmatprep.subr.mxu0 0.0
    %2331 = vmatpush2.msra.mxu0 0.0
    %2332 = vmatprep.subr.mxu0 0.0
    %2333 = vmatpush2.msra.mxu0 0.0
    %2334 = vmatprep.mubr.f32.mxu0 0.0
    %2335 = vmatmul.mubr.f32.gmra.mxu0 %v2268
    %v2336 = vpop.f32.mrf.mxu0
    %v2337 = vadd.f32 0.0, %v2336
    %v2338 = vpop.f32.mrf.mxu0
    %2339 = vdwg.mxu0
    %v2340 = vadd.f32 %v1817, %v2337
    %v2341 = vxor.u32 %v2340, 2147483648
    %v2342 = vmul.f32 %v2341, 1.442695
    %v2343 = vpow.pop %v2342
    %v2344 = vadd.f32 %v2343, 1.0
    %v2345 = vrcp.pop %v2344
    %v2346 = vmul.f32 1.0, %v2345
    %v2347 = vtanh.pop %v2340
    %v2349 = vrot.slane %v2253, 6
    %v2351 = vmul.f32 %v2346, %v2349
    %2353 = vrot.lane.b32.xlu0 %v2347, 64
    %v2354 = vpop.permute.xlu0 %2353
    %v2356 = vmul.f32 %v2346, %v2354
    %2358 = vrot.lane.b32.xlu0 %v2356, 32
    %v2359 = vpop.permute.xlu0 %2358
    %v2361 = vadd.f32 %v2351, %v2359
    %v2362 = vtanh.pop %v2361
    %2364 = vrot.lane.b32.xlu0 %v2362, 64
    %v2365 = vpop.permute.xlu0 %2364
    %v2367 = vmul.f32 %v2346, %v2365
    %2369 = vrot.lane.b32.xlu0 %v2367, 32
    %v2370 = vpop.permute.xlu0 %2369
    %2372 = vst.msk [vmem:[#allocation2 + $0x8] sm:$0x3] %vm953, %v2370
    %v2373 = vsel %vm846, %v2370, 0
    %2375 = vmatprep.subr.mxu0 0.0
    %2376 = vmatpush1.msra.mxu0 0.0
    %2377 = vmatprep.subr.mxu0 0.0
    %2378 = vmatpush1.msra.mxu0 0.0
    %2379 = vmatprep.subr.mxu0 0.0
    %2380 = vmatpush1.msra.mxu0 0.0
    %2381 = vmatprep.subr.mxu0 0.0
    %2382 = vmatpush1.msra.mxu0 0.0
    %2383 = vmatprep.subr.mxu0 0.0
    %2384 = vmatpush1.msra.mxu0 0.0
    %2385 = vmatprep.subr.mxu0 0.0
    %2386 = vmatpush1.msra.mxu0 0.0
    %2387 = vmatprep.subr.mxu0 0.0
    %2388 = vmatpush1.msra.mxu0 0.0
    %2389 = vmatprep.subr.mxu0 0.0
    %2390 = vmatpush1.msra.mxu0 0.0
    %2391 = vmatprep.subr.mxu0 0.0
    %2392 = vmatpush1.msra.mxu0 0.0
    %2393 = vmatprep.subr.mxu0 0.0
    %2394 = vmatpush1.msra.mxu0 0.0
    %2395 = vmatprep.subr.mxu0 0.0
    %2396 = vmatpush1.msra.mxu0 0.0
    %2397 = vmatprep.subr.mxu0 0.0
    %2398 = vmatpush1.msra.mxu0 0.0
    %2399 = vmatprep.subr.mxu0 0.0
    %2400 = vmatpush1.msra.mxu0 %v1823
    %2401 = vmatprep.subr.mxu0 0.0
    %2402 = vmatpush1.msra.mxu0 %v1822
    %2403 = vmatprep.subr.mxu0 0.0
    %2404 = vmatpush1.msra.mxu0 %v1821
    %2405 = vmatprep.subr.mxu0 0.0
    %2406 = vmatpush1.msra.mxu0 %v1820
    %2407 = vmatprep.subr.mxu0 0.0
    %2408 = vmatpush2.msra.mxu0 0.0
    %2409 = vmatprep.subr.mxu0 0.0
    %2410 = vmatpush2.msra.mxu0 0.0
    %2411 = vmatprep.subr.mxu0 0.0
    %2412 = vmatpush2.msra.mxu0 0.0
    %2413 = vmatprep.subr.mxu0 0.0
    %2414 = vmatpush2.msra.mxu0 0.0
    %2415 = vmatprep.subr.mxu0 0.0
    %2416 = vmatpush2.msra.mxu0 0.0
    %2417 = vmatprep.subr.mxu0 0.0
    %2418 = vmatpush2.msra.mxu0 0.0
    %2419 = vmatprep.subr.mxu0 0.0
    %2420 = vmatpush2.msra.mxu0 0.0
    %2421 = vmatprep.subr.mxu0 0.0
    %2422 = vmatpush2.msra.mxu0 0.0
    %2423 = vmatprep.subr.mxu0 0.0
    %2424 = vmatpush2.msra.mxu0 0.0
    %2425 = vmatprep.subr.mxu0 0.0
    %2426 = vmatpush2.msra.mxu0 0.0
    %2427 = vmatprep.subr.mxu0 0.0
    %2428 = vmatpush2.msra.mxu0 0.0
    %2429 = vmatprep.subr.mxu0 0.0
    %2430 = vmatpush2.msra.mxu0 0.0
    %2431 = vmatprep.subr.mxu0 0.0
    %2432 = vmatpush2.msra.mxu0 0.0
    %2433 = vmatprep.subr.mxu0 0.0
    %2434 = vmatpush2.msra.mxu0 0.0
    %2435 = vmatprep.subr.mxu0 0.0
    %2436 = vmatpush2.msra.mxu0 0.0
    %2437 = vmatprep.subr.mxu0 0.0
    %2438 = vmatpush2.msra.mxu0 0.0
    %2439 = vmatprep.mubr.f32.mxu0 0.0
    %2440 = vmatmul.mubr.f32.gmra.mxu0 %v2373
    %v2441 = vpop.f32.mrf.mxu0
    %v2442 = vadd.f32 0.0, %v2441
    %v2443 = vpop.f32.mrf.mxu0
    %2444 = vdwg.mxu0
    %v2446 = vrot.slane %v2442, 6
    %v2448 = vadd.f32 %v1817, %v2446
    %v2449 = vxor.u32 %v2448, 2147483648
    %v2450 = vmul.f32 %v2449, 1.442695
    %v2451 = vpow.pop %v2450
    %v2452 = vadd.f32 %v2451, 1.0
    %v2453 = vrcp.pop %v2452
    %v2454 = vmul.f32 1.0, %v2453
    %v2455 = vtanh.pop %v2448
    %v2457 = vrot.slane %v2361, 6
    %v2459 = vmul.f32 %v2454, %v2457
    %2461 = vrot.lane.b32.xlu0 %v2455, 64
    %v2462 = vpop.permute.xlu0 %2461
    %v2464 = vmul.f32 %v2454, %v2462
    %2466 = vrot.lane.b32.xlu0 %v2464, 32
    %v2467 = vpop.permute.xlu0 %2466
    %v2469 = vadd.f32 %v2459, %v2467
    %v2470 = vtanh.pop %v2469
    %2472 = vrot.lane.b32.xlu0 %v2470, 64
    %v2473 = vpop.permute.xlu0 %2472
    %v2475 = vmul.f32 %v2454, %v2473
    %2477 = vrot.lane.b32.xlu0 %v2475, 32
    %v2478 = vpop.permute.xlu0 %2477
    %2480 = vst.msk [vmem:[#allocation2 + $0x8] sm:$0xc] %vm1062, %v2478
    %v2481 = vrot.slane %v2475, 2
    %2482 = vrot.lane.b32.xlu0 %v2481, 32
    %v2483 = vpop.permute.xlu0 %2482
    %v2484 = vsel %vm846, %v2483, 0
    %2486 = vmatprep.subr.mxu0 0.0
    %2487 = vmatpush1.msra.mxu0 0.0
    %2488 = vmatprep.subr.mxu0 0.0
    %2489 = vmatpush1.msra.mxu0 0.0
    %2490 = vmatprep.subr.mxu0 0.0
    %2491 = vmatpush1.msra.mxu0 0.0
    %2492 = vmatprep.subr.mxu0 0.0
    %2493 = vmatpush1.msra.mxu0 0.0
    %2494 = vmatprep.subr.mxu0 0.0
    %2495 = vmatpush1.msra.mxu0 0.0
    %2496 = vmatprep.subr.mxu0 0.0
    %2497 = vmatpush1.msra.mxu0 0.0
    %2498 = vmatprep.subr.mxu0 0.0
    %2499 = vmatpush1.msra.mxu0 0.0
    %2500 = vmatprep.subr.mxu0 0.0
    %2501 = vmatpush1.msra.mxu0 0.0
    %2502 = vmatprep.subr.mxu0 0.0
    %2503 = vmatpush1.msra.mxu0 0.0
    %2504 = vmatprep.subr.mxu0 0.0
    %2505 = vmatpush1.msra.mxu0 0.0
    %2506 = vmatprep.subr.mxu0 0.0
    %2507 = vmatpush1.msra.mxu0 0.0
    %2508 = vmatprep.subr.mxu0 0.0
    %2509 = vmatpush1.msra.mxu0 0.0
    %2510 = vmatprep.subr.mxu0 0.0
    %2511 = vmatpush1.msra.mxu0 %v1823
    %2512 = vmatprep.subr.mxu0 0.0
    %2513 = vmatpush1.msra.mxu0 %v1822
    %2514 = vmatprep.subr.mxu0 0.0
    %2515 = vmatpush1.msra.mxu0 %v1821
    %2516 = vmatprep.subr.mxu0 0.0
    %2517 = vmatpush1.msra.mxu0 %v1820
    %2518 = vmatprep.subr.mxu0 0.0
    %2519 = vmatpush2.msra.mxu0 0.0
    %2520 = vmatprep.subr.mxu0 0.0
    %2521 = vmatpush2.msra.mxu0 0.0
    %2522 = vmatprep.subr.mxu0 0.0
    %2523 = vmatpush2.msra.mxu0 0.0
    %2524 = vmatprep.subr.mxu0 0.0
    %2525 = vmatpush2.msra.mxu0 0.0
    %2526 = vmatprep.subr.mxu0 0.0
    %2527 = vmatpush2.msra.mxu0 0.0
    %2528 = vmatprep.subr.mxu0 0.0
    %2529 = vmatpush2.msra.mxu0 0.0
    %2530 = vmatprep.subr.mxu0 0.0
    %2531 = vmatpush2.msra.mxu0 0.0
    %2532 = vmatprep.subr.mxu0 0.0
    %2533 = vmatpush2.msra.mxu0 0.0
    %2534 = vmatprep.subr.mxu0 0.0
    %2535 = vmatpush2.msra.mxu0 0.0
    %2536 = vmatprep.subr.mxu0 0.0
    %2537 = vmatpush2.msra.mxu0 0.0
    %2538 = vmatprep.subr.mxu0 0.0
    %2539 = vmatpush2.msra.mxu0 0.0
    %2540 = vmatprep.subr.mxu0 0.0
    %2541 = vmatpush2.msra.mxu0 0.0
    %2542 = vmatprep.subr.mxu0 0.0
    %2543 = vmatpush2.msra.mxu0 0.0
    %2544 = vmatprep.subr.mxu0 0.0
    %2545 = vmatpush2.msra.mxu0 0.0
    %2546 = vmatprep.subr.mxu0 0.0
    %2547 = vmatpush2.msra.mxu0 0.0
    %2548 = vmatprep.subr.mxu0 0.0
    %2549 = vmatpush2.msra.mxu0 0.0
    %2550 = vmatprep.mubr.f32.mxu0 0.0
    %2551 = vmatmul.mubr.f32.gmra.mxu0 %v2484
    %v2552 = vpop.f32.mrf.mxu0
    %v2553 = vadd.f32 0.0, %v2552
    %v2554 = vpop.f32.mrf.mxu0
    %2555 = vdwg.mxu0
    %v2557 = vrot.slane %v2553, 4
    %v2559 = vadd.f32 %v1817, %v2557
    %v2560 = vxor.u32 %v2559, 2147483648
    %v2561 = vmul.f32 %v2560, 1.442695
    %v2562 = vpow.pop %v2561
    %v2563 = vadd.f32 %v2562, 1.0
    %v2564 = vrcp.pop %v2563
    %v2565 = vmul.f32 1.0, %v2564
    %v2566 = vtanh.pop %v2559
    %v2568 = vrot.slane %v2469, 6
    %v2570 = vmul.f32 %v2565, %v2568
    %2572 = vrot.lane.b32.xlu0 %v2566, 64
    %v2573 = vpop.permute.xlu0 %2572
    %v2575 = vmul.f32 %v2565, %v2573
    %2577 = vrot.lane.b32.xlu0 %v2575, 32
    %v2578 = vpop.permute.xlu0 %2577
    %v2580 = vadd.f32 %v2570, %v2578
    %v2581 = vtanh.pop %v2580
    %2583 = vrot.lane.b32.xlu0 %v2581, 64
    %v2584 = vpop.permute.xlu0 %2583
    %v2586 = vmul.f32 %v2565, %v2584
    %2588 = vrot.lane.b32.xlu0 %v2586, 32
    %v2589 = vpop.permute.xlu0 %2588
    %2591 = vst.msk [vmem:[#allocation2 + $0x8] sm:$0x30] %vm1174, %v2589
    %v2592 = vrot.slane %v2586, 4
    %2593 = vrot.lane.b32.xlu0 %v2592, 32
    %v2594 = vpop.permute.xlu0 %2593
    %v2595 = vsel %vm846, %v2594, 0
    %2597 = vmatprep.subr.mxu0 0.0
    %2598 = vmatpush1.msra.mxu0 0.0
    %2599 = vmatprep.subr.mxu0 0.0
    %2600 = vmatpush1.msra.mxu0 0.0
    %2601 = vmatprep.subr.mxu0 0.0
    %2602 = vmatpush1.msra.mxu0 0.0
    %2603 = vmatprep.subr.mxu0 0.0
    %2604 = vmatpush1.msra.mxu0 0.0
    %2605 = vmatprep.subr.mxu0 0.0
    %2606 = vmatpush1.msra.mxu0 0.0
    %2607 = vmatprep.subr.mxu0 0.0
    %2608 = vmatpush1.msra.mxu0 0.0
    %2609 = vmatprep.subr.mxu0 0.0
    %2610 = vmatpush1.msra.mxu0 0.0
    %2611 = vmatprep.subr.mxu0 0.0
    %2612 = vmatpush1.msra.mxu0 0.0
    %2613 = vmatprep.subr.mxu0 0.0
    %2614 = vmatpush1.msra.mxu0 0.0
    %2615 = vmatprep.subr.mxu0 0.0
    %2616 = vmatpush1.msra.mxu0 0.0
    %2617 = vmatprep.subr.mxu0 0.0
    %2618 = vmatpush1.msra.mxu0 0.0
    %2619 = vmatprep.subr.mxu0 0.0
    %2620 = vmatpush1.msra.mxu0 0.0
    %2621 = vmatprep.subr.mxu0 0.0
    %2622 = vmatpush1.msra.mxu0 %v1823
    %2623 = vmatprep.subr.mxu0 0.0
    %2624 = vmatpush1.msra.mxu0 %v1822
    %2625 = vmatprep.subr.mxu0 0.0
    %2626 = vmatpush1.msra.mxu0 %v1821
    %2627 = vmatprep.subr.mxu0 0.0
    %2628 = vmatpush1.msra.mxu0 %v1820
    %2629 = vmatprep.subr.mxu0 0.0
    %2630 = vmatpush2.msra.mxu0 0.0
    %2631 = vmatprep.subr.mxu0 0.0
    %2632 = vmatpush2.msra.mxu0 0.0
    %2633 = vmatprep.subr.mxu0 0.0
    %2634 = vmatpush2.msra.mxu0 0.0
    %2635 = vmatprep.subr.mxu0 0.0
    %2636 = vmatpush2.msra.mxu0 0.0
    %2637 = vmatprep.subr.mxu0 0.0
    %2638 = vmatpush2.msra.mxu0 0.0
    %2639 = vmatprep.subr.mxu0 0.0
    %2640 = vmatpush2.msra.mxu0 0.0
    %2641 = vmatprep.subr.mxu0 0.0
    %2642 = vmatpush2.msra.mxu0 0.0
    %2643 = vmatprep.subr.mxu0 0.0
    %2644 = vmatpush2.msra.mxu0 0.0
    %2645 = vmatprep.subr.mxu0 0.0
    %2646 = vmatpush2.msra.mxu0 0.0
    %2647 = vmatprep.subr.mxu0 0.0
    %2648 = vmatpush2.msra.mxu0 0.0
    %2649 = vmatprep.subr.mxu0 0.0
    %2650 = vmatpush2.msra.mxu0 0.0
    %2651 = vmatprep.subr.mxu0 0.0
    %2652 = vmatpush2.msra.mxu0 0.0
    %2653 = vmatprep.subr.mxu0 0.0
    %2654 = vmatpush2.msra.mxu0 0.0
    %2655 = vmatprep.subr.mxu0 0.0
    %2656 = vmatpush2.msra.mxu0 0.0
    %2657 = vmatprep.subr.mxu0 0.0
    %2658 = vmatpush2.msra.mxu0 0.0
    %2659 = vmatprep.subr.mxu0 0.0
    %2660 = vmatpush2.msra.mxu0 0.0
    %2661 = vmatprep.mubr.f32.mxu0 0.0
    %2662 = vmatmul.mubr.f32.gmra.mxu0 %v2595
    %v2663 = vpop.f32.mrf.mxu0
    %v2664 = vadd.f32 0.0, %v2663
    %v2665 = vpop.f32.mrf.mxu0
    %2666 = vdwg.mxu0
    %v2668 = vrot.slane %v2664, 2
    %v2670 = vadd.f32 %v1817, %v2668
    %v2671 = vxor.u32 %v2670, 2147483648
    %v2672 = vmul.f32 %v2671, 1.442695
    %v2673 = vpow.pop %v2672
    %v2674 = vadd.f32 %v2673, 1.0
    %v2675 = vrcp.pop %v2674
    %v2676 = vmul.f32 1.0, %v2675
    %v2677 = vtanh.pop %v2670
    %v2679 = vrot.slane %v2580, 6
    %v2681 = vmul.f32 %v2676, %v2679
    %2683 = vrot.lane.b32.xlu0 %v2677, 64
    %v2684 = vpop.permute.xlu0 %2683
    %v2686 = vmul.f32 %v2676, %v2684
    %2688 = vrot.lane.b32.xlu0 %v2686, 32
    %v2689 = vpop.permute.xlu0 %2688
    %v2691 = vadd.f32 %v2681, %v2689
    %v2692 = vtanh.pop %v2691
    %2694 = vrot.lane.b32.xlu0 %v2692, 64
    %v2695 = vpop.permute.xlu0 %2694
    %v2697 = vmul.f32 %v2676, %v2695
    %2699 = vrot.lane.b32.xlu0 %v2697, 32
    %v2700 = vpop.permute.xlu0 %2699
    %2702 = vst.msk [vmem:[#allocation2 + $0x8] sm:$0xc0] %vm1286, %v2700
    %v2703 = vld [vmem:[#allocation2] sm:$0xff]
    %v2704 = vld [vmem:[#allocation2 + $0x8] sm:$0xff]
    %v2705 = vld [vmem:[%s11] sm:$0xff]
    %v2706 = vld [vmem:[%s11 + $0x8] sm:$0xff]
    %v2707 = vld [vmem:[%s11 + $0x10] sm:$0xff]
    %v2708 = vld [vmem:[%s11 + $0x18] sm:$0xff]
    %v2709 = vld [vmem:[%s12] sm:$0x1]
    %v2711 = vlaneseq
    %v2712 = vshrl.u32 %v2711, 7
    %v2713 = vsub.s32 0, %v2712
    %v2714 = vrot.slane %v2709, %v2713
    %v2717 = vsel %vm846, %v2703, 0
    %v2720 = vsel %vm846, %v2704, 0
    %2722 = vmatprep.subr.mxu0 0.0
    %2723 = vmatpush1.msra.mxu0 0.0
    %2724 = vmatprep.subr.mxu0 0.0
    %2725 = vmatpush1.msra.mxu0 0.0
    %2726 = vmatprep.subr.mxu0 0.0
    %2727 = vmatpush1.msra.mxu0 0.0
    %2728 = vmatprep.subr.mxu0 0.0
    %2729 = vmatpush1.msra.mxu0 0.0
    %2730 = vmatprep.subr.mxu0 0.0
    %2731 = vmatpush1.msra.mxu0 0.0
    %2732 = vmatprep.subr.mxu0 0.0
    %2733 = vmatpush1.msra.mxu0 0.0
    %2734 = vmatprep.subr.mxu0 0.0
    %2735 = vmatpush1.msra.mxu0 0.0
    %2736 = vmatprep.subr.mxu0 0.0
    %2737 = vmatpush1.msra.mxu0 0.0
    %2738 = vmatprep.subr.mxu0 0.0
    %2739 = vmatpush1.msra.mxu0 0.0
    %2740 = vmatprep.subr.mxu0 0.0
    %2741 = vmatpush1.msra.mxu0 0.0
    %2742 = vmatprep.subr.mxu0 0.0
    %2743 = vmatpush1.msra.mxu0 0.0
    %2744 = vmatprep.subr.mxu0 0.0
    %2745 = vmatpush1.msra.mxu0 0.0
    %2746 = vmatprep.subr.mxu0 0.0
    %2747 = vmatpush1.msra.mxu0 %v2708
    %2748 = vmatprep.subr.mxu0 0.0
    %2749 = vmatpush1.msra.mxu0 %v2707
    %2750 = vmatprep.subr.mxu0 0.0
    %2751 = vmatpush1.msra.mxu0 %v2706
    %2752 = vmatprep.subr.mxu0 0.0
    %2753 = vmatpush1.msra.mxu0 %v2705
    %2754 = vmatprep.subr.mxu0 0.0
    %2755 = vmatpush2.msra.mxu0 0.0
    %2756 = vmatprep.subr.mxu0 0.0
    %2757 = vmatpush2.msra.mxu0 0.0
    %2758 = vmatprep.subr.mxu0 0.0
    %2759 = vmatpush2.msra.mxu0 0.0
    %2760 = vmatprep.subr.mxu0 0.0
    %2761 = vmatpush2.msra.mxu0 0.0
    %2762 = vmatprep.subr.mxu0 0.0
    %2763 = vmatpush2.msra.mxu0 0.0
    %2764 = vmatprep.subr.mxu0 0.0
    %2765 = vmatpush2.msra.mxu0 0.0
    %2766 = vmatprep.subr.mxu0 0.0
    %2767 = vmatpush2.msra.mxu0 0.0
    %2768 = vmatprep.subr.mxu0 0.0
    %2769 = vmatpush2.msra.mxu0 0.0
    %2770 = vmatprep.subr.mxu0 0.0
    %2771 = vmatpush2.msra.mxu0 0.0
    %2772 = vmatprep.subr.mxu0 0.0
    %2773 = vmatpush2.msra.mxu0 0.0
    %2774 = vmatprep.subr.mxu0 0.0
    %2775 = vmatpush2.msra.mxu0 0.0
    %2776 = vmatprep.subr.mxu0 0.0
    %2777 = vmatpush2.msra.mxu0 0.0
    %2778 = vmatprep.subr.mxu0 0.0
    %2779 = vmatpush2.msra.mxu0 0.0
    %2780 = vmatprep.subr.mxu0 0.0
    %2781 = vmatpush2.msra.mxu0 0.0
    %2782 = vmatprep.subr.mxu0 0.0
    %2783 = vmatpush2.msra.mxu0 0.0
    %2784 = vmatprep.subr.mxu0 0.0
    %2785 = vmatpush2.msra.mxu0 0.0
    %2786 = vmatprep.mubr.f32.mxu0 0.0
    %2787 = vmatmul.mubr.f32.gmra.mxu0 %v2717
    %v2788 = vpop.f32.mrf.mxu0
    %v2789 = vadd.f32 %v2714, %v2788
    %v2790 = vpop.f32.mrf.mxu0
    %2791 = vmatprep.mubr.f32.mxu0 0.0
    %2792 = vmatmul.mubr.f32.gmra.mxu0 %v2720
    %v2793 = vpop.f32.mrf.mxu0
    %v2794 = vadd.f32 %v2714, %v2793
    %v2795 = vpop.f32.mrf.mxu0
    %2796 = vdwg.mxu0
    %vm2797 = vcmask 17408
    %v2798 = vsel %vm2797, %v2789, -inf
    %v2799 = vrot.slane %v2798, 4
    %v2800 = vmax.f32 %v2798, %v2799
    %v2801 = vrot.slane %v2800, 2
    %v2802 = vmax.f32 %v2800, %v2801
    %v2803 = vrot.slane %v2802, 1
    %v2804 = vmax.f32 %v2802, %v2803
    %v2805 = vsub.f32 %v2789, %v2804
    %v2806 = vmul.f32 %v2805, 1.442695
    %v2807 = vpow.pop %v2806
    %v2808 = vsel %vm2797, %v2807, 0.0
    %v2809 = vrot.slane %v2808, 4
    %v2810 = vadd.f32 %v2808, %v2809
    %v2811 = vrot.slane %v2810, 2
    %v2812 = vadd.f32 %v2810, %v2811
    %v2813 = vrot.slane %v2812, 1
    %v2814 = vadd.f32 %v2812, %v2813
    %v2815 = vrcp.pop %v2814
    %v2816 = vmul.f32 %v2807, %v2815
    %2817 = vst.msk [vmem:[%s15] sm:$0x3] %vm2797, %v2816
    %vm2818 = vcmask 19458
    %v2819 = vsel %vm2818, %v2789, -inf
    %v2820 = vrot.slane %v2819, 4
    %v2821 = vmax.f32 %v2819, %v2820
    %v2822 = vrot.slane %v2821, 2
    %v2823 = vmax.f32 %v2821, %v2822
    %v2824 = vrot.slane %v2823, 1
    %v2825 = vmax.f32 %v2823, %v2824
    %v2826 = vsub.f32 %v2789, %v2825
    %v2827 = vmul.f32 %v2826, 1.442695
    %v2828 = vpow.pop %v2827
    %v2830 = vrot.slane %v2828, 2
    %v2832 = vsel %vm2797, %v2830, 0.0
    %v2833 = vrot.slane %v2832, 4
    %v2834 = vadd.f32 %v2832, %v2833
    %v2835 = vrot.slane %v2834, 2
    %v2836 = vadd.f32 %v2834, %v2835
    %v2837 = vrot.slane %v2836, 1
    %v2838 = vadd.f32 %v2836, %v2837
    %v2839 = vrcp.pop %v2838
    %v2840 = vmul.f32 %v2828, %v2839
    %s2841 = scalar_lea.vmem %s15, 2
    %2842 = vst.msk [vmem:[%s2841 - $0x2] sm:$0xc] %vm2818, %v2840
    %vm2843 = vcmask 21508
    %v2844 = vsel %vm2843, %v2789, -inf
    %v2845 = vrot.slane %v2844, 4
    %v2846 = vmax.f32 %v2844, %v2845
    %v2847 = vrot.slane %v2846, 2
    %v2848 = vmax.f32 %v2846, %v2847
    %v2849 = vrot.slane %v2848, 1
    %v2850 = vmax.f32 %v2848, %v2849
    %v2851 = vsub.f32 %v2789, %v2850
    %v2852 = vmul.f32 %v2851, 1.442695
    %v2853 = vpow.pop %v2852
    %v2855 = vrot.slane %v2853, 4
    %v2857 = vsel %vm2797, %v2855, 0.0
    %v2858 = vrot.slane %v2857, 4
    %v2859 = vadd.f32 %v2857, %v2858
    %v2860 = vrot.slane %v2859, 2
    %v2861 = vadd.f32 %v2859, %v2860
    %v2862 = vrot.slane %v2861, 1
    %v2863 = vadd.f32 %v2861, %v2862
    %v2864 = vrcp.pop %v2863
    %v2865 = vmul.f32 %v2853, %v2864
    %s2866 = scalar_lea.vmem %s15, 4
    %2867 = vst.msk [vmem:[%s2866 - $0x4] sm:$0x30] %vm2843, %v2865
    %vm2868 = vcmask 23558
    %v2869 = vsel %vm2868, %v2789, -inf
    %v2870 = vrot.slane %v2869, 4
    %v2871 = vmax.f32 %v2869, %v2870
    %v2872 = vrot.slane %v2871, 2
    %v2873 = vmax.f32 %v2871, %v2872
    %v2874 = vrot.slane %v2873, 1
    %v2875 = vmax.f32 %v2873, %v2874
    %v2876 = vsub.f32 %v2789, %v2875
    %v2877 = vmul.f32 %v2876, 1.442695
    %v2878 = vpow.pop %v2877
    %v2880 = vrot.slane %v2878, 6
    %v2882 = vsel %vm2797, %v2880, 0.0
    %v2883 = vrot.slane %v2882, 4
    %v2884 = vadd.f32 %v2882, %v2883
    %v2885 = vrot.slane %v2884, 2
    %v2886 = vadd.f32 %v2884, %v2885
    %v2887 = vrot.slane %v2886, 1
    %v2888 = vadd.f32 %v2886, %v2887
    %v2889 = vrcp.pop %v2888
    %v2890 = vmul.f32 %v2878, %v2889
    %s2891 = scalar_lea.vmem %s15, 6
    %2892 = vst.msk [vmem:[%s2891 - $0x6] sm:$0xc0] %vm2868, %v2890
    %v2893 = vsel %vm2797, %v2794, -inf
    %v2894 = vrot.slane %v2893, 4
    %v2895 = vmax.f32 %v2893, %v2894
    %v2896 = vrot.slane %v2895, 2
    %v2897 = vmax.f32 %v2895, %v2896
    %v2898 = vrot.slane %v2897, 1
    %v2899 = vmax.f32 %v2897, %v2898
    %v2900 = vsub.f32 %v2794, %v2899
    %v2901 = vmul.f32 %v2900, 1.442695
    %v2902 = vpow.pop %v2901
    %v2903 = vsel %vm2797, %v2902, 0.0
    %v2904 = vrot.slane %v2903, 4
    %v2905 = vadd.f32 %v2903, %v2904
    %v2906 = vrot.slane %v2905, 2
    %v2907 = vadd.f32 %v2905, %v2906
    %v2908 = vrot.slane %v2907, 1
    %v2909 = vadd.f32 %v2907, %v2908
    %v2910 = vrcp.pop %v2909
    %v2911 = vmul.f32 %v2902, %v2910
    %s2912 = scalar_lea.vmem %s15, 8
    %2913 = vst.msk [vmem:[%s2912] sm:$0x3] %vm2797, %v2911
    %v2914 = vsel %vm2818, %v2794, -inf
    %v2915 = vrot.slane %v2914, 4
    %v2916 = vmax.f32 %v2914, %v2915
    %v2917 = vrot.slane %v2916, 2
    %v2918 = vmax.f32 %v2916, %v2917
    %v2919 = vrot.slane %v2918, 1
    %v2920 = vmax.f32 %v2918, %v2919
    %v2921 = vsub.f32 %v2794, %v2920
    %v2922 = vmul.f32 %v2921, 1.442695
    %v2923 = vpow.pop %v2922
    %v2925 = vrot.slane %v2923, 2
    %v2927 = vsel %vm2797, %v2925, 0.0
    %v2928 = vrot.slane %v2927, 4
    %v2929 = vadd.f32 %v2927, %v2928
    %v2930 = vrot.slane %v2929, 2
    %v2931 = vadd.f32 %v2929, %v2930
    %v2932 = vrot.slane %v2931, 1
    %v2933 = vadd.f32 %v2931, %v2932
    %v2934 = vrcp.pop %v2933
    %v2935 = vmul.f32 %v2923, %v2934
    %s2936 = scalar_lea.vmem %s15, 10
    %2937 = vst.msk [vmem:[%s2936 - $0x2] sm:$0xc] %vm2818, %v2935
    %v2938 = vsel %vm2843, %v2794, -inf
    %v2939 = vrot.slane %v2938, 4
    %v2940 = vmax.f32 %v2938, %v2939
    %v2941 = vrot.slane %v2940, 2
    %v2942 = vmax.f32 %v2940, %v2941
    %v2943 = vrot.slane %v2942, 1
    %v2944 = vmax.f32 %v2942, %v2943
    %v2945 = vsub.f32 %v2794, %v2944
    %v2946 = vmul.f32 %v2945, 1.442695
    %v2947 = vpow.pop %v2946
    %v2949 = vrot.slane %v2947, 4
    %v2951 = vsel %vm2797, %v2949, 0.0
    %v2952 = vrot.slane %v2951, 4
    %v2953 = vadd.f32 %v2951, %v2952
    %v2954 = vrot.slane %v2953, 2
    %v2955 = vadd.f32 %v2953, %v2954
    %v2956 = vrot.slane %v2955, 1
    %v2957 = vadd.f32 %v2955, %v2956
    %v2958 = vrcp.pop %v2957
    %v2959 = vmul.f32 %v2947, %v2958
    %s2960 = scalar_lea.vmem %s15, 12
    %2961 = vst.msk [vmem:[%s2960 - $0x4] sm:$0x30] %vm2843, %v2959
    %v2962 = vsel %vm2868, %v2794, -inf
    %v2963 = vrot.slane %v2962, 4
    %v2964 = vmax.f32 %v2962, %v2963
    %v2965 = vrot.slane %v2964, 2
    %v2966 = vmax.f32 %v2964, %v2965
    %v2967 = vrot.slane %v2966, 1
    %v2968 = vmax.f32 %v2966, %v2967
    %v2969 = vsub.f32 %v2794, %v2968
    %v2970 = vmul.f32 %v2969, 1.442695
    %v2971 = vpow.pop %v2970
    %v2973 = vrot.slane %v2971, 6
    %v2975 = vsel %vm2797, %v2973, 0.0
    %v2976 = vrot.slane %v2975, 4
    %v2977 = vadd.f32 %v2975, %v2976
    %v2978 = vrot.slane %v2977, 2
    %v2979 = vadd.f32 %v2977, %v2978
    %v2980 = vrot.slane %v2979, 1
    %v2981 = vadd.f32 %v2979, %v2980
    %v2982 = vrcp.pop %v2981
    %v2983 = vmul.f32 %v2971, %v2982
    %s2984 = scalar_lea.vmem %s15, 14
    %2985 = vst.msk [vmem:[%s2984 - $0x6] sm:$0xc0] %vm2868, %v2983
    // Predicated region
    $region94: #{tpu_custom_call.1} parent=1 // pred_check
      _
    $region95: #{tpu_custom_call.1} parent=1 // pred_check_branch
      %2987 = sbr.rel (0) target = $region97
    $region96: #{tpu_custom_call.1} parent=1 // pred_region
      _
    $region97: #{tpu_custom_call.1} parent=1 // pred_fallthru
      _
    // Predicated region
    $region98: #{tpu_custom_call.1} parent=1 // pred_check
      _
    $region99: #{tpu_custom_call.1} parent=1 // pred_check_branch
      %2989 = sbr.rel (0) target = $region101
    $region100: #{tpu_custom_call.1} parent=1 // pred_region
      _
    $region101: #{tpu_custom_call.1} parent=1 // pred_fallthru
      _
    %2990 = vsyncpa [#allocation4], 1
    %2991 = vsyncpa [#allocation7], 1
    %2992 = vsyncpa [#allocation13], 1
    %2993 = vsyncpa [#allocation16], 1
    %2994 = vsyncpa [#allocation5], 1
    %2995 = vsyncpa [#allocation10], 1

</llo_original>
